<compile_context>
chip_gen: v6e
topology: v6e:2x2x1
jax: 0.10.0
libtpu: 0.0.40
codegen_flags: <defaults>
</compile_context>

<pallas_src>
import math
import functools

import jax
import jax.numpy as jnp
from jax.experimental import pallas as pl
from jax.experimental.pallas import tpu as pltpu


FUSED_ORDER = (
    "ln1_w", "ln1_b", "ln2_w", "ln2_b",
    "wqkv", "bqkv", "wo", "bo",
    "cos", "sin_rot",
    "w12", "b12", "w3", "b3",
)


# ----------------------------------------------------------------------------
# RoPE tables (shared by kernel param prep and reference)
# ----------------------------------------------------------------------------
def rope_tables(seq_len, head_size):
    inv_freq = 1.0 / (65536.0 ** (jnp.arange(0, head_size, 2, dtype=jnp.float32)
                                  / head_size))
    t = jnp.arange(seq_len, dtype=jnp.float32)
    freqs = jnp.outer(t, inv_freq)                      # (S, hs/2)
    emb = jnp.concatenate([freqs, freqs], axis=-1)      # (S, hs)
    return jnp.cos(emb), jnp.sin(emb)


# ----------------------------------------------------------------------------
# Pallas kernel
# ----------------------------------------------------------------------------
def _decoder_layer_kernel(
        x_ref,
        ln1_w_ref, ln1_b_ref, ln2_w_ref, ln2_b_ref,
        wqkv_ref, bqkv_ref, wo_ref, bo_ref,
        cos_ref, sinr_ref,
        w12_ref, b12_ref, w3_ref, b3_ref,
        out_ref,
        *, bt, seq, num_heads, head_size, ff_pad, is_causal):
    f32 = jnp.float32
    d = num_heads * head_size
    rows = bt * seq

    x = x_ref[...]                                     # (rows, H) bf16
    xf = x.astype(f32)

    def rmsnorm(t, w_ref, b_ref):                      # f32 in, f32 out
        ms = jnp.mean(t * t, axis=-1, keepdims=True)
        return (t * jax.lax.rsqrt(ms + 1e-5)
                * w_ref[...].astype(f32) + b_ref[...].astype(f32))

    # ------------------------- self-attention block -------------------------
    h = rmsnorm(xf, ln1_w_ref, ln1_b_ref).astype(x.dtype)
    qkv = (jnp.dot(h, wqkv_ref[...], preferred_element_type=f32)
           + bqkv_ref[...].astype(f32))                # (rows, 3d) f32; scale folded in Wq

    def split_heads(t):                                # (rows, d) -> (bt*nH, seq, hs)
        parts = [
            t[:, hh * head_size:(hh + 1) * head_size].reshape(bt, 1, seq, head_size)
            for hh in range(num_heads)
        ]
        return jnp.concatenate(parts, axis=1).reshape(bt * num_heads, seq, head_size)

    q = split_heads(qkv[:, :d])
    k = split_heads(qkv[:, d:2 * d])
    v = split_heads(qkv[:, 2 * d:]).astype(x.dtype)

    cos = cos_ref[...][None]                           # (1, seq, hs) f32
    sinr = sinr_ref[...][None]                         # sign of rotate_half folded in
    half = head_size // 2

    def rope(t):                                       # XLU lane rotate, no lane concat
        return t * cos + pltpu.roll(t, shift=half, axis=2) * sinr

    q = rope(q).astype(x.dtype)
    k = rope(k).astype(x.dtype)

    # head-batched attention (1/sqrt(hs) already folded into Wq)
    s = jnp.einsum("bqd,bkd->bqk", q, k, preferred_element_type=f32)
    if is_causal:
        qi = jax.lax.broadcasted_iota(jnp.int32, (seq, seq), 0)
        ki = jax.lax.broadcasted_iota(jnp.int32, (seq, seq), 1)
        s = jnp.where((ki <= qi)[None], s, -1e30)
    m = jnp.max(s, axis=-1, keepdims=True)
    p = jnp.exp(s - m)
    l = jnp.sum(p, axis=-1, keepdims=True)
    p = (p * pl.reciprocal(l, approx=True)).astype(x.dtype)
    o = jnp.einsum("bqk,bkd->bqd", p, v, preferred_element_type=f32)  # (bt*nH, seq, hs)

    # merge heads back to (rows, d) with 128-aligned lane concat
    o = o.reshape(bt, num_heads, seq, head_size)
    o = jnp.concatenate(
        [o[:, hh].reshape(rows, head_size) for hh in range(num_heads)],
        axis=-1).astype(x.dtype)

    attn = (jnp.dot(o, wo_ref[...], preferred_element_type=f32)
            + bo_ref[...].astype(f32))
    x_res = (xf + attn).astype(x.dtype)                # bf16 residual stream (torch semantics)

    # ------------------------------ SwiGLU MLP ------------------------------
    xf2 = x_res.astype(f32)
    h = rmsnorm(xf2, ln2_w_ref, ln2_b_ref).astype(x.dtype)
    x12 = (jnp.dot(h, w12_ref[...], preferred_element_type=f32)
           + b12_ref[...].astype(f32))                 # (rows, 2*ff_pad)
    x1 = x12[:, :ff_pad]
    x2 = x12[:, ff_pad:]
    hidden = (x1 * jax.nn.sigmoid(x1) * x2).astype(x.dtype)   # SiLU(x1) * x2
    mlp = (jnp.dot(hidden, w3_ref[...], preferred_element_type=f32)
           + b3_ref[...].astype(f32))
    out_ref[...] = (xf2 + mlp).astype(out_ref.dtype)


# ----------------------------------------------------------------------------
# Wrapper: parameter fusion + pallas_call
# ----------------------------------------------------------------------------
def prepare_params(raw, num_heads, head_size, seq_len):
    """Fuse / pre-scale / pad the raw (torch-layout-equivalent) parameters."""
    f32, bf16 = jnp.float32, jnp.bfloat16
    H = raw["wq"].shape[0]
    d = num_heads * head_size

    # fold 1/sqrt(head_size) attention scale into the Q projection
    scale = 1.0 / math.sqrt(head_size)
    wq = (raw["wq"].astype(f32) * scale).astype(bf16)
    bq = (raw["bq"].astype(f32) * scale).astype(bf16)
    wqkv = jnp.concatenate([wq, raw["wk"], raw["wv"]], axis=1)              # (H, 3d)
    bqkv = jnp.concatenate([bq, raw["bk"], raw["bv"]], axis=0).reshape(1, 3 * d)

    # RoPE tables (f32) with rotate_half sign folded into sin
    cos, sin = rope_tables(seq_len, head_size)
    sign = jnp.concatenate([-jnp.ones((head_size // 2,), f32),
                            jnp.ones((head_size // 2,), f32)])
    sin_rot = sin * sign[None, :]

    # SwiGLU: pad ff to a multiple of 128 (exact: padded lanes contribute 0), fuse w1|w2
    ff = raw["w1"].shape[1]
    ff_pad = ((ff + 127) // 128) * 128
    pad = ff_pad - ff
    w1p = jnp.pad(raw["w1"], ((0, 0), (0, pad)))
    w2p = jnp.pad(raw["w2"], ((0, 0), (0, pad)))
    b1p = jnp.pad(raw["b1"], ((0, pad),))
    b2p = jnp.pad(raw["b2"], ((0, pad),))
    w3p = jnp.pad(raw["w3"], ((0, pad), (0, 0)))
    w12 = jnp.concatenate([w1p, w2p], axis=1)                                # (H, 2*ff_pad)
    b12 = jnp.concatenate([b1p, b2p], axis=0).reshape(1, 2 * ff_pad)

    fused = {
        "ln1_w": raw["ln1_w"].reshape(1, H), "ln1_b": raw["ln1_b"].reshape(1, H),
        "ln2_w": raw["ln2_w"].reshape(1, H), "ln2_b": raw["ln2_b"].reshape(1, H),
        "wqkv": wqkv, "bqkv": bqkv,
        "wo": raw["wo"], "bo": raw["bo"].reshape(1, H),
        "cos": cos, "sin_rot": sin_rot,
        "w12": w12, "b12": b12, "w3": w3p, "b3": raw["b3"].reshape(1, H),
    }
    return fused, ff_pad


def _pick_block_batch(B, S, max_rows=512):
    # prefer >=2 grid steps (megacore / pipelining), then the biggest legal block.
    ok = [bt for bt in range(1, B + 1)
          if B % bt == 0 and ((bt * S) % 8 == 0 or bt == B) and bt * S <= max_rows]
    if not ok:
        return B
    multi = [bt for bt in ok if B // bt >= 2]
    return max(multi) if multi else max(ok)


def decoder_layer(x, raw_params, num_heads, head_size, *, is_causal=False,
                  block_batch=None):
    B, S, H = x.shape
    d = num_heads * head_size
    assert d == raw_params["wq"].shape[1]

    fused, ff_pad = prepare_params(raw_params, num_heads, head_size, S)
    bt = block_batch or _pick_block_batch(B, S)
    rows = bt * S
    grid = (B // bt,)

    x2 = x.reshape(B * S, H)
    param_list = [fused[name] for name in FUSED_ORDER]

    in_specs = [pl.BlockSpec((rows, H), lambda i: (i, 0))]
    for p_arr in param_list:
        # small parameters: full-array blocks, same block every grid step
        in_specs.append(pl.BlockSpec(p_arr.shape, lambda i: (0, 0)))

    kernel = functools.partial(
        _decoder_layer_kernel,
        bt=bt, seq=S, num_heads=num_heads, head_size=head_size,
        ff_pad=ff_pad, is_causal=is_causal)

    # advisory cost estimate for the XLA scheduler
    matmul_flops = 2 * B * S * (H * 3 * d + d * H + H * 2 * ff_pad + ff_pad * H)
    attn_flops = 4 * B * num_heads * S * S * head_size
    transc = B * num_heads * S * S + B * S * ff_pad + 2 * B * S
    param_bytes = sum(int(v.size) * v.dtype.itemsize for v in param_list)
    act_bytes = 2 * int(x.size) * x.dtype.itemsize
    cost = pl.CostEstimate(flops=int(matmul_flops + attn_flops),
                           transcendentals=int(transc),
                           bytes_accessed=int(param_bytes + act_bytes))

    out2 = pl.pallas_call(
        kernel,
        out_shape=jax.ShapeDtypeStruct((B * S, H), x.dtype),
        grid_spec=pltpu.PrefetchScalarGridSpec(
            num_scalar_prefetch=0,
            grid=grid,
            in_specs=in_specs,
            out_specs=pl.BlockSpec((rows, H), lambda i: (i, 0)),
        ),
        compiler_params=pltpu.CompilerParams(
            dimension_semantics=("parallel",),
            vmem_limit_bytes=32 * 1024 * 1024),
        cost_estimate=cost,
    )(x2, *param_list)

    return out2.reshape(B, S, H)


# ----------------------------------------------------------------------------
# Deterministic raw-parameter init (mirrors the torch __init__ shapes / stds)
# Weights stored as (in_features, out_features), i.e. y = x @ W + b.
# ----------------------------------------------------------------------------
def init_raw_params(key, hidden_size, num_heads, head_size):
    bf16 = jnp.bfloat16
    d = num_heads * head_size
    ff = hidden_size * 8 // 3
    keys = jax.random.split(key, 8)

    def normal(k, shape, std):
        return (jax.random.normal(k, shape, jnp.float32) * std).astype(bf16)

    return {
        "ln1_w": jnp.ones((hidden_size,), bf16), "ln1_b": jnp.zeros((hidden_size,), bf16),
        "ln2_w": jnp.ones((hidden_size,), bf16), "ln2_b": jnp.zeros((hidden_size,), bf16),
        "wq": normal(keys[0], (hidden_size, d), 1.0 / math.sqrt(d)),
        "wk": normal(keys[1], (hidden_size, d), 1.0 / math.sqrt(d)),
        "wv": normal(keys[2], (hidden_size, d), 1.0 / math.sqrt(d)),
        "wo": normal(keys[3], (d, hidden_size), 1.0 / math.sqrt(hidden_size)),
        "bq": jnp.zeros((d,), bf16), "bk": jnp.zeros((d,), bf16),
        "bv": jnp.zeros((d,), bf16), "bo": jnp.zeros((hidden_size,), bf16),
        "w1": normal(keys[4], (hidden_size, ff), 1.0 / math.sqrt(ff)),
        "w2": normal(keys[5], (hidden_size, ff), 1.0 / math.sqrt(ff)),
        "w3": normal(keys[6], (ff, hidden_size), 1.0 / math.sqrt(hidden_size)),
        "b1": jnp.zeros((ff,), bf16), "b2": jnp.zeros((ff,), bf16),
        "b3": jnp.zeros((hidden_size,), bf16),
    }


# ----------------------------------------------------------------------------
# Pure-JAX reference (mirrors the torch DecoderLayer: bf16 weights/activations,
# f32 accumulation at matmul boundaries, exact softmax, unfused projections).
# ----------------------------------------------------------------------------
def reference_decoder_layer(x, raw, num_heads, head_size):
    f32 = jnp.float32
    bf16 = x.dtype
    B, S, H = x.shape
    d = num_heads * head_size
    hs = head_size

    def rms(t, w, b):
        tf = t.astype(f32)
        y = tf * jax.lax.rsqrt(jnp.mean(tf * tf, axis=-1, keepdims=True) + 1e-5)
        return (y * w.astype(f32) + b.astype(f32)).astype(bf16)

    def linear(t, w, b):
        return (jnp.dot(t, w, preferred_element_type=f32) + b.astype(f32)).astype(bf16)

    cos, sin = rope_tables(S, hs)

    def rope(t):                                       # (B, nH, S, hs)
        tf = t.astype(f32)
        t1, t2 = tf[..., :hs // 2], tf[..., hs // 2:]
        rot = jnp.concatenate([-t2, t1], axis=-1)
        return (tf * cos[None, None] + rot * sin[None, None]).astype(bf16)

    def split(t):
        return t.reshape(B, S, num_heads, hs).transpose(0, 2, 1, 3)

    # --- self attention ---
    res = x
    h = rms(x, raw["ln1_w"], raw["ln1_b"])
    q = rope(split(linear(h, raw["wq"], raw["bq"])))
    k = rope(split(linear(h, raw["wk"], raw["bk"])))
    v = split(linear(h, raw["wv"], raw["bv"]))
    s = jnp.einsum("bhqd,bhkd->bhqk", q, k,
                   preferred_element_type=f32) / math.sqrt(hs)
    p = jax.nn.softmax(s, axis=-1).astype(bf16)
    o = jnp.einsum("bhqk,bhkd->bhqd", p, v, preferred_element_type=f32).astype(bf16)
    o = o.transpose(0, 2, 1, 3).reshape(B, S, d)
    x = linear(o, raw["wo"], raw["bo"]) + res

    # --- SwiGLU MLP ---
    res = x
    h = rms(x, raw["ln2_w"], raw["ln2_b"])
    x1 = jnp.dot(h, raw["w1"], preferred_element_type=f32) + raw["b1"].astype(f32)
    x2 = jnp.dot(h, raw["w2"], preferred_element_type=f32) + raw["b2"].astype(f32)
    hidden = (x1 * jax.nn.sigmoid(x1) * x2).astype(bf16)
    mlp = linear(hidden, raw["w3"], raw["b3"])
    return mlp + res


if __name__ == "__main__":
    # small, TPU-friendly config: B=2, S=16, hidden=256, 2 heads of 128
    B, S = 2, 16
    H, nH, hs = 256, 2, 128

    key = jax.random.PRNGKey(0)
    kx, kp = jax.random.split(key)
    x = jax.random.normal(kx, (B, S, H), jnp.float32).astype(jnp.bfloat16)
    raw = init_raw_params(kp, H, nH, hs)

    out = decoder_layer(x, raw, nH, hs)
    out = jax.block_until_ready(out)

    ref = reference_decoder_layer(x, raw, nH, hs)
    assert out.shape == (B, S, H) and out.dtype == jnp.bfloat16
    diff = jnp.max(jnp.abs(out.astype(jnp.float32) - ref.astype(jnp.float32)))
    assert jnp.allclose(out.astype(jnp.float32), ref.astype(jnp.float32),
                        atol=5e-2, rtol=5e-2), f"kernel mismatch, max abs err={diff}"
    print("KERNEL_OK")
</pallas_src>

<mosaic_0001>
module attributes {stable_mosaic.version = 11 : i64} {
  func.func @_decoder_layer_kernel(%arg0: i32, %arg1: memref<16x256xbf16, #tpu.memory_space<vmem>>, %arg2: memref<1x256xbf16, #tpu.memory_space<vmem>>, %arg3: memref<1x256xbf16, #tpu.memory_space<vmem>>, %arg4: memref<1x256xbf16, #tpu.memory_space<vmem>>, %arg5: memref<1x256xbf16, #tpu.memory_space<vmem>>, %arg6: memref<256x768xbf16, #tpu.memory_space<vmem>>, %arg7: memref<1x768xbf16, #tpu.memory_space<vmem>>, %arg8: memref<256x256xbf16, #tpu.memory_space<vmem>>, %arg9: memref<1x256xbf16, #tpu.memory_space<vmem>>, %arg10: memref<16x128xf32, #tpu.memory_space<vmem>>, %arg11: memref<16x128xf32, #tpu.memory_space<vmem>>, %arg12: memref<256x1536xbf16, #tpu.memory_space<vmem>>, %arg13: memref<1x1536xbf16, #tpu.memory_space<vmem>>, %arg14: memref<768x256xbf16, #tpu.memory_space<vmem>>, %arg15: memref<1x256xbf16, #tpu.memory_space<vmem>>, %arg16: memref<16x256xbf16, #tpu.memory_space<vmem>>) attributes {dimension_semantics = [#tpu.dimension_semantics<parallel>], iteration_bounds = array<i64: 2>, scalar_prefetch = 0 : i64, scratch_operands = 0 : i64, tpu.core_type = #tpu.core_type<tc>, window_params = [{transform_indices = @transform_0, window_bounds = array<i64: 16, 256>}, {pipeline_mode = #tpu.pipeline_mode<synchronous>, transform_indices = @transform_1, window_bounds = array<i64: 1, 256>}, {pipeline_mode = #tpu.pipeline_mode<synchronous>, transform_indices = @transform_2, window_bounds = array<i64: 1, 256>}, {pipeline_mode = #tpu.pipeline_mode<synchronous>, transform_indices = @transform_3, window_bounds = array<i64: 1, 256>}, {pipeline_mode = #tpu.pipeline_mode<synchronous>, transform_indices = @transform_4, window_bounds = array<i64: 1, 256>}, {pipeline_mode = #tpu.pipeline_mode<synchronous>, transform_indices = @transform_5, window_bounds = array<i64: 256, 768>}, {pipeline_mode = #tpu.pipeline_mode<synchronous>, transform_indices = @transform_6, window_bounds = array<i64: 1, 768>}, {pipeline_mode = #tpu.pipeline_mode<synchronous>, transform_indices = @transform_7, window_bounds = array<i64: 256, 256>}, {pipeline_mode = #tpu.pipeline_mode<synchronous>, transform_indices = @transform_8, window_bounds = array<i64: 1, 256>}, {pipeline_mode = #tpu.pipeline_mode<synchronous>, transform_indices = @transform_9, window_bounds = array<i64: 16, 128>}, {pipeline_mode = #tpu.pipeline_mode<synchronous>, transform_indices = @transform_10, window_bounds = array<i64: 16, 128>}, {pipeline_mode = #tpu.pipeline_mode<synchronous>, transform_indices = @transform_11, window_bounds = array<i64: 256, 1536>}, {pipeline_mode = #tpu.pipeline_mode<synchronous>, transform_indices = @transform_12, window_bounds = array<i64: 1, 1536>}, {pipeline_mode = #tpu.pipeline_mode<synchronous>, transform_indices = @transform_13, window_bounds = array<i64: 768, 256>}, {pipeline_mode = #tpu.pipeline_mode<synchronous>, transform_indices = @transform_14, window_bounds = array<i64: 1, 256>}, {transform_indices = @transform_15, window_bounds = array<i64: 16, 256>}]} {
    %c0 = arith.constant 0 : index
    %c0_0 = arith.constant 0 : index
    %0 = vector.load %arg1[%c0, %c0_0] : memref<16x256xbf16, #tpu.memory_space<vmem>>, vector<16x256xbf16>
    %1 = arith.extf %0 : vector<16x256xbf16> to vector<16x256xf32>
    %2 = arith.mulf %1, %1 : vector<16x256xf32>
    %cst = arith.constant dense<0.000000e+00> : vector<16xf32>
    %3 = vector.multi_reduction <add>, %2, %cst [1] : vector<16x256xf32> to vector<16xf32>
    %4 = vector.shape_cast %3 : vector<16xf32> to vector<16x1xf32>
    %cst_1 = arith.constant 2.560000e+02 : f32
    %5 = vector.broadcast %cst_1 : f32 to vector<16x1xf32>
    %6 = arith.divf %4, %5 : vector<16x1xf32>
    %cst_2 = arith.constant 9.99999974E-6 : f32
    %7 = vector.broadcast %cst_2 : f32 to vector<16x1xf32>
    %8 = arith.addf %6, %7 : vector<16x1xf32>
    %9 = math.rsqrt %8 : vector<16x1xf32>
    %10 = vector.broadcast %9 : vector<16x1xf32> to vector<16x256xf32>
    %11 = arith.mulf %1, %10 : vector<16x256xf32>
    %c0_3 = arith.constant 0 : index
    %c0_4 = arith.constant 0 : index
    %12 = vector.load %arg2[%c0_3, %c0_4] : memref<1x256xbf16, #tpu.memory_space<vmem>>, vector<1x256xbf16>
    %13 = arith.extf %12 : vector<1x256xbf16> to vector<1x256xf32>
    %14 = vector.broadcast %13 : vector<1x256xf32> to vector<16x256xf32>
    %15 = arith.mulf %11, %14 : vector<16x256xf32>
    %c0_5 = arith.constant 0 : index
    %c0_6 = arith.constant 0 : index
    %16 = vector.load %arg3[%c0_5, %c0_6] : memref<1x256xbf16, #tpu.memory_space<vmem>>, vector<1x256xbf16>
    %17 = arith.extf %16 : vector<1x256xbf16> to vector<1x256xf32>
    %18 = vector.broadcast %17 : vector<1x256xf32> to vector<16x256xf32>
    %19 = arith.addf %15, %18 : vector<16x256xf32>
    %20 = arith.truncf %19 : vector<16x256xf32> to vector<16x256xbf16>
    %c0_7 = arith.constant 0 : index
    %c0_8 = arith.constant 0 : index
    %21 = vector.load %arg6[%c0_7, %c0_8] : memref<256x768xbf16, #tpu.memory_space<vmem>>, vector<256x768xbf16>
    %cst_9 = arith.constant dense<0.000000e+00> : vector<16x768xf32>
    %22 = tpu.matmul %20, %21, %cst_9 {dimension_numbers = #tpu.dot_dimension_numbers<[1], [0], [0], [1], [0, 0, 1, 1], [], []>} : vector<16x256xbf16>, vector<256x768xbf16>, vector<16x768xf32> -> vector<16x768xf32>
    %c0_10 = arith.constant 0 : index
    %c0_11 = arith.constant 0 : index
    %23 = vector.load %arg7[%c0_10, %c0_11] : memref<1x768xbf16, #tpu.memory_space<vmem>>, vector<1x768xbf16>
    %24 = arith.extf %23 : vector<1x768xbf16> to vector<1x768xf32>
    %25 = vector.broadcast %24 : vector<1x768xf32> to vector<16x768xf32>
    %26 = arith.addf %22, %25 : vector<16x768xf32>
    %27 = vector.extract_strided_slice %26 {offsets = [0, 0], sizes = [16, 256], strides = [1, 1]} : vector<16x768xf32> to vector<16x256xf32>
    %28 = vector.extract_strided_slice %27 {offsets = [0, 0], sizes = [16, 128], strides = [1, 1]} : vector<16x256xf32> to vector<16x128xf32>
    %29 = vector.shape_cast %28 : vector<16x128xf32> to vector<1x1x16x128xf32>
    %30 = vector.extract_strided_slice %27 {offsets = [0, 128], sizes = [16, 128], strides = [1, 1]} : vector<16x256xf32> to vector<16x128xf32>
    %31 = vector.shape_cast %30 : vector<16x128xf32> to vector<1x1x16x128xf32>
    %32 = tpu.concatenate %29, %31 in 1 : vector<1x1x16x128xf32>, vector<1x1x16x128xf32> -> vector<1x2x16x128xf32>
    %33 = vector.shape_cast %32 : vector<1x2x16x128xf32> to vector<2x16x128xf32>
    %34 = vector.extract_strided_slice %26 {offsets = [0, 256], sizes = [16, 256], strides = [1, 1]} : vector<16x768xf32> to vector<16x256xf32>
    %35 = vector.extract_strided_slice %34 {offsets = [0, 0], sizes = [16, 128], strides = [1, 1]} : vector<16x256xf32> to vector<16x128xf32>
    %36 = vector.shape_cast %35 : vector<16x128xf32> to vector<1x1x16x128xf32>
    %37 = vector.extract_strided_slice %34 {offsets = [0, 128], sizes = [16, 128], strides = [1, 1]} : vector<16x256xf32> to vector<16x128xf32>
    %38 = vector.shape_cast %37 : vector<16x128xf32> to vector<1x1x16x128xf32>
    %39 = tpu.concatenate %36, %38 in 1 : vector<1x1x16x128xf32>, vector<1x1x16x128xf32> -> vector<1x2x16x128xf32>
    %40 = vector.shape_cast %39 : vector<1x2x16x128xf32> to vector<2x16x128xf32>
    %41 = vector.extract_strided_slice %26 {offsets = [0, 512], sizes = [16, 256], strides = [1, 1]} : vector<16x768xf32> to vector<16x256xf32>
    %42 = vector.extract_strided_slice %41 {offsets = [0, 0], sizes = [16, 128], strides = [1, 1]} : vector<16x256xf32> to vector<16x128xf32>
    %43 = vector.shape_cast %42 : vector<16x128xf32> to vector<1x1x16x128xf32>
    %44 = vector.extract_strided_slice %41 {offsets = [0, 128], sizes = [16, 128], strides = [1, 1]} : vector<16x256xf32> to vector<16x128xf32>
    %45 = vector.shape_cast %44 : vector<16x128xf32> to vector<1x1x16x128xf32>
    %46 = tpu.concatenate %43, %45 in 1 : vector<1x1x16x128xf32>, vector<1x1x16x128xf32> -> vector<1x2x16x128xf32>
    %47 = vector.shape_cast %46 : vector<1x2x16x128xf32> to vector<2x16x128xf32>
    %48 = arith.truncf %47 : vector<2x16x128xf32> to vector<2x16x128xbf16>
    %c0_12 = arith.constant 0 : index
    %c0_13 = arith.constant 0 : index
    %49 = vector.load %arg10[%c0_12, %c0_13] : memref<16x128xf32, #tpu.memory_space<vmem>>, vector<16x128xf32>
    %50 = vector.shape_cast %49 : vector<16x128xf32> to vector<1x16x128xf32>
    %c0_14 = arith.constant 0 : index
    %c0_15 = arith.constant 0 : index
    %51 = vector.load %arg11[%c0_14, %c0_15] : memref<16x128xf32, #tpu.memory_space<vmem>>, vector<16x128xf32>
    %52 = vector.shape_cast %51 : vector<16x128xf32> to vector<1x16x128xf32>
    %53 = vector.broadcast %50 : vector<1x16x128xf32> to vector<2x16x128xf32>
    %54 = arith.mulf %33, %53 : vector<2x16x128xf32>
    %c64_i32 = arith.constant 64 : i32
    %55 = tpu.dynamic_rotate %33 by %c64_i32 dim 2 : vector<2x16x128xf32>, i32 -> vector<2x16x128xf32>
    %56 = vector.broadcast %52 : vector<1x16x128xf32> to vector<2x16x128xf32>
    %57 = arith.mulf %55, %56 : vector<2x16x128xf32>
    %58 = arith.addf %54, %57 : vector<2x16x128xf32>
    %59 = arith.truncf %58 : vector<2x16x128xf32> to vector<2x16x128xbf16>
    %60 = vector.broadcast %50 : vector<1x16x128xf32> to vector<2x16x128xf32>
    %61 = arith.mulf %40, %60 : vector<2x16x128xf32>
    %c64_i32_16 = arith.constant 64 : i32
    %62 = tpu.dynamic_rotate %40 by %c64_i32_16 dim 2 : vector<2x16x128xf32>, i32 -> vector<2x16x128xf32>
    %63 = vector.broadcast %52 : vector<1x16x128xf32> to vector<2x16x128xf32>
    %64 = arith.mulf %62, %63 : vector<2x16x128xf32>
    %65 = arith.addf %61, %64 : vector<2x16x128xf32>
    %66 = arith.truncf %65 : vector<2x16x128xf32> to vector<2x16x128xbf16>
    "tpu.trace_start"() <{level = 10 : i32, message = "bqd,bkd->bqk"}> : () -> ()
    %cst_17 = arith.constant dense<0.000000e+00> : vector<2x16x16xf32>
    %67 = tpu.matmul %59, %66, %cst_17 {dimension_numbers = #tpu.dot_dimension_numbers<[2], [2], [1], [1], [0, 0, 0, 1, 1, 1], [0], [0]>} : vector<2x16x128xbf16>, vector<2x16x128xbf16>, vector<2x16x16xf32> -> vector<2x16x16xf32>
    "tpu.trace_stop"() : () -> ()
    %cst_18 = arith.constant dense<0xFF800000> : vector<2x16xf32>
    %68 = vector.multi_reduction <maximumf>, %67, %cst_18 [2] : vector<2x16x16xf32> to vector<2x16xf32>
    %69 = vector.shape_cast %68 : vector<2x16xf32> to vector<2x16x1xf32>
    %70 = vector.broadcast %69 : vector<2x16x1xf32> to vector<2x16x16xf32>
    %71 = arith.subf %67, %70 : vector<2x16x16xf32>
    %72 = math.exp %71 : vector<2x16x16xf32>
    %cst_19 = arith.constant dense<0.000000e+00> : vector<2x16xf32>
    %73 = vector.multi_reduction <add>, %72, %cst_19 [2] : vector<2x16x16xf32> to vector<2x16xf32>
    %74 = vector.shape_cast %73 : vector<2x16xf32> to vector<2x16x1xf32>
    %75 = tpu.reciprocal %74 {approx = true} : vector<2x16x1xf32> -> vector<2x16x1xf32>
    %76 = vector.broadcast %75 : vector<2x16x1xf32> to vector<2x16x16xf32>
    %77 = arith.mulf %72, %76 : vector<2x16x16xf32>
    %78 = arith.truncf %77 : vector<2x16x16xf32> to vector<2x16x16xbf16>
    "tpu.trace_start"() <{level = 10 : i32, message = "bqk,bkd->bqd"}> : () -> ()
    %cst_20 = arith.constant dense<0.000000e+00> : vector<2x16x128xf32>
    %79 = tpu.matmul %78, %48, %cst_20 {dimension_numbers = #tpu.dot_dimension_numbers<[2], [1], [1], [2], [0, 0, 0, 1, 1, 2], [0], [0]>} : vector<2x16x16xbf16>, vector<2x16x128xbf16>, vector<2x16x128xf32> -> vector<2x16x128xf32>
    "tpu.trace_stop"() : () -> ()
    %80 = vector.shape_cast %79 : vector<2x16x128xf32> to vector<1x2x16x128xf32>
    %81 = vector.extract_strided_slice %80 {offsets = [0, 0, 0, 0], sizes = [1, 1, 16, 128], strides = [1, 1, 1, 1]} : vector<1x2x16x128xf32> to vector<1x1x16x128xf32>
    %82 = vector.shape_cast %81 : vector<1x1x16x128xf32> to vector<1x16x128xf32>
    %83 = vector.shape_cast %82 : vector<1x16x128xf32> to vector<16x128xf32>
    %84 = vector.extract_strided_slice %80 {offsets = [0, 1, 0, 0], sizes = [1, 1, 16, 128], strides = [1, 1, 1, 1]} : vector<1x2x16x128xf32> to vector<1x1x16x128xf32>
    %85 = vector.shape_cast %84 : vector<1x1x16x128xf32> to vector<1x16x128xf32>
    %86 = vector.shape_cast %85 : vector<1x16x128xf32> to vector<16x128xf32>
    %87 = tpu.concatenate %83, %86 in 1 : vector<16x128xf32>, vector<16x128xf32> -> vector<16x256xf32>
    %88 = arith.truncf %87 : vector<16x256xf32> to vector<16x256xbf16>
    %c0_21 = arith.constant 0 : index
    %c0_22 = arith.constant 0 : index
    %89 = vector.load %arg8[%c0_21, %c0_22] : memref<256x256xbf16, #tpu.memory_space<vmem>>, vector<256x256xbf16>
    %cst_23 = arith.constant dense<0.000000e+00> : vector<16x256xf32>
    %90 = tpu.matmul %88, %89, %cst_23 {dimension_numbers = #tpu.dot_dimension_numbers<[1], [0], [0], [1], [0, 0, 1, 1], [], []>} : vector<16x256xbf16>, vector<256x256xbf16>, vector<16x256xf32> -> vector<16x256xf32>
    %c0_24 = arith.constant 0 : index
    %c0_25 = arith.constant 0 : index
    %91 = vector.load %arg9[%c0_24, %c0_25] : memref<1x256xbf16, #tpu.memory_space<vmem>>, vector<1x256xbf16>
    %92 = arith.extf %91 : vector<1x256xbf16> to vector<1x256xf32>
    %93 = vector.broadcast %92 : vector<1x256xf32> to vector<16x256xf32>
    %94 = arith.addf %90, %93 : vector<16x256xf32>
    %95 = arith.addf %1, %94 : vector<16x256xf32>
    %96 = arith.truncf %95 : vector<16x256xf32> to vector<16x256xbf16>
    %97 = arith.extf %96 : vector<16x256xbf16> to vector<16x256xf32>
    %98 = arith.mulf %97, %97 : vector<16x256xf32>
    %cst_26 = arith.constant dense<0.000000e+00> : vector<16xf32>
    %99 = vector.multi_reduction <add>, %98, %cst_26 [1] : vector<16x256xf32> to vector<16xf32>
    %100 = vector.shape_cast %99 : vector<16xf32> to vector<16x1xf32>
    %cst_27 = arith.constant 2.560000e+02 : f32
    %101 = vector.broadcast %cst_27 : f32 to vector<16x1xf32>
    %102 = arith.divf %100, %101 : vector<16x1xf32>
    %cst_28 = arith.constant 9.99999974E-6 : f32
    %103 = vector.broadcast %cst_28 : f32 to vector<16x1xf32>
    %104 = arith.addf %102, %103 : vector<16x1xf32>
    %105 = math.rsqrt %104 : vector<16x1xf32>
    %106 = vector.broadcast %105 : vector<16x1xf32> to vector<16x256xf32>
    %107 = arith.mulf %97, %106 : vector<16x256xf32>
    %c0_29 = arith.constant 0 : index
    %c0_30 = arith.constant 0 : index
    %108 = vector.load %arg4[%c0_29, %c0_30] : memref<1x256xbf16, #tpu.memory_space<vmem>>, vector<1x256xbf16>
    %109 = arith.extf %108 : vector<1x256xbf16> to vector<1x256xf32>
    %110 = vector.broadcast %109 : vector<1x256xf32> to vector<16x256xf32>
    %111 = arith.mulf %107, %110 : vector<16x256xf32>
    %c0_31 = arith.constant 0 : index
    %c0_32 = arith.constant 0 : index
    %112 = vector.load %arg5[%c0_31, %c0_32] : memref<1x256xbf16, #tpu.memory_space<vmem>>, vector<1x256xbf16>
    %113 = arith.extf %112 : vector<1x256xbf16> to vector<1x256xf32>
    %114 = vector.broadcast %113 : vector<1x256xf32> to vector<16x256xf32>
    %115 = arith.addf %111, %114 : vector<16x256xf32>
    %116 = arith.truncf %115 : vector<16x256xf32> to vector<16x256xbf16>
    %c0_33 = arith.constant 0 : index
    %c0_34 = arith.constant 0 : index
    %117 = vector.load %arg12[%c0_33, %c0_34] : memref<256x1536xbf16, #tpu.memory_space<vmem>>, vector<256x1536xbf16>
    %cst_35 = arith.constant dense<0.000000e+00> : vector<16x1536xf32>
    %118 = tpu.matmul %116, %117, %cst_35 {dimension_numbers = #tpu.dot_dimension_numbers<[1], [0], [0], [1], [0, 0, 1, 1], [], []>} : vector<16x256xbf16>, vector<256x1536xbf16>, vector<16x1536xf32> -> vector<16x1536xf32>
    %c0_36 = arith.constant 0 : index
    %c0_37 = arith.constant 0 : index
    %119 = vector.load %arg13[%c0_36, %c0_37] : memref<1x1536xbf16, #tpu.memory_space<vmem>>, vector<1x1536xbf16>
    %120 = arith.extf %119 : vector<1x1536xbf16> to vector<1x1536xf32>
    %121 = vector.broadcast %120 : vector<1x1536xf32> to vector<16x1536xf32>
    %122 = arith.addf %118, %121 : vector<16x1536xf32>
    %123 = vector.extract_strided_slice %122 {offsets = [0, 0], sizes = [16, 768], strides = [1, 1]} : vector<16x1536xf32> to vector<16x768xf32>
    %124 = vector.extract_strided_slice %122 {offsets = [0, 768], sizes = [16, 768], strides = [1, 1]} : vector<16x1536xf32> to vector<16x768xf32>
    %125 = arith.negf %123 : vector<16x768xf32>
    %126 = math.exp %125 : vector<16x768xf32>
    %cst_38 = arith.constant 1.000000e+00 : f32
    %127 = vector.broadcast %cst_38 : f32 to vector<16x768xf32>
    %128 = arith.addf %127, %126 : vector<16x768xf32>
    %129 = arith.divf %127, %128 : vector<16x768xf32>
    %130 = arith.mulf %123, %129 : vector<16x768xf32>
    %131 = arith.mulf %130, %124 : vector<16x768xf32>
    %132 = arith.truncf %131 : vector<16x768xf32> to vector<16x768xbf16>
    %c0_39 = arith.constant 0 : index
    %c0_40 = arith.constant 0 : index
    %133 = vector.load %arg14[%c0_39, %c0_40] : memref<768x256xbf16, #tpu.memory_space<vmem>>, vector<768x256xbf16>
    %cst_41 = arith.constant dense<0.000000e+00> : vector<16x256xf32>
    %134 = tpu.matmul %132, %133, %cst_41 {dimension_numbers = #tpu.dot_dimension_numbers<[1], [0], [0], [1], [0, 0, 1, 1], [], []>} : vector<16x768xbf16>, vector<768x256xbf16>, vector<16x256xf32> -> vector<16x256xf32>
    %c0_42 = arith.constant 0 : index
    %c0_43 = arith.constant 0 : index
    %135 = vector.load %arg15[%c0_42, %c0_43] : memref<1x256xbf16, #tpu.memory_space<vmem>>, vector<1x256xbf16>
    %136 = arith.extf %135 : vector<1x256xbf16> to vector<1x256xf32>
    %137 = vector.broadcast %136 : vector<1x256xf32> to vector<16x256xf32>
    %138 = arith.addf %134, %137 : vector<16x256xf32>
    %139 = arith.addf %97, %138 : vector<16x256xf32>
    %140 = arith.truncf %139 : vector<16x256xf32> to vector<16x256xbf16>
    %c0_44 = arith.constant 0 : index
    %c0_45 = arith.constant 0 : index
    %141 = vector.load %arg16[%c0_44, %c0_45] : memref<16x256xbf16, #tpu.memory_space<vmem>>, vector<16x256xbf16>
    tpu.vector_store %arg16[%c0_44, %c0_45], %140 {strides = array<i32>} : memref<16x256xbf16, #tpu.memory_space<vmem>>, vector<16x256xbf16>,
    return
  }
  func.func @transform_0(%arg0: i32) -> (i32, i32) {
    %c0_i32 = arith.constant 0 : i32
    %c0_i32_0 = arith.constant 0 : i32
    return %arg0, %c0_i32 : i32, i32
  }
  func.func @transform_1(%arg0: i32) -> (i32, i32) {
    %c0_i32 = arith.constant 0 : i32
    %c0_i32_0 = arith.constant 0 : i32
    %c0_i32_1 = arith.constant 0 : i32
    return %c0_i32, %c0_i32_0 : i32, i32
  }
  func.func @transform_2(%arg0: i32) -> (i32, i32) {
    %c0_i32 = arith.constant 0 : i32
    %c0_i32_0 = arith.constant 0 : i32
    %c0_i32_1 = arith.constant 0 : i32
    return %c0_i32, %c0_i32_0 : i32, i32
  }
  func.func @transform_3(%arg0: i32) -> (i32, i32) {
    %c0_i32 = arith.constant 0 : i32
    %c0_i32_0 = arith.constant 0 : i32
    %c0_i32_1 = arith.constant 0 : i32
    return %c0_i32, %c0_i32_0 : i32, i32
  }
  func.func @transform_4(%arg0: i32) -> (i32, i32) {
    %c0_i32 = arith.constant 0 : i32
    %c0_i32_0 = arith.constant 0 : i32
    %c0_i32_1 = arith.constant 0 : i32
    return %c0_i32, %c0_i32_0 : i32, i32
  }
  func.func @transform_5(%arg0: i32) -> (i32, i32) {
    %c0_i32 = arith.constant 0 : i32
    %c0_i32_0 = arith.constant 0 : i32
    %c0_i32_1 = arith.constant 0 : i32
    return %c0_i32, %c0_i32_0 : i32, i32
  }
  func.func @transform_6(%arg0: i32) -> (i32, i32) {
    %c0_i32 = arith.constant 0 : i32
    %c0_i32_0 = arith.constant 0 : i32
    %c0_i32_1 = arith.constant 0 : i32
    return %c0_i32, %c0_i32_0 : i32, i32
  }
  func.func @transform_7(%arg0: i32) -> (i32, i32) {
    %c0_i32 = arith.constant 0 : i32
    %c0_i32_0 = arith.constant 0 : i32
    %c0_i32_1 = arith.constant 0 : i32
    return %c0_i32, %c0_i32_0 : i32, i32
  }
  func.func @transform_8(%arg0: i32) -> (i32, i32) {
    %c0_i32 = arith.constant 0 : i32
    %c0_i32_0 = arith.constant 0 : i32
    %c0_i32_1 = arith.constant 0 : i32
    return %c0_i32, %c0_i32_0 : i32, i32
  }
  func.func @transform_9(%arg0: i32) -> (i32, i32) {
    %c0_i32 = arith.constant 0 : i32
    %c0_i32_0 = arith.constant 0 : i32
    %c0_i32_1 = arith.constant 0 : i32
    return %c0_i32, %c0_i32_0 : i32, i32
  }
  func.func @transform_10(%arg0: i32) -> (i32, i32) {
    %c0_i32 = arith.constant 0 : i32
    %c0_i32_0 = arith.constant 0 : i32
    %c0_i32_1 = arith.constant 0 : i32
    return %c0_i32, %c0_i32_0 : i32, i32
  }
  func.func @transform_11(%arg0: i32) -> (i32, i32) {
    %c0_i32 = arith.constant 0 : i32
    %c0_i32_0 = arith.constant 0 : i32
    %c0_i32_1 = arith.constant 0 : i32
    return %c0_i32, %c0_i32_0 : i32, i32
  }
  func.func @transform_12(%arg0: i32) -> (i32, i32) {
    %c0_i32 = arith.constant 0 : i32
    %c0_i32_0 = arith.constant 0 : i32
    %c0_i32_1 = arith.constant 0 : i32
    return %c0_i32, %c0_i32_0 : i32, i32
  }
  func.func @transform_13(%arg0: i32) -> (i32, i32) {
    %c0_i32 = arith.constant 0 : i32
    %c0_i32_0 = arith.constant 0 : i32
    %c0_i32_1 = arith.constant 0 : i32
    return %c0_i32, %c0_i32_0 : i32, i32
  }
  func.func @transform_14(%arg0: i32) -> (i32, i32) {
    %c0_i32 = arith.constant 0 : i32
    %c0_i32_0 = arith.constant 0 : i32
    %c0_i32_1 = arith.constant 0 : i32
    return %c0_i32, %c0_i32_0 : i32, i32
  }
  func.func @transform_15(%arg0: i32) -> (i32, i32) {
    %c0_i32 = arith.constant 0 : i32
    %c0_i32_0 = arith.constant 0 : i32
    return %arg0, %c0_i32 : i32, i32
  }
}

</mosaic_0001>

<llo_original>
// kernel: tpu_custom_call.1
$region0: #{tpu_custom_call.1}
  #allocation0 [shape = 'u32[]', space=smem, size = 0x4, offset = 0x4, fixed_abs, tag = 'smem constant byte address 0x4 - core index']
  #allocation1 [shape = 'u32[144,128]{1,0:T(1,128)}', space=vmem, size = 0x12000, scoped, tag = 'internal scratch']
  %s0 = inlined_call_operand.hbm [shape: bf16[32,256], index: 0, kind: input, shape index: {}]
  %s1 = inlined_call_operand.hbm [shape: bf16[1,256], index: 1, kind: input, shape index: {}]
  %s2 = inlined_call_operand.hbm [shape: bf16[1,256], index: 2, kind: input, shape index: {}]
  %s3 = inlined_call_operand.hbm [shape: bf16[1,256], index: 3, kind: input, shape index: {}]
  %s4 = inlined_call_operand.hbm [shape: bf16[1,256], index: 4, kind: input, shape index: {}]
  %s5 = inlined_call_operand.hbm [shape: bf16[256,768], index: 5, kind: input, shape index: {}]
  %s6 = inlined_call_operand.hbm [shape: bf16[1,768], index: 6, kind: input, shape index: {}]
  %s7 = inlined_call_operand.hbm [shape: bf16[256,256], index: 7, kind: input, shape index: {}]
  %s8 = inlined_call_operand.hbm [shape: bf16[1,256], index: 8, kind: input, shape index: {}]
  %s9 = inlined_call_operand.vmem [shape: f32[16,128], index: 9, kind: input, shape index: {}]
  %s10 = inlined_call_operand.hbm [shape: f32[16,128], index: 10, kind: input, shape index: {}]
  %s11 = inlined_call_operand.hbm [shape: bf16[256,1536], index: 11, kind: input, shape index: {}]
  %s12 = inlined_call_operand.hbm [shape: bf16[1,1536], index: 12, kind: input, shape index: {}]
  %s13 = inlined_call_operand.hbm [shape: bf16[768,256], index: 13, kind: input, shape index: {}]
  %s14 = inlined_call_operand.vmem [shape: bf16[1,256], index: 14, kind: input, shape index: {}]
  %s15 = inlined_call_operand.hbm [shape: bf16[32,256], index: 15, kind: output, shape index: {}]
  %s16 = sld [smem:[#allocation0]]
  $region145: #{tpu_custom_call.1} parent=0
    _
  %s18 = ssub.s32 1, %s16
  %s19 = scalar_select 0, %s18, %s16
  $region1: #{tpu_custom_call.1} parent=0
    #allocation2 [shape = 'u8[16384]{0}', space=vmem, size = 0x4000, scoped, tag = 'input window, operand 0']
    #allocation3 [shape = 's32[2]{0}', space=sflag, size = 0x8, scoped, tag = 'scoped memory for tpu_custom_call.1']
    #allocation4 [shape = 's32[2]{0}', space=sflag, size = 0x8, scoped, tag = 'scoped memory for tpu_custom_call.1']
    #allocation5 [shape = 'u8[1024]{0}', space=vmem, size = 0x400, scoped, tag = 'input window, operand 1, single buffered']
    #allocation6 [shape = 's32[1]{0}', space=sflag, size = 0x4, scoped, tag = 'scoped memory for tpu_custom_call.1']
    #allocation7 [shape = 'u8[1024]{0}', space=vmem, size = 0x400, scoped, tag = 'input window, operand 2, single buffered']
    #allocation8 [shape = 'u8[1024]{0}', space=vmem, size = 0x400, scoped, tag = 'input window, operand 3, single buffered']
    #allocation9 [shape = 's32[1]{0}', space=sflag, size = 0x4, scoped, tag = 'scoped memory for tpu_custom_call.1']
    #allocation10 [shape = 'u8[1024]{0}', space=vmem, size = 0x400, scoped, tag = 'input window, operand 4, single buffered']
    #allocation11 [shape = 'u8[393216]{0}', space=vmem, size = 0x60000, scoped, tag = 'input window, operand 5, single buffered']
    #allocation12 [shape = 's32[1]{0}', space=sflag, size = 0x4, scoped, tag = 'scoped memory for tpu_custom_call.1']
    #allocation13 [shape = 'u8[3072]{0}', space=vmem, size = 0xc00, scoped, tag = 'input window, operand 6, single buffered']
    #allocation14 [shape = 'u8[131072]{0}', space=vmem, size = 0x20000, scoped, tag = 'input window, operand 7, single buffered']
    #allocation15 [shape = 's32[1]{0}', space=sflag, size = 0x4, scoped, tag = 'scoped memory for tpu_custom_call.1']
    #allocation16 [shape = 'u8[1024]{0}', space=vmem, size = 0x400, scoped, tag = 'input window, operand 8, single buffered']
    #allocation17 [shape = 'u8[8192]{0}', space=vmem, size = 0x2000, scoped, tag = 'input window, operand 10, single buffered']
    #allocation18 [shape = 's32[1]{0}', space=sflag, size = 0x4, scoped, tag = 'scoped memory for tpu_custom_call.1']
    #allocation19 [shape = 'u8[786432]{0}', space=vmem, size = 0xc0000, scoped, tag = 'input window, operand 11, single buffered']
    #allocation20 [shape = 'u8[6144]{0}', space=vmem, size = 0x1800, scoped, tag = 'input window, operand 12, single buffered']
    #allocation21 [shape = 's32[1]{0}', space=sflag, size = 0x4, scoped, tag = 'scoped memory for tpu_custom_call.1']
    #allocation22 [shape = 'u8[393216]{0}', space=vmem, size = 0x60000, scoped, tag = 'input window, operand 13, single buffered']
    #allocation23 [shape = 'u8[16384]{0}', space=vmem, size = 0x4000, scoped, tag = 'output window, operand 0']
    %20 = vsyncpa [#allocation3], 0
    %s21 = scalar_lea.sflag [#allocation3], 1
    %22 = vsyncpa %s21, 0
    %23 = vsyncpa [#allocation6], 0
    %24 = vsyncpa [#allocation9], 0
    %25 = vsyncpa [#allocation12], 0
    %26 = vsyncpa [#allocation15], 0
    %27 = vsyncpa [#allocation18], 0
    %28 = vsyncpa [#allocation21], 0
    %29 = vsyncpa [#allocation4], 0
    %s30 = scalar_lea.sflag [#allocation4], 1
    %31 = vsyncpa %s30, 0
    loop: start=0, step=1, limit=4
    $region2: #{tpu_custom_call.1} parent=1 // loop_pre_header
      _
    $region3: #{tpu_custom_call.1} parent=1 // loop_header
      %s33 = sphi 0, %s37
      %p34 = scmp.ge.s32.totalorder %s33, 4
      %s43 = sphi 0, %s45
      %s46 = sphi 0, %s43
      %s47 = sphi 0, %s46
      %s63 = sphi 0, %s47
      %s67 = sphi 0, %s67
      %s69 = sphi 0, %s67
      %s70 = sphi 0, %s69
      %s84 = sphi 0, %s70
      %s88 = sphi 0, %s88
      %s90 = sphi 0, %s88
      %s91 = sphi 0, %s90
      %s105 = sphi 0, %s91
      %s109 = sphi 0, %s109
      %s111 = sphi 0, %s109
      %s112 = sphi 0, %s111
      %s126 = sphi 0, %s112
      %s130 = sphi 0, %s130
      %s132 = sphi 0, %s130
      %s133 = sphi 0, %s132
      %s147 = sphi 0, %s133
      %s151 = sphi 0, %s151
      %s153 = sphi 0, %s151
      %s154 = sphi 0, %s153
      %s168 = sphi 0, %s154
      %s172 = sphi 0, %s172
      %s174 = sphi 0, %s172
      %s175 = sphi 0, %s174
      %s189 = sphi 0, %s175
      %s193 = sphi 0, %s193
      %s195 = sphi 0, %s193
      %s196 = sphi 0, %s195
      %s210 = sphi 0, %s196
      %s214 = sphi 0, %s214
      %s216 = sphi 0, %s214
      %s217 = sphi 0, %s216
      %s231 = sphi 0, %s217
      %s235 = sphi 0, %s235
      %s237 = sphi 0, %s235
      %s238 = sphi 0, %s237
      %s252 = sphi 0, %s238
      %s256 = sphi 0, %s256
      %s258 = sphi 0, %s256
      %s259 = sphi 0, %s258
      %s273 = sphi 0, %s259
      %s277 = sphi 0, %s277
      %s279 = sphi 0, %s277
      %s280 = sphi 0, %s279
      %s294 = sphi 0, %s280
      %s298 = sphi 0, %s298
      %s300 = sphi 0, %s298
      %s301 = sphi 0, %s300
      %s315 = sphi 0, %s301
      %s319 = sphi 0, %s319
      %s321 = sphi 0, %s319
      %s322 = sphi 0, %s321
      %s336 = sphi 0, %s322
      %s340 = sphi 0, %s340
      %s342 = sphi 0, %s340
      %s343 = sphi 0, %s342
      %s357 = sphi 0, %s343
      %s363 = sphi 0, %s365
      %s366 = sphi 0, %s363
      %s367 = sphi 0, %s366
      %s383 = sphi 0, %s367
    $region4: #{tpu_custom_call.1} parent=1 // loop_header_branch
      %36 = sbr.rel (%p34) target = $region8
    $region5: #{tpu_custom_call.1} parent=1 // loop_body
      %s38 = ssub.s32 %s33, 1
      %s39 = ssub.s32 %s33, 2
      %s40 = sadd.s32 %s33, 1
      %s41 = ssub.s32 %s33, %s40
      %p42 = scmp.eq.s32.totalorder %s41, 0
      %s44 = sadd.s32 %s43, 1
      %s45 = scalar_select %p42, %s43, %s44
      %p48 = pneg %p42
      %p49 = scmp.eq.s32.totalorder %s33, 1
      %p50 = por %p48, %p49
      %p51 = scmp.ne.s32.totalorder %s43, %s46
      %p52 = scmp.eq.s32.totalorder %s33, 0
      %p53 = por %p51, %p52
      %p54 = scmp.ne.s32.totalorder %s43, %s46
      %p55 = scmp.eq.s32.totalorder %s38, 1
      %p56 = por %p54, %p55
      %p57 = scmp.ne.s32.totalorder %s46, %s47
      %p58 = scmp.eq.s32.totalorder %s38, 0
      %p59 = por %p57, %p58
      %p60 = scmp.ne.s32.totalorder %s46, %s47
      %p61 = scmp.eq.s32.totalorder %s39, 1
      %p62 = por %p60, %p61
      %p64 = scmp.ne.s32.totalorder %s47, %s63
      %p65 = scmp.eq.s32.totalorder %s39, 0
      %p66 = por %p64, %p65
      %s68 = sadd.s32 %s67, 1
      %p71 = scmp.eq.s32.totalorder %s33, 1
      %p72 = scmp.ne.s32.totalorder %s67, %s69
      %p73 = scmp.eq.s32.totalorder %s33, 0
      %p74 = por %p72, %p73
      %p75 = scmp.ne.s32.totalorder %s67, %s69
      %p76 = scmp.eq.s32.totalorder %s38, 1
      %p77 = por %p75, %p76
      %p78 = scmp.ne.s32.totalorder %s69, %s70
      %p79 = scmp.eq.s32.totalorder %s38, 0
      %p80 = por %p78, %p79
      %p81 = scmp.ne.s32.totalorder %s69, %s70
      %p82 = scmp.eq.s32.totalorder %s39, 1
      %p83 = por %p81, %p82
      %p85 = scmp.ne.s32.totalorder %s70, %s84
      %p86 = scmp.eq.s32.totalorder %s39, 0
      %p87 = por %p85, %p86
      %s89 = sadd.s32 %s88, 1
      %p92 = scmp.eq.s32.totalorder %s33, 1
      %p93 = scmp.ne.s32.totalorder %s88, %s90
      %p94 = scmp.eq.s32.totalorder %s33, 0
      %p95 = por %p93, %p94
      %p96 = scmp.ne.s32.totalorder %s88, %s90
      %p97 = scmp.eq.s32.totalorder %s38, 1
      %p98 = por %p96, %p97
      %p99 = scmp.ne.s32.totalorder %s90, %s91
      %p100 = scmp.eq.s32.totalorder %s38, 0
      %p101 = por %p99, %p100
      %p102 = scmp.ne.s32.totalorder %s90, %s91
      %p103 = scmp.eq.s32.totalorder %s39, 1
      %p104 = por %p102, %p103
      %p106 = scmp.ne.s32.totalorder %s91, %s105
      %p107 = scmp.eq.s32.totalorder %s39, 0
      %p108 = por %p106, %p107
      %s110 = sadd.s32 %s109, 1
      %p113 = scmp.eq.s32.totalorder %s33, 1
      %p114 = scmp.ne.s32.totalorder %s109, %s111
      %p115 = scmp.eq.s32.totalorder %s33, 0
      %p116 = por %p114, %p115
      %p117 = scmp.ne.s32.totalorder %s109, %s111
      %p118 = scmp.eq.s32.totalorder %s38, 1
      %p119 = por %p117, %p118
      %p120 = scmp.ne.s32.totalorder %s111, %s112
      %p121 = scmp.eq.s32.totalorder %s38, 0
      %p122 = por %p120, %p121
      %p123 = scmp.ne.s32.totalorder %s111, %s112
      %p124 = scmp.eq.s32.totalorder %s39, 1
      %p125 = por %p123, %p124
      %p127 = scmp.ne.s32.totalorder %s112, %s126
      %p128 = scmp.eq.s32.totalorder %s39, 0
      %p129 = por %p127, %p128
      %s131 = sadd.s32 %s130, 1
      %p134 = scmp.eq.s32.totalorder %s33, 1
      %p135 = scmp.ne.s32.totalorder %s130, %s132
      %p136 = scmp.eq.s32.totalorder %s33, 0
      %p137 = por %p135, %p136
      %p138 = scmp.ne.s32.totalorder %s130, %s132
      %p139 = scmp.eq.s32.totalorder %s38, 1
      %p140 = por %p138, %p139
      %p141 = scmp.ne.s32.totalorder %s132, %s133
      %p142 = scmp.eq.s32.totalorder %s38, 0
      %p143 = por %p141, %p142
      %p144 = scmp.ne.s32.totalorder %s132, %s133
      %p145 = scmp.eq.s32.totalorder %s39, 1
      %p146 = por %p144, %p145
      %p148 = scmp.ne.s32.totalorder %s133, %s147
      %p149 = scmp.eq.s32.totalorder %s39, 0
      %p150 = por %p148, %p149
      %s152 = sadd.s32 %s151, 1
      %p155 = scmp.eq.s32.totalorder %s33, 1
      %p156 = scmp.ne.s32.totalorder %s151, %s153
      %p157 = scmp.eq.s32.totalorder %s33, 0
      %p158 = por %p156, %p157
      %p159 = scmp.ne.s32.totalorder %s151, %s153
      %p160 = scmp.eq.s32.totalorder %s38, 1
      %p161 = por %p159, %p160
      %p162 = scmp.ne.s32.totalorder %s153, %s154
      %p163 = scmp.eq.s32.totalorder %s38, 0
      %p164 = por %p162, %p163
      %p165 = scmp.ne.s32.totalorder %s153, %s154
      %p166 = scmp.eq.s32.totalorder %s39, 1
      %p167 = por %p165, %p166
      %p169 = scmp.ne.s32.totalorder %s154, %s168
      %p170 = scmp.eq.s32.totalorder %s39, 0
      %p171 = por %p169, %p170
      %s173 = sadd.s32 %s172, 1
      %p176 = scmp.eq.s32.totalorder %s33, 1
      %p177 = scmp.ne.s32.totalorder %s172, %s174
      %p178 = scmp.eq.s32.totalorder %s33, 0
      %p179 = por %p177, %p178
      %p180 = scmp.ne.s32.totalorder %s172, %s174
      %p181 = scmp.eq.s32.totalorder %s38, 1
      %p182 = por %p180, %p181
      %p183 = scmp.ne.s32.totalorder %s174, %s175
      %p184 = scmp.eq.s32.totalorder %s38, 0
      %p185 = por %p183, %p184
      %p186 = scmp.ne.s32.totalorder %s174, %s175
      %p187 = scmp.eq.s32.totalorder %s39, 1
      %p188 = por %p186, %p187
      %p190 = scmp.ne.s32.totalorder %s175, %s189
      %p191 = scmp.eq.s32.totalorder %s39, 0
      %p192 = por %p190, %p191
      %s194 = sadd.s32 %s193, 1
      %p197 = scmp.eq.s32.totalorder %s33, 1
      %p198 = scmp.ne.s32.totalorder %s193, %s195
      %p199 = scmp.eq.s32.totalorder %s33, 0
      %p200 = por %p198, %p199
      %p201 = scmp.ne.s32.totalorder %s193, %s195
      %p202 = scmp.eq.s32.totalorder %s38, 1
      %p203 = por %p201, %p202
      %p204 = scmp.ne.s32.totalorder %s195, %s196
      %p205 = scmp.eq.s32.totalorder %s38, 0
      %p206 = por %p204, %p205
      %p207 = scmp.ne.s32.totalorder %s195, %s196
      %p208 = scmp.eq.s32.totalorder %s39, 1
      %p209 = por %p207, %p208
      %p211 = scmp.ne.s32.totalorder %s196, %s210
      %p212 = scmp.eq.s32.totalorder %s39, 0
      %p213 = por %p211, %p212
      %s215 = sadd.s32 %s214, 1
      %p218 = scmp.eq.s32.totalorder %s33, 1
      %p219 = scmp.ne.s32.totalorder %s214, %s216
      %p220 = scmp.eq.s32.totalorder %s33, 0
      %p221 = por %p219, %p220
      %p222 = scmp.ne.s32.totalorder %s214, %s216
      %p223 = scmp.eq.s32.totalorder %s38, 1
      %p224 = por %p222, %p223
      %p225 = scmp.ne.s32.totalorder %s216, %s217
      %p226 = scmp.eq.s32.totalorder %s38, 0
      %p227 = por %p225, %p226
      %p228 = scmp.ne.s32.totalorder %s216, %s217
      %p229 = scmp.eq.s32.totalorder %s39, 1
      %p230 = por %p228, %p229
      %p232 = scmp.ne.s32.totalorder %s217, %s231
      %p233 = scmp.eq.s32.totalorder %s39, 0
      %p234 = por %p232, %p233
      %s236 = sadd.s32 %s235, 1
      %p239 = scmp.eq.s32.totalorder %s33, 1
      %p240 = scmp.ne.s32.totalorder %s235, %s237
      %p241 = scmp.eq.s32.totalorder %s33, 0
      %p242 = por %p240, %p241
      %p243 = scmp.ne.s32.totalorder %s235, %s237
      %p244 = scmp.eq.s32.totalorder %s38, 1
      %p245 = por %p243, %p244
      %p246 = scmp.ne.s32.totalorder %s237, %s238
      %p247 = scmp.eq.s32.totalorder %s38, 0
      %p248 = por %p246, %p247
      %p249 = scmp.ne.s32.totalorder %s237, %s238
      %p250 = scmp.eq.s32.totalorder %s39, 1
      %p251 = por %p249, %p250
      %p253 = scmp.ne.s32.totalorder %s238, %s252
      %p254 = scmp.eq.s32.totalorder %s39, 0
      %p255 = por %p253, %p254
      %s257 = sadd.s32 %s256, 1
      %p260 = scmp.eq.s32.totalorder %s33, 1
      %p261 = scmp.ne.s32.totalorder %s256, %s258
      %p262 = scmp.eq.s32.totalorder %s33, 0
      %p263 = por %p261, %p262
      %p264 = scmp.ne.s32.totalorder %s256, %s258
      %p265 = scmp.eq.s32.totalorder %s38, 1
      %p266 = por %p264, %p265
      %p267 = scmp.ne.s32.totalorder %s258, %s259
      %p268 = scmp.eq.s32.totalorder %s38, 0
      %p269 = por %p267, %p268
      %p270 = scmp.ne.s32.totalorder %s258, %s259
      %p271 = scmp.eq.s32.totalorder %s39, 1
      %p272 = por %p270, %p271
      %p274 = scmp.ne.s32.totalorder %s259, %s273
      %p275 = scmp.eq.s32.totalorder %s39, 0
      %p276 = por %p274, %p275
      %s278 = sadd.s32 %s277, 1
      %p281 = scmp.eq.s32.totalorder %s33, 1
      %p282 = scmp.ne.s32.totalorder %s277, %s279
      %p283 = scmp.eq.s32.totalorder %s33, 0
      %p284 = por %p282, %p283
      %p285 = scmp.ne.s32.totalorder %s277, %s279
      %p286 = scmp.eq.s32.totalorder %s38, 1
      %p287 = por %p285, %p286
      %p288 = scmp.ne.s32.totalorder %s279, %s280
      %p289 = scmp.eq.s32.totalorder %s38, 0
      %p290 = por %p288, %p289
      %p291 = scmp.ne.s32.totalorder %s279, %s280
      %p292 = scmp.eq.s32.totalorder %s39, 1
      %p293 = por %p291, %p292
      %p295 = scmp.ne.s32.totalorder %s280, %s294
      %p296 = scmp.eq.s32.totalorder %s39, 0
      %p297 = por %p295, %p296
      %s299 = sadd.s32 %s298, 1
      %p302 = scmp.eq.s32.totalorder %s33, 1
      %p303 = scmp.ne.s32.totalorder %s298, %s300
      %p304 = scmp.eq.s32.totalorder %s33, 0
      %p305 = por %p303, %p304
      %p306 = scmp.ne.s32.totalorder %s298, %s300
      %p307 = scmp.eq.s32.totalorder %s38, 1
      %p308 = por %p306, %p307
      %p309 = scmp.ne.s32.totalorder %s300, %s301
      %p310 = scmp.eq.s32.totalorder %s38, 0
      %p311 = por %p309, %p310
      %p312 = scmp.ne.s32.totalorder %s300, %s301
      %p313 = scmp.eq.s32.totalorder %s39, 1
      %p314 = por %p312, %p313
      %p316 = scmp.ne.s32.totalorder %s301, %s315
      %p317 = scmp.eq.s32.totalorder %s39, 0
      %p318 = por %p316, %p317
      %s320 = sadd.s32 %s319, 1
      %p323 = scmp.eq.s32.totalorder %s33, 1
      %p324 = scmp.ne.s32.totalorder %s319, %s321
      %p325 = scmp.eq.s32.totalorder %s33, 0
      %p326 = por %p324, %p325
      %p327 = scmp.ne.s32.totalorder %s319, %s321
      %p328 = scmp.eq.s32.totalorder %s38, 1
      %p329 = por %p327, %p328
      %p330 = scmp.ne.s32.totalorder %s321, %s322
      %p331 = scmp.eq.s32.totalorder %s38, 0
      %p332 = por %p330, %p331
      %p333 = scmp.ne.s32.totalorder %s321, %s322
      %p334 = scmp.eq.s32.totalorder %s39, 1
      %p335 = por %p333, %p334
      %p337 = scmp.ne.s32.totalorder %s322, %s336
      %p338 = scmp.eq.s32.totalorder %s39, 0
      %p339 = por %p337, %p338
      %s341 = sadd.s32 %s340, 1
      %p344 = scmp.eq.s32.totalorder %s33, 1
      %p345 = scmp.ne.s32.totalorder %s340, %s342
      %p346 = scmp.eq.s32.totalorder %s33, 0
      %p347 = por %p345, %p346
      %p348 = scmp.ne.s32.totalorder %s340, %s342
      %p349 = scmp.eq.s32.totalorder %s38, 1
      %p350 = por %p348, %p349
      %p351 = scmp.ne.s32.totalorder %s342, %s343
      %p352 = scmp.eq.s32.totalorder %s38, 0
      %p353 = por %p351, %p352
      %p354 = scmp.ne.s32.totalorder %s342, %s343
      %p355 = scmp.eq.s32.totalorder %s39, 1
      %p356 = por %p354, %p355
      %p358 = scmp.ne.s32.totalorder %s343, %s357
      %p359 = scmp.eq.s32.totalorder %s39, 0
      %p360 = por %p358, %p359
      %s361 = ssub.s32 %s33, %s40
      %p362 = scmp.eq.s32.totalorder %s361, 0
      %s364 = sadd.s32 %s363, 1
      %s365 = scalar_select %p362, %s363, %s364
      %p368 = pneg %p362
      %p369 = scmp.eq.s32.totalorder %s33, 1
      %p370 = por %p368, %p369
      %p371 = scmp.ne.s32.totalorder %s363, %s366
      %p372 = scmp.eq.s32.totalorder %s33, 0
      %p373 = por %p371, %p372
      %p374 = scmp.ne.s32.totalorder %s363, %s366
      %p375 = scmp.eq.s32.totalorder %s38, 1
      %p376 = por %p374, %p375
      %p377 = scmp.ne.s32.totalorder %s366, %s367
      %p378 = scmp.eq.s32.totalorder %s38, 0
      %p379 = por %p377, %p378
      %p380 = scmp.ne.s32.totalorder %s366, %s367
      %p381 = scmp.eq.s32.totalorder %s39, 1
      %p382 = por %p380, %p381
      %p384 = scmp.ne.s32.totalorder %s367, %s383
      %p385 = scmp.eq.s32.totalorder %s39, 0
      %p386 = por %p384, %p385
      %p387 = scmp.le.s32.totalorder 1, %s33
      %p388 = scmp.lt.s32.totalorder %s33, 3
      %p389 = pnand %p387, %p388
      %p390 = pneg %p389
      // Predicated region
      $region9: #{tpu_custom_call.1} parent=5 // pred_check
        _
      $region10: #{tpu_custom_call.1} parent=5 // pred_check_branch
        %392 = sbr.rel (%p389) target = $region12
      $region11: #{tpu_custom_call.1} parent=5 // pred_region
        %s393 = ssub.s32 %s33, 1
        // Predicated region
        $region13: #{tpu_custom_call.1} parent=11 // pred_check
          %p394 = pneg %p80
        $region14: #{tpu_custom_call.1} parent=11 // pred_check_branch
          %396 = sbr.rel (%p394) target = $region16
        $region15: #{tpu_custom_call.1} parent=11 // pred_region
          %s398 = ssub.s32 32, 32
          %399 = vsyncadd [#allocation6], %s398
          %s401 = sshll.u32 [#allocation5], 4
          %s402 = int_to_ptr.vmem [resolvable:$true] %s401
          %404 = dma.hbm_to_vmem [thread:$0]  %s1, 32, %s402, [#allocation6]
        $region16: #{tpu_custom_call.1} parent=11 // pred_fallthru
          _
        // Predicated region
        $region17: #{tpu_custom_call.1} parent=11 // pred_check
          %p405 = pneg %p101
        $region18: #{tpu_custom_call.1} parent=11 // pred_check_branch
          %407 = sbr.rel (%p405) target = $region20
        $region19: #{tpu_custom_call.1} parent=11 // pred_region
          %s409 = ssub.s32 32, 32
          %410 = vsyncadd [#allocation6], %s409
          %s412 = sshll.u32 [#allocation7], 4
          %s413 = int_to_ptr.vmem [resolvable:$true] %s412
          %415 = dma.hbm_to_vmem [thread:$0]  %s2, 32, %s413, [#allocation6]
        $region20: #{tpu_custom_call.1} parent=11 // pred_fallthru
          _
        // Predicated region
        $region21: #{tpu_custom_call.1} parent=11 // pred_check
          %p416 = pneg %p122
        $region22: #{tpu_custom_call.1} parent=11 // pred_check_branch
          %418 = sbr.rel (%p416) target = $region24
        $region23: #{tpu_custom_call.1} parent=11 // pred_region
          %s420 = ssub.s32 32, 32
          %421 = vsyncadd [#allocation9], %s420
          %s423 = sshll.u32 [#allocation8], 4
          %s424 = int_to_ptr.vmem [resolvable:$true] %s423
          %426 = dma.hbm_to_vmem [thread:$0]  %s3, 32, %s424, [#allocation9]
        $region24: #{tpu_custom_call.1} parent=11 // pred_fallthru
          _
        // Predicated region
        $region25: #{tpu_custom_call.1} parent=11 // pred_check
          %p427 = pneg %p143
        $region26: #{tpu_custom_call.1} parent=11 // pred_check_branch
          %429 = sbr.rel (%p427) target = $region28
        $region27: #{tpu_custom_call.1} parent=11 // pred_region
          %s431 = ssub.s32 32, 32
          %432 = vsyncadd [#allocation9], %s431
          %s434 = sshll.u32 [#allocation10], 4
          %s435 = int_to_ptr.vmem [resolvable:$true] %s434
          %437 = dma.hbm_to_vmem [thread:$0]  %s4, 32, %s435, [#allocation9]
        $region28: #{tpu_custom_call.1} parent=11 // pred_fallthru
          _
        // Predicated region
        $region29: #{tpu_custom_call.1} parent=11 // pred_check
          %p438 = pneg %p164
        $region30: #{tpu_custom_call.1} parent=11 // pred_check_branch
          %440 = sbr.rel (%p438) target = $region32
        $region31: #{tpu_custom_call.1} parent=11 // pred_region
          %s442 = ssub.s32 12288, 12288
          %443 = vsyncadd [#allocation12], %s442
          %s444 = sshll.u32 [#allocation11], 4
          %s445 = int_to_ptr.vmem [resolvable:$true] %s444
          %450 = dma.hbm_to_vmem [thread:$0]  %s5, 12288, %s445, [#allocation12], 384, 384, 24
        $region32: #{tpu_custom_call.1} parent=11 // pred_fallthru
          _
        // Predicated region
        $region33: #{tpu_custom_call.1} parent=11 // pred_check
          %p451 = pneg %p185
        $region34: #{tpu_custom_call.1} parent=11 // pred_check_branch
          %453 = sbr.rel (%p451) target = $region36
        $region35: #{tpu_custom_call.1} parent=11 // pred_region
          %s455 = ssub.s32 96, 96
          %456 = vsyncadd [#allocation12], %s455
          %s458 = sshll.u32 [#allocation13], 4
          %s459 = int_to_ptr.vmem [resolvable:$true] %s458
          %461 = dma.hbm_to_vmem [thread:$0]  %s6, 96, %s459, [#allocation12]
        $region36: #{tpu_custom_call.1} parent=11 // pred_fallthru
          _
        // Predicated region
        $region37: #{tpu_custom_call.1} parent=11 // pred_check
          %p462 = pneg %p206
        $region38: #{tpu_custom_call.1} parent=11 // pred_check_branch
          %464 = sbr.rel (%p462) target = $region40
        $region39: #{tpu_custom_call.1} parent=11 // pred_region
          %s466 = ssub.s32 4096, 4096
          %467 = vsyncadd [#allocation15], %s466
          %s468 = sshll.u32 [#allocation14], 4
          %s469 = int_to_ptr.vmem [resolvable:$true] %s468
          %474 = dma.hbm_to_vmem [thread:$0]  %s7, 4096, %s469, [#allocation15], 128, 128, 8
        $region40: #{tpu_custom_call.1} parent=11 // pred_fallthru
          _
        // Predicated region
        $region41: #{tpu_custom_call.1} parent=11 // pred_check
          %p475 = pneg %p227
        $region42: #{tpu_custom_call.1} parent=11 // pred_check_branch
          %477 = sbr.rel (%p475) target = $region44
        $region43: #{tpu_custom_call.1} parent=11 // pred_region
          %s479 = ssub.s32 32, 32
          %480 = vsyncadd [#allocation15], %s479
          %s482 = sshll.u32 [#allocation16], 4
          %s483 = int_to_ptr.vmem [resolvable:$true] %s482
          %485 = dma.hbm_to_vmem [thread:$0]  %s8, 32, %s483, [#allocation15]
        $region44: #{tpu_custom_call.1} parent=11 // pred_fallthru
          _
        // Predicated region
        $region45: #{tpu_custom_call.1} parent=11 // pred_check
          %p486 = pneg %p248
        $region46: #{tpu_custom_call.1} parent=11 // pred_check_branch
          %488 = sbr.rel (%p486) target = $region48
        $region47: #{tpu_custom_call.1} parent=11 // pred_region
          _
        $region48: #{tpu_custom_call.1} parent=11 // pred_fallthru
          _
        // Predicated region
        $region49: #{tpu_custom_call.1} parent=11 // pred_check
          %p489 = pneg %p269
        $region50: #{tpu_custom_call.1} parent=11 // pred_check_branch
          %491 = sbr.rel (%p489) target = $region52
        $region51: #{tpu_custom_call.1} parent=11 // pred_region
          %s493 = ssub.s32 256, 256
          %494 = vsyncadd [#allocation18], %s493
          %s495 = sshll.u32 [#allocation17], 4
          %s496 = int_to_ptr.vmem [resolvable:$true] %s495
          %501 = dma.hbm_to_vmem [thread:$0]  %s10, 256, %s496, [#allocation18], 128, 128, 8
        $region52: #{tpu_custom_call.1} parent=11 // pred_fallthru
          _
        // Predicated region
        $region53: #{tpu_custom_call.1} parent=11 // pred_check
          %p502 = pneg %p290
        $region54: #{tpu_custom_call.1} parent=11 // pred_check_branch
          %504 = sbr.rel (%p502) target = $region56
        $region55: #{tpu_custom_call.1} parent=11 // pred_region
          %s506 = ssub.s32 24576, 24576
          %507 = vsyncadd [#allocation18], %s506
          %s508 = sshll.u32 [#allocation19], 4
          %s509 = int_to_ptr.vmem [resolvable:$true] %s508
          %514 = dma.hbm_to_vmem [thread:$0]  %s11, 24576, %s509, [#allocation18], 768, 768, 48
        $region56: #{tpu_custom_call.1} parent=11 // pred_fallthru
          _
        // Predicated region
        $region57: #{tpu_custom_call.1} parent=11 // pred_check
          %p515 = pneg %p311
        $region58: #{tpu_custom_call.1} parent=11 // pred_check_branch
          %517 = sbr.rel (%p515) target = $region60
        $region59: #{tpu_custom_call.1} parent=11 // pred_region
          %s519 = ssub.s32 192, 192
          %520 = vsyncadd [#allocation21], %s519
          %s522 = sshll.u32 [#allocation20], 4
          %s523 = int_to_ptr.vmem [resolvable:$true] %s522
          %525 = dma.hbm_to_vmem [thread:$0]  %s12, 192, %s523, [#allocation21]
        $region60: #{tpu_custom_call.1} parent=11 // pred_fallthru
          _
        // Predicated region
        $region61: #{tpu_custom_call.1} parent=11 // pred_check
          %p526 = pneg %p332
        $region62: #{tpu_custom_call.1} parent=11 // pred_check_branch
          %528 = sbr.rel (%p526) target = $region64
        $region63: #{tpu_custom_call.1} parent=11 // pred_region
          %s530 = ssub.s32 12288, 12288
          %531 = vsyncadd [#allocation21], %s530
          %s532 = sshll.u32 [#allocation22], 4
          %s533 = int_to_ptr.vmem [resolvable:$true] %s532
          %538 = dma.hbm_to_vmem [thread:$0]  %s13, 12288, %s533, [#allocation21], 128, 128, 8
        $region64: #{tpu_custom_call.1} parent=11 // pred_fallthru
          _
        // Predicated region
        $region65: #{tpu_custom_call.1} parent=11 // pred_check
          %p539 = pneg %p353
        $region66: #{tpu_custom_call.1} parent=11 // pred_check_branch
          %541 = sbr.rel (%p539) target = $region68
        $region67: #{tpu_custom_call.1} parent=11 // pred_region
          _
        $region68: #{tpu_custom_call.1} parent=11 // pred_fallthru
          _
      $region12: #{tpu_custom_call.1} parent=5 // pred_fallthru
        _
      %p542 = scmp.lt.s32.totalorder %s33, 2
      // Predicated region
      $region69: #{tpu_custom_call.1} parent=5 // pred_check
        %p543 = pneg %p542
      $region70: #{tpu_custom_call.1} parent=5 // pred_check_branch
        %545 = sbr.rel (%p543) target = $region72
      $region71: #{tpu_custom_call.1} parent=5 // pred_region
        // Predicated region
        $region73: #{tpu_custom_call.1} parent=71 // pred_check
          %p546 = pneg %p53
        $region74: #{tpu_custom_call.1} parent=71 // pred_check_branch
          %548 = sbr.rel (%p546) target = $region76
        $region75: #{tpu_custom_call.1} parent=71 // pred_region
          %s549 = sand.u32 %s43, 1
          %s550 = scalar_lea.sflag [#allocation3], %s549
          %s551 = sand.u32 %s43, 1
          %s552 = smul.addr %s551, 16
          %s553 = scalar_lea.vmem [#allocation2], %s552
          %s554 = smul.u32 2, %s33
          %s556 = ssub.s32 256, 256
          %557 = vsyncadd %s550, %s556
          %s558 = smul.addr %s554, 2
          %s559 = smul.addr %s558, 64
          %s560 = scalar_lea.hbm %s0, %s559
          %s561 = sshll.u32 %s553, 4
          %s562 = int_to_ptr.vmem [resolvable:$true] %s561
          %567 = dma.hbm_to_vmem [thread:$0]  %s560, 256, %s562, %s550, 128, 128, 8
        $region76: #{tpu_custom_call.1} parent=71 // pred_fallthru
          _
      $region72: #{tpu_custom_call.1} parent=5 // pred_fallthru
        _
      %p568 = scmp.le.s32.totalorder 1, %s33
      %p569 = scmp.lt.s32.totalorder %s33, 3
      %p570 = pnand %p568, %p569
      %p571 = pneg %p570
      // Predicated region
      $region77: #{tpu_custom_call.1} parent=5 // pred_check
        _
      $region78: #{tpu_custom_call.1} parent=5 // pred_check_branch
        %573 = sbr.rel (%p570) target = $region80
      $region79: #{tpu_custom_call.1} parent=5 // pred_region
        %s574 = ssub.s32 %s33, 1
        %s575 = sand.u32 %s46, 1
        %s576 = scalar_lea.sflag [#allocation3], %s575
        %s577 = sand.u32 %s46, 1
        %s578 = smul.addr %s577, 16
        %s579 = scalar_lea.vmem [#allocation2], %s578
        // Predicated region
        $region81: #{tpu_custom_call.1} parent=79 // pred_check
          %p580 = pneg %p59
        $region82: #{tpu_custom_call.1} parent=79 // pred_check_branch
          %582 = sbr.rel (%p580) target = $region84
        $region83: #{tpu_custom_call.1} parent=79 // pred_region
          %583 = dma.done %s576, 256
        $region84: #{tpu_custom_call.1} parent=79 // pred_fallthru
          _
        // Predicated region
        $region85: #{tpu_custom_call.1} parent=79 // pred_check
          %p584 = pneg %p80
        $region86: #{tpu_custom_call.1} parent=79 // pred_check_branch
          %586 = sbr.rel (%p584) target = $region88
        $region87: #{tpu_custom_call.1} parent=79 // pred_region
          %587 = dma.done [#allocation6], 32
        $region88: #{tpu_custom_call.1} parent=79 // pred_fallthru
          _
        // Predicated region
        $region89: #{tpu_custom_call.1} parent=79 // pred_check
          %p588 = pneg %p101
        $region90: #{tpu_custom_call.1} parent=79 // pred_check_branch
          %590 = sbr.rel (%p588) target = $region92
        $region91: #{tpu_custom_call.1} parent=79 // pred_region
          %591 = dma.done [#allocation6], 32
        $region92: #{tpu_custom_call.1} parent=79 // pred_fallthru
          _
        // Predicated region
        $region93: #{tpu_custom_call.1} parent=79 // pred_check
          %p592 = pneg %p122
        $region94: #{tpu_custom_call.1} parent=79 // pred_check_branch
          %594 = sbr.rel (%p592) target = $region96
        $region95: #{tpu_custom_call.1} parent=79 // pred_region
          %595 = dma.done [#allocation9], 32
        $region96: #{tpu_custom_call.1} parent=79 // pred_fallthru
          _
        // Predicated region
        $region97: #{tpu_custom_call.1} parent=79 // pred_check
          %p596 = pneg %p143
        $region98: #{tpu_custom_call.1} parent=79 // pred_check_branch
          %598 = sbr.rel (%p596) target = $region100
        $region99: #{tpu_custom_call.1} parent=79 // pred_region
          %599 = dma.done [#allocation9], 32
        $region100: #{tpu_custom_call.1} parent=79 // pred_fallthru
          _
        // Predicated region
        $region101: #{tpu_custom_call.1} parent=79 // pred_check
          %p600 = pneg %p164
        $region102: #{tpu_custom_call.1} parent=79 // pred_check_branch
          %602 = sbr.rel (%p600) target = $region104
        $region103: #{tpu_custom_call.1} parent=79 // pred_region
          %603 = dma.done [#allocation12], 12288
        $region104: #{tpu_custom_call.1} parent=79 // pred_fallthru
          _
        // Predicated region
        $region105: #{tpu_custom_call.1} parent=79 // pred_check
          %p604 = pneg %p185
        $region106: #{tpu_custom_call.1} parent=79 // pred_check_branch
          %606 = sbr.rel (%p604) target = $region108
        $region107: #{tpu_custom_call.1} parent=79 // pred_region
          %607 = dma.done [#allocation12], 96
        $region108: #{tpu_custom_call.1} parent=79 // pred_fallthru
          _
        // Predicated region
        $region109: #{tpu_custom_call.1} parent=79 // pred_check
          %p608 = pneg %p206
        $region110: #{tpu_custom_call.1} parent=79 // pred_check_branch
          %610 = sbr.rel (%p608) target = $region112
        $region111: #{tpu_custom_call.1} parent=79 // pred_region
          %611 = dma.done [#allocation15], 4096
        $region112: #{tpu_custom_call.1} parent=79 // pred_fallthru
          _
        // Predicated region
        $region113: #{tpu_custom_call.1} parent=79 // pred_check
          %p612 = pneg %p227
        $region114: #{tpu_custom_call.1} parent=79 // pred_check_branch
          %614 = sbr.rel (%p612) target = $region116
        $region115: #{tpu_custom_call.1} parent=79 // pred_region
          %615 = dma.done [#allocation15], 32
        $region116: #{tpu_custom_call.1} parent=79 // pred_fallthru
          _
        // Predicated region
        $region117: #{tpu_custom_call.1} parent=79 // pred_check
          %p616 = pneg %p269
        $region118: #{tpu_custom_call.1} parent=79 // pred_check_branch
          %618 = sbr.rel (%p616) target = $region120
        $region119: #{tpu_custom_call.1} parent=79 // pred_region
          %619 = dma.done [#allocation18], 256
        $region120: #{tpu_custom_call.1} parent=79 // pred_fallthru
          _
        // Predicated region
        $region121: #{tpu_custom_call.1} parent=79 // pred_check
          %p620 = pneg %p290
        $region122: #{tpu_custom_call.1} parent=79 // pred_check_branch
          %622 = sbr.rel (%p620) target = $region124
        $region123: #{tpu_custom_call.1} parent=79 // pred_region
          %623 = dma.done [#allocation18], 24576
        $region124: #{tpu_custom_call.1} parent=79 // pred_fallthru
          _
        // Predicated region
        $region125: #{tpu_custom_call.1} parent=79 // pred_check
          %p624 = pneg %p311
        $region126: #{tpu_custom_call.1} parent=79 // pred_check_branch
          %626 = sbr.rel (%p624) target = $region128
        $region127: #{tpu_custom_call.1} parent=79 // pred_region
          %627 = dma.done [#allocation21], 192
        $region128: #{tpu_custom_call.1} parent=79 // pred_fallthru
          _
        // Predicated region
        $region129: #{tpu_custom_call.1} parent=79 // pred_check
          %p628 = pneg %p332
        $region130: #{tpu_custom_call.1} parent=79 // pred_check_branch
          %630 = sbr.rel (%p628) target = $region132
        $region131: #{tpu_custom_call.1} parent=79 // pred_region
          %631 = dma.done [#allocation21], 12288
        $region132: #{tpu_custom_call.1} parent=79 // pred_fallthru
          _
        %s632 = sand.u32 %s46, 1
        %s633 = scalar_lea.sflag [#allocation3], %s632
        %s634 = sand.u32 %s46, 1
        %s635 = smul.addr %s634, 16
        %s636 = scalar_lea.vmem [#allocation2], %s635
        %p637 = pneg %p59
        %p638 = pneg %p56
        %p639 = pneg %p80
        %p640 = pneg %p77
        %p641 = pneg %p101
        %p642 = pneg %p98
        %p643 = pneg %p122
        %p644 = pneg %p119
        %p645 = pneg %p143
        %p646 = pneg %p140
        %p647 = pneg %p164
        %p648 = pneg %p161
        %p649 = pneg %p185
        %p650 = pneg %p182
        %p651 = pneg %p206
        %p652 = pneg %p203
        %p653 = pneg %p227
        %p654 = pneg %p224
        %p655 = pneg %p248
        %p656 = pneg %p245
        %p657 = pneg %p269
        %p658 = pneg %p266
        %p659 = pneg %p290
        %p660 = pneg %p287
        %p661 = pneg %p311
        %p662 = pneg %p308
        %p663 = pneg %p332
        %p664 = pneg %p329
        %p665 = pneg %p353
        %p666 = pneg %p350
        %p667 = pneg %p379
        %p668 = pneg %p376
        %s669 = sand.u32 %s366, 1
        %s670 = scalar_lea.sflag [#allocation4], %s669
        %s671 = sand.u32 %s366, 1
        %s672 = smul.addr %s671, 16
        %s673 = scalar_lea.vmem [#allocation23], %s672
        %s674 = smul.u32 2, %s38
        %s675 = smul.u32 2, %s38
        %v677 = vld [vmem:[%s579] sm:$0xff]
        %v678 = vld [vmem:[%s579 + $0x8] sm:$0xff]
        %v679 = vunpack.c.l.bf16 %v677
        %v680 = vunpack.c.h.bf16 %v677
        %v681 = vunpack.c.l.bf16 %v678
        %v682 = vunpack.c.h.bf16 %v678
        %v683 = vmul.f32 %v679, %v679
        %v684 = vmul.f32 %v680, %v680
        %v685 = vmul.f32 %v681, %v681
        %v686 = vmul.f32 %v682, %v682
        %v687 = vadd.f32 %v683, %v684
        %688 = vadd.xlane.f32.xlu0 %v687
        %v689 = vpop.xlane.xlu0 %688
        %v690 = vadd.f32 %v685, %v686
        %691 = vadd.xlane.f32.xlu0 %v690
        %v692 = vpop.xlane.xlu0 %691
        %v693 = vrcp.pop 256.0
        %v694 = vmul.f32 %v689, %v693
        %v695 = vmul.f32 %v692, %v693
        %v696 = vadd.f32 %v694, 1e-05
        %v697 = vadd.f32 %v695, 1e-05
        %v698 = vrsqrt.pop %v696
        %v699 = vrsqrt.pop %v697
        %v700 = vmul.f32 %v679, %v698
        %v701 = vmul.f32 %v680, %v698
        %v702 = vmul.f32 %v681, %v699
        %v703 = vmul.f32 %v682, %v699
        %v704 = vld [vmem:[#allocation5] sm:$0x3]
        %v705 = vunpack.c.l.bf16 %v704
        %v707 = vlaneseq
        %v708 = vshrl.u32 %v707, 7
        %v709 = vsub.s32 0, %v708
        %v710 = vrot.slane %v705, %v709
        %v711 = vlaneseq
        %v712 = vshrl.u32 %v711, 7
        %v713 = vsub.s32 2, %v712
        %v714 = vrot.slane %v705, %v713
        %v717 = vlaneseq
        %v718 = vshrl.u32 %v717, 7
        %v719 = vsub.s32 0, %v718
        %v720 = vrot.slane %v710, %v719
        %v721 = vlaneseq
        %v722 = vshrl.u32 %v721, 7
        %v723 = vsub.s32 0, %v722
        %v724 = vrot.slane %v714, %v723
        %v725 = vmul.f32 %v700, %v720
        %v726 = vmul.f32 %v701, %v724
        %v727 = vmul.f32 %v702, %v720
        %v728 = vmul.f32 %v703, %v724
        %v729 = vld [vmem:[#allocation7] sm:$0x3]
        %v730 = vunpack.c.l.bf16 %v729
        %v732 = vlaneseq
        %v733 = vshrl.u32 %v732, 7
        %v734 = vsub.s32 0, %v733
        %v735 = vrot.slane %v730, %v734
        %v736 = vlaneseq
        %v737 = vshrl.u32 %v736, 7
        %v738 = vsub.s32 2, %v737
        %v739 = vrot.slane %v730, %v738
        %v742 = vlaneseq
        %v743 = vshrl.u32 %v742, 7
        %v744 = vsub.s32 0, %v743
        %v745 = vrot.slane %v735, %v744
        %v746 = vlaneseq
        %v747 = vshrl.u32 %v746, 7
        %v748 = vsub.s32 0, %v747
        %v749 = vrot.slane %v739, %v748
        %v750 = vadd.f32 %v725, %v745
        %v751 = vadd.f32 %v726, %v749
        %v752 = vadd.f32 %v727, %v745
        %v753 = vadd.f32 %v728, %v749
        %v754 = vpack.c.bf16 %v752, %v750
        %v755 = vpack.c.bf16 %v753, %v751
        %v756 = vld [vmem:[#allocation11] sm:$0xff]
        %v757 = vld [vmem:[#allocation11 + $0x8] sm:$0xff]
        %v758 = vld [vmem:[#allocation11 + $0x10] sm:$0xff]
        %v759 = vld [vmem:[#allocation11 + $0x18] sm:$0xff]
        %v760 = vld [vmem:[#allocation11 + $0x20] sm:$0xff]
        %v761 = vld [vmem:[#allocation11 + $0x28] sm:$0xff]
        %v762 = vld [vmem:[#allocation11 + $0x30] sm:$0xff]
        %v763 = vld [vmem:[#allocation11 + $0x38] sm:$0xff]
        %v764 = vld [vmem:[#allocation11 + $0x40] sm:$0xff]
        %v765 = vld [vmem:[#allocation11 + $0x48] sm:$0xff]
        %v766 = vld [vmem:[#allocation11 + $0x50] sm:$0xff]
        %v767 = vld [vmem:[#allocation11 + $0x58] sm:$0xff]
        %v768 = vld [vmem:[#allocation11 + $0x60] sm:$0xff]
        %v769 = vld [vmem:[#allocation11 + $0x68] sm:$0xff]
        %v770 = vld [vmem:[#allocation11 + $0x70] sm:$0xff]
        %v771 = vld [vmem:[#allocation11 + $0x78] sm:$0xff]
        %v772 = vld [vmem:[#allocation11 + $0x80] sm:$0xff]
        %v773 = vld [vmem:[#allocation11 + $0x88] sm:$0xff]
        %v774 = vld [vmem:[#allocation11 + $0x90] sm:$0xff]
        %v775 = vld [vmem:[#allocation11 + $0x98] sm:$0xff]
        %v776 = vld [vmem:[#allocation11 + $0xa0] sm:$0xff]
        %v777 = vld [vmem:[#allocation11 + $0xa8] sm:$0xff]
        %v778 = vld [vmem:[#allocation11 + $0xb0] sm:$0xff]
        %v779 = vld [vmem:[#allocation11 + $0xb8] sm:$0xff]
        %v780 = vld [vmem:[#allocation11 + $0xc0] sm:$0xff]
        %v781 = vld [vmem:[#allocation11 + $0xc8] sm:$0xff]
        %v782 = vld [vmem:[#allocation11 + $0xd0] sm:$0xff]
        %v783 = vld [vmem:[#allocation11 + $0xd8] sm:$0xff]
        %v784 = vld [vmem:[#allocation11 + $0xe0] sm:$0xff]
        %v785 = vld [vmem:[#allocation11 + $0xe8] sm:$0xff]
        %v786 = vld [vmem:[#allocation11 + $0xf0] sm:$0xff]
        %v787 = vld [vmem:[#allocation11 + $0xf8] sm:$0xff]
        %v788 = vld [vmem:[#allocation11 + $0x100] sm:$0xff]
        %v789 = vld [vmem:[#allocation11 + $0x108] sm:$0xff]
        %v790 = vld [vmem:[#allocation11 + $0x110] sm:$0xff]
        %v791 = vld [vmem:[#allocation11 + $0x118] sm:$0xff]
        %v792 = vld [vmem:[#allocation11 + $0x120] sm:$0xff]
        %v793 = vld [vmem:[#allocation11 + $0x128] sm:$0xff]
        %v794 = vld [vmem:[#allocation11 + $0x130] sm:$0xff]
        %v795 = vld [vmem:[#allocation11 + $0x138] sm:$0xff]
        %v796 = vld [vmem:[#allocation11 + $0x140] sm:$0xff]
        %v797 = vld [vmem:[#allocation11 + $0x148] sm:$0xff]
        %v798 = vld [vmem:[#allocation11 + $0x150] sm:$0xff]
        %v799 = vld [vmem:[#allocation11 + $0x158] sm:$0xff]
        %v800 = vld [vmem:[#allocation11 + $0x160] sm:$0xff]
        %v801 = vld [vmem:[#allocation11 + $0x168] sm:$0xff]
        %v802 = vld [vmem:[#allocation11 + $0x170] sm:$0xff]
        %v803 = vld [vmem:[#allocation11 + $0x178] sm:$0xff]
        %v804 = vld [vmem:[#allocation11 + $0x180] sm:$0xff]
        %v805 = vld [vmem:[#allocation11 + $0x188] sm:$0xff]
        %v806 = vld [vmem:[#allocation11 + $0x190] sm:$0xff]
        %v807 = vld [vmem:[#allocation11 + $0x198] sm:$0xff]
        %v808 = vld [vmem:[#allocation11 + $0x1a0] sm:$0xff]
        %v809 = vld [vmem:[#allocation11 + $0x1a8] sm:$0xff]
        %v810 = vld [vmem:[#allocation11 + $0x1b0] sm:$0xff]
        %v811 = vld [vmem:[#allocation11 + $0x1b8] sm:$0xff]
        %v812 = vld [vmem:[#allocation11 + $0x1c0] sm:$0xff]
        %v813 = vld [vmem:[#allocation11 + $0x1c8] sm:$0xff]
        %v814 = vld [vmem:[#allocation11 + $0x1d0] sm:$0xff]
        %v815 = vld [vmem:[#allocation11 + $0x1d8] sm:$0xff]
        %v816 = vld [vmem:[#allocation11 + $0x1e0] sm:$0xff]
        %v817 = vld [vmem:[#allocation11 + $0x1e8] sm:$0xff]
        %v818 = vld [vmem:[#allocation11 + $0x1f0] sm:$0xff]
        %v819 = vld [vmem:[#allocation11 + $0x1f8] sm:$0xff]
        %v820 = vld [vmem:[#allocation11 + $0x200] sm:$0xff]
        %v821 = vld [vmem:[#allocation11 + $0x208] sm:$0xff]
        %v822 = vld [vmem:[#allocation11 + $0x210] sm:$0xff]
        %v823 = vld [vmem:[#allocation11 + $0x218] sm:$0xff]
        %v824 = vld [vmem:[#allocation11 + $0x220] sm:$0xff]
        %v825 = vld [vmem:[#allocation11 + $0x228] sm:$0xff]
        %v826 = vld [vmem:[#allocation11 + $0x230] sm:$0xff]
        %v827 = vld [vmem:[#allocation11 + $0x238] sm:$0xff]
        %v828 = vld [vmem:[#allocation11 + $0x240] sm:$0xff]
        %v829 = vld [vmem:[#allocation11 + $0x248] sm:$0xff]
        %v830 = vld [vmem:[#allocation11 + $0x250] sm:$0xff]
        %v831 = vld [vmem:[#allocation11 + $0x258] sm:$0xff]
        %v832 = vld [vmem:[#allocation11 + $0x260] sm:$0xff]
        %v833 = vld [vmem:[#allocation11 + $0x268] sm:$0xff]
        %v834 = vld [vmem:[#allocation11 + $0x270] sm:$0xff]
        %v835 = vld [vmem:[#allocation11 + $0x278] sm:$0xff]
        %v836 = vld [vmem:[#allocation11 + $0x280] sm:$0xff]
        %v837 = vld [vmem:[#allocation11 + $0x288] sm:$0xff]
        %v838 = vld [vmem:[#allocation11 + $0x290] sm:$0xff]
        %v839 = vld [vmem:[#allocation11 + $0x298] sm:$0xff]
        %v840 = vld [vmem:[#allocation11 + $0x2a0] sm:$0xff]
        %v841 = vld [vmem:[#allocation11 + $0x2a8] sm:$0xff]
        %v842 = vld [vmem:[#allocation11 + $0x2b0] sm:$0xff]
        %v843 = vld [vmem:[#allocation11 + $0x2b8] sm:$0xff]
        %v844 = vld [vmem:[#allocation11 + $0x2c0] sm:$0xff]
        %v845 = vld [vmem:[#allocation11 + $0x2c8] sm:$0xff]
        %v846 = vld [vmem:[#allocation11 + $0x2d0] sm:$0xff]
        %v847 = vld [vmem:[#allocation11 + $0x2d8] sm:$0xff]
        %v848 = vld [vmem:[#allocation11 + $0x2e0] sm:$0xff]
        %v849 = vld [vmem:[#allocation11 + $0x2e8] sm:$0xff]
        %v850 = vld [vmem:[#allocation11 + $0x2f0] sm:$0xff]
        %v851 = vld [vmem:[#allocation11 + $0x2f8] sm:$0xff]
        %v852 = vld [vmem:[#allocation13] sm:$0x3f]
        %v853 = vunpack.c.l.bf16 %v852
        %v854 = vunpack.c.h.bf16 %v852
        %v857 = vlaneseq
        %v858 = vshrl.u32 %v857, 7
        %v859 = vsub.s32 0, %v858
        %v860 = vrot.slane %v853, %v859
        %v861 = vlaneseq
        %v862 = vshrl.u32 %v861, 7
        %v863 = vsub.s32 2, %v862
        %v864 = vrot.slane %v853, %v863
        %v865 = vlaneseq
        %v866 = vshrl.u32 %v865, 7
        %v867 = vsub.s32 4, %v866
        %v868 = vrot.slane %v853, %v867
        %v869 = vlaneseq
        %v870 = vshrl.u32 %v869, 7
        %v871 = vsub.s32 6, %v870
        %v872 = vrot.slane %v853, %v871
        %v873 = vlaneseq
        %v874 = vshrl.u32 %v873, 7
        %v875 = vsub.s32 0, %v874
        %v876 = vrot.slane %v854, %v875
        %v877 = vlaneseq
        %v878 = vshrl.u32 %v877, 7
        %v879 = vsub.s32 2, %v878
        %v880 = vrot.slane %v854, %v879
        %v887 = vlaneseq
        %v888 = vshrl.u32 %v887, 7
        %v889 = vsub.s32 0, %v888
        %v890 = vrot.slane %v860, %v889
        %v891 = vlaneseq
        %v892 = vshrl.u32 %v891, 7
        %v893 = vsub.s32 0, %v892
        %v894 = vrot.slane %v864, %v893
        %v895 = vlaneseq
        %v896 = vshrl.u32 %v895, 7
        %v897 = vsub.s32 0, %v896
        %v898 = vrot.slane %v868, %v897
        %v899 = vlaneseq
        %v900 = vshrl.u32 %v899, 7
        %v901 = vsub.s32 0, %v900
        %v902 = vrot.slane %v872, %v901
        %v903 = vlaneseq
        %v904 = vshrl.u32 %v903, 7
        %v905 = vsub.s32 0, %v904
        %v906 = vrot.slane %v876, %v905
        %v907 = vlaneseq
        %v908 = vshrl.u32 %v907, 7
        %v909 = vsub.s32 0, %v908
        %v910 = vrot.slane %v880, %v909
        %v1007 = vunpack.c.l.b16 %v756
        %v1008 = vunpack.c.h.b16 %v756
        %v1009 = vunpack.c.l.b16 %v757
        %v1010 = vunpack.c.h.b16 %v757
        %v1011 = vunpack.c.l.b16 %v758
        %v1012 = vunpack.c.h.b16 %v758
        %v1013 = vunpack.c.l.b16 %v759
        %v1014 = vunpack.c.h.b16 %v759
        %v1015 = vunpack.c.l.b16 %v760
        %v1016 = vunpack.c.h.b16 %v760
        %v1017 = vunpack.c.l.b16 %v761
        %v1018 = vunpack.c.h.b16 %v761
        %v1019 = vunpack.c.l.b16 %v762
        %v1020 = vunpack.c.h.b16 %v762
        %v1021 = vunpack.c.l.b16 %v763
        %v1022 = vunpack.c.h.b16 %v763
        %v1023 = vunpack.c.l.b16 %v764
        %v1024 = vunpack.c.h.b16 %v764
        %v1025 = vunpack.c.l.b16 %v765
        %v1026 = vunpack.c.h.b16 %v765
        %v1027 = vunpack.c.l.b16 %v766
        %v1028 = vunpack.c.h.b16 %v766
        %v1029 = vunpack.c.l.b16 %v767
        %v1030 = vunpack.c.h.b16 %v767
        %v1031 = vunpack.c.l.b16 %v768
        %v1032 = vunpack.c.h.b16 %v768
        %v1033 = vunpack.c.l.b16 %v769
        %v1034 = vunpack.c.h.b16 %v769
        %v1035 = vunpack.c.l.b16 %v770
        %v1036 = vunpack.c.h.b16 %v770
        %v1037 = vunpack.c.l.b16 %v771
        %v1038 = vunpack.c.h.b16 %v771
        %v1039 = vunpack.c.l.b16 %v772
        %v1040 = vunpack.c.h.b16 %v772
        %v1041 = vunpack.c.l.b16 %v773
        %v1042 = vunpack.c.h.b16 %v773
        %v1043 = vunpack.c.l.b16 %v774
        %v1044 = vunpack.c.h.b16 %v774
        %v1045 = vunpack.c.l.b16 %v775
        %v1046 = vunpack.c.h.b16 %v775
        %v1047 = vunpack.c.l.b16 %v776
        %v1048 = vunpack.c.h.b16 %v776
        %v1049 = vunpack.c.l.b16 %v777
        %v1050 = vunpack.c.h.b16 %v777
        %v1051 = vunpack.c.l.b16 %v778
        %v1052 = vunpack.c.h.b16 %v778
        %v1053 = vunpack.c.l.b16 %v779
        %v1054 = vunpack.c.h.b16 %v779
        %v1055 = vunpack.c.l.b16 %v780
        %v1056 = vunpack.c.h.b16 %v780
        %v1057 = vunpack.c.l.b16 %v781
        %v1058 = vunpack.c.h.b16 %v781
        %v1059 = vunpack.c.l.b16 %v782
        %v1060 = vunpack.c.h.b16 %v782
        %v1061 = vunpack.c.l.b16 %v783
        %v1062 = vunpack.c.h.b16 %v783
        %v1063 = vunpack.c.l.b16 %v784
        %v1064 = vunpack.c.h.b16 %v784
        %v1065 = vunpack.c.l.b16 %v785
        %v1066 = vunpack.c.h.b16 %v785
        %v1067 = vunpack.c.l.b16 %v786
        %v1068 = vunpack.c.h.b16 %v786
        %v1069 = vunpack.c.l.b16 %v787
        %v1070 = vunpack.c.h.b16 %v787
        %v1071 = vunpack.c.l.b16 %v788
        %v1072 = vunpack.c.h.b16 %v788
        %v1073 = vunpack.c.l.b16 %v789
        %v1074 = vunpack.c.h.b16 %v789
        %v1075 = vunpack.c.l.b16 %v790
        %v1076 = vunpack.c.h.b16 %v790
        %v1077 = vunpack.c.l.b16 %v791
        %v1078 = vunpack.c.h.b16 %v791
        %v1079 = vunpack.c.l.b16 %v792
        %v1080 = vunpack.c.h.b16 %v792
        %v1081 = vunpack.c.l.b16 %v793
        %v1082 = vunpack.c.h.b16 %v793
        %v1083 = vunpack.c.l.b16 %v794
        %v1084 = vunpack.c.h.b16 %v794
        %v1085 = vunpack.c.l.b16 %v795
        %v1086 = vunpack.c.h.b16 %v795
        %v1087 = vunpack.c.l.b16 %v796
        %v1088 = vunpack.c.h.b16 %v796
        %v1089 = vunpack.c.l.b16 %v797
        %v1090 = vunpack.c.h.b16 %v797
        %v1091 = vunpack.c.l.b16 %v798
        %v1092 = vunpack.c.h.b16 %v798
        %v1093 = vunpack.c.l.b16 %v799
        %v1094 = vunpack.c.h.b16 %v799
        %v1095 = vunpack.c.l.b16 %v800
        %v1096 = vunpack.c.h.b16 %v800
        %v1097 = vunpack.c.l.b16 %v801
        %v1098 = vunpack.c.h.b16 %v801
        %v1099 = vunpack.c.l.b16 %v802
        %v1100 = vunpack.c.h.b16 %v802
        %v1101 = vunpack.c.l.b16 %v803
        %v1102 = vunpack.c.h.b16 %v803
        %v1103 = vunpack.c.l.b16 %v804
        %v1104 = vunpack.c.h.b16 %v804
        %v1105 = vunpack.c.l.b16 %v805
        %v1106 = vunpack.c.h.b16 %v805
        %v1107 = vunpack.c.l.b16 %v806
        %v1108 = vunpack.c.h.b16 %v806
        %v1109 = vunpack.c.l.b16 %v807
        %v1110 = vunpack.c.h.b16 %v807
        %v1111 = vunpack.c.l.b16 %v808
        %v1112 = vunpack.c.h.b16 %v808
        %v1113 = vunpack.c.l.b16 %v809
        %v1114 = vunpack.c.h.b16 %v809
        %v1115 = vunpack.c.l.b16 %v810
        %v1116 = vunpack.c.h.b16 %v810
        %v1117 = vunpack.c.l.b16 %v811
        %v1118 = vunpack.c.h.b16 %v811
        %v1119 = vunpack.c.l.b16 %v812
        %v1120 = vunpack.c.h.b16 %v812
        %v1121 = vunpack.c.l.b16 %v813
        %v1122 = vunpack.c.h.b16 %v813
        %v1123 = vunpack.c.l.b16 %v814
        %v1124 = vunpack.c.h.b16 %v814
        %v1125 = vunpack.c.l.b16 %v815
        %v1126 = vunpack.c.h.b16 %v815
        %v1127 = vunpack.c.l.b16 %v816
        %v1128 = vunpack.c.h.b16 %v816
        %v1129 = vunpack.c.l.b16 %v817
        %v1130 = vunpack.c.h.b16 %v817
        %v1131 = vunpack.c.l.b16 %v818
        %v1132 = vunpack.c.h.b16 %v818
        %v1133 = vunpack.c.l.b16 %v819
        %v1134 = vunpack.c.h.b16 %v819
        %v1135 = vunpack.c.l.b16 %v820
        %v1136 = vunpack.c.h.b16 %v820
        %v1137 = vunpack.c.l.b16 %v821
        %v1138 = vunpack.c.h.b16 %v821
        %v1139 = vunpack.c.l.b16 %v822
        %v1140 = vunpack.c.h.b16 %v822
        %v1141 = vunpack.c.l.b16 %v823
        %v1142 = vunpack.c.h.b16 %v823
        %v1143 = vunpack.c.l.b16 %v824
        %v1144 = vunpack.c.h.b16 %v824
        %v1145 = vunpack.c.l.b16 %v825
        %v1146 = vunpack.c.h.b16 %v825
        %v1147 = vunpack.c.l.b16 %v826
        %v1148 = vunpack.c.h.b16 %v826
        %v1149 = vunpack.c.l.b16 %v827
        %v1150 = vunpack.c.h.b16 %v827
        %v1151 = vunpack.c.l.b16 %v828
        %v1152 = vunpack.c.h.b16 %v828
        %v1153 = vunpack.c.l.b16 %v829
        %v1154 = vunpack.c.h.b16 %v829
        %v1155 = vunpack.c.l.b16 %v830
        %v1156 = vunpack.c.h.b16 %v830
        %v1157 = vunpack.c.l.b16 %v831
        %v1158 = vunpack.c.h.b16 %v831
        %v1159 = vunpack.c.l.b16 %v832
        %v1160 = vunpack.c.h.b16 %v832
        %v1161 = vunpack.c.l.b16 %v833
        %v1162 = vunpack.c.h.b16 %v833
        %v1163 = vunpack.c.l.b16 %v834
        %v1164 = vunpack.c.h.b16 %v834
        %v1165 = vunpack.c.l.b16 %v835
        %v1166 = vunpack.c.h.b16 %v835
        %v1167 = vunpack.c.l.b16 %v836
        %v1168 = vunpack.c.h.b16 %v836
        %v1169 = vunpack.c.l.b16 %v837
        %v1170 = vunpack.c.h.b16 %v837
        %v1171 = vunpack.c.l.b16 %v838
        %v1172 = vunpack.c.h.b16 %v838
        %v1173 = vunpack.c.l.b16 %v839
        %v1174 = vunpack.c.h.b16 %v839
        %v1175 = vunpack.c.l.b16 %v840
        %v1176 = vunpack.c.h.b16 %v840
        %v1177 = vunpack.c.l.b16 %v841
        %v1178 = vunpack.c.h.b16 %v841
        %v1179 = vunpack.c.l.b16 %v842
        %v1180 = vunpack.c.h.b16 %v842
        %v1181 = vunpack.c.l.b16 %v843
        %v1182 = vunpack.c.h.b16 %v843
        %v1183 = vunpack.c.l.b16 %v844
        %v1184 = vunpack.c.h.b16 %v844
        %v1185 = vunpack.c.l.b16 %v845
        %v1186 = vunpack.c.h.b16 %v845
        %v1187 = vunpack.c.l.b16 %v846
        %v1188 = vunpack.c.h.b16 %v846
        %v1189 = vunpack.c.l.b16 %v847
        %v1190 = vunpack.c.h.b16 %v847
        %v1191 = vunpack.c.l.b16 %v848
        %v1192 = vunpack.c.h.b16 %v848
        %v1193 = vunpack.c.l.b16 %v849
        %v1194 = vunpack.c.h.b16 %v849
        %v1195 = vunpack.c.l.b16 %v850
        %v1196 = vunpack.c.h.b16 %v850
        %v1197 = vunpack.c.l.b16 %v851
        %v1198 = vunpack.c.h.b16 %v851
        %v1199 = vpack.c.b16 %v1013, %v1007
        %v1200 = vpack.c.b16 %v1014, %v1008
        %v1201 = vpack.c.b16 %v1015, %v1009
        %v1202 = vpack.c.b16 %v1016, %v1010
        %v1203 = vpack.c.b16 %v1017, %v1011
        %v1204 = vpack.c.b16 %v1018, %v1012
        %v1205 = vpack.c.b16 %v1025, %v1019
        %v1206 = vpack.c.b16 %v1026, %v1020
        %v1207 = vpack.c.b16 %v1027, %v1021
        %v1208 = vpack.c.b16 %v1028, %v1022
        %v1209 = vpack.c.b16 %v1029, %v1023
        %v1210 = vpack.c.b16 %v1030, %v1024
        %v1211 = vpack.c.b16 %v1037, %v1031
        %v1212 = vpack.c.b16 %v1038, %v1032
        %v1213 = vpack.c.b16 %v1039, %v1033
        %v1214 = vpack.c.b16 %v1040, %v1034
        %v1215 = vpack.c.b16 %v1041, %v1035
        %v1216 = vpack.c.b16 %v1042, %v1036
        %v1217 = vpack.c.b16 %v1049, %v1043
        %v1218 = vpack.c.b16 %v1050, %v1044
        %v1219 = vpack.c.b16 %v1051, %v1045
        %v1220 = vpack.c.b16 %v1052, %v1046
        %v1221 = vpack.c.b16 %v1053, %v1047
        %v1222 = vpack.c.b16 %v1054, %v1048
        %v1223 = vpack.c.b16 %v1061, %v1055
        %v1224 = vpack.c.b16 %v1062, %v1056
        %v1225 = vpack.c.b16 %v1063, %v1057
        %v1226 = vpack.c.b16 %v1064, %v1058
        %v1227 = vpack.c.b16 %v1065, %v1059
        %v1228 = vpack.c.b16 %v1066, %v1060
        %v1229 = vpack.c.b16 %v1073, %v1067
        %v1230 = vpack.c.b16 %v1074, %v1068
        %v1231 = vpack.c.b16 %v1075, %v1069
        %v1232 = vpack.c.b16 %v1076, %v1070
        %v1233 = vpack.c.b16 %v1077, %v1071
        %v1234 = vpack.c.b16 %v1078, %v1072
        %v1235 = vpack.c.b16 %v1085, %v1079
        %v1236 = vpack.c.b16 %v1086, %v1080
        %v1237 = vpack.c.b16 %v1087, %v1081
        %v1238 = vpack.c.b16 %v1088, %v1082
        %v1239 = vpack.c.b16 %v1089, %v1083
        %v1240 = vpack.c.b16 %v1090, %v1084
        %v1241 = vpack.c.b16 %v1097, %v1091
        %v1242 = vpack.c.b16 %v1098, %v1092
        %v1243 = vpack.c.b16 %v1099, %v1093
        %v1244 = vpack.c.b16 %v1100, %v1094
        %v1245 = vpack.c.b16 %v1101, %v1095
        %v1246 = vpack.c.b16 %v1102, %v1096
        %v1247 = vpack.c.b16 %v1109, %v1103
        %v1248 = vpack.c.b16 %v1110, %v1104
        %v1249 = vpack.c.b16 %v1111, %v1105
        %v1250 = vpack.c.b16 %v1112, %v1106
        %v1251 = vpack.c.b16 %v1113, %v1107
        %v1252 = vpack.c.b16 %v1114, %v1108
        %v1253 = vpack.c.b16 %v1121, %v1115
        %v1254 = vpack.c.b16 %v1122, %v1116
        %v1255 = vpack.c.b16 %v1123, %v1117
        %v1256 = vpack.c.b16 %v1124, %v1118
        %v1257 = vpack.c.b16 %v1125, %v1119
        %v1258 = vpack.c.b16 %v1126, %v1120
        %v1259 = vpack.c.b16 %v1133, %v1127
        %v1260 = vpack.c.b16 %v1134, %v1128
        %v1261 = vpack.c.b16 %v1135, %v1129
        %v1262 = vpack.c.b16 %v1136, %v1130
        %v1263 = vpack.c.b16 %v1137, %v1131
        %v1264 = vpack.c.b16 %v1138, %v1132
        %v1265 = vpack.c.b16 %v1145, %v1139
        %v1266 = vpack.c.b16 %v1146, %v1140
        %v1267 = vpack.c.b16 %v1147, %v1141
        %v1268 = vpack.c.b16 %v1148, %v1142
        %v1269 = vpack.c.b16 %v1149, %v1143
        %v1270 = vpack.c.b16 %v1150, %v1144
        %v1271 = vpack.c.b16 %v1157, %v1151
        %v1272 = vpack.c.b16 %v1158, %v1152
        %v1273 = vpack.c.b16 %v1159, %v1153
        %v1274 = vpack.c.b16 %v1160, %v1154
        %v1275 = vpack.c.b16 %v1161, %v1155
        %v1276 = vpack.c.b16 %v1162, %v1156
        %v1277 = vpack.c.b16 %v1169, %v1163
        %v1278 = vpack.c.b16 %v1170, %v1164
        %v1279 = vpack.c.b16 %v1171, %v1165
        %v1280 = vpack.c.b16 %v1172, %v1166
        %v1281 = vpack.c.b16 %v1173, %v1167
        %v1282 = vpack.c.b16 %v1174, %v1168
        %v1283 = vpack.c.b16 %v1181, %v1175
        %v1284 = vpack.c.b16 %v1182, %v1176
        %v1285 = vpack.c.b16 %v1183, %v1177
        %v1286 = vpack.c.b16 %v1184, %v1178
        %v1287 = vpack.c.b16 %v1185, %v1179
        %v1288 = vpack.c.b16 %v1186, %v1180
        %v1289 = vpack.c.b16 %v1193, %v1187
        %v1290 = vpack.c.b16 %v1194, %v1188
        %v1291 = vpack.c.b16 %v1195, %v1189
        %v1292 = vpack.c.b16 %v1196, %v1190
        %v1293 = vpack.c.b16 %v1197, %v1191
        %v1294 = vpack.c.b16 %v1198, %v1192
        %1391 = vmatprep.subr.bf16.mxu0 %v1242
        %1392 = vmatpush1.bf16.msra.mxu0 %v1241
        %1393 = vmatprep.subr.bf16.mxu0 %v1236
        %1394 = vmatpush1.bf16.msra.mxu0 %v1235
        %1395 = vmatprep.subr.bf16.mxu0 %v1230
        %1396 = vmatpush1.bf16.msra.mxu0 %v1229
        %1397 = vmatprep.subr.bf16.mxu0 %v1224
        %1398 = vmatpush1.bf16.msra.mxu0 %v1223
        %1399 = vmatprep.subr.bf16.mxu0 %v1218
        %1400 = vmatpush1.bf16.msra.mxu0 %v1217
        %1401 = vmatprep.subr.bf16.mxu0 %v1212
        %1402 = vmatpush1.bf16.msra.mxu0 %v1211
        %1403 = vmatprep.subr.bf16.mxu0 %v1206
        %1404 = vmatpush1.bf16.msra.mxu0 %v1205
        %1405 = vmatprep.subr.bf16.mxu0 %v1200
        %1406 = vmatpush1.bf16.msra.mxu0 %v1199
        %1407 = vmatprep.subr.bf16.mxu0 %v1290
        %1408 = vmatpush2.bf16.msra.mxu0 %v1289
        %1409 = vmatprep.subr.bf16.mxu0 %v1284
        %1410 = vmatpush2.bf16.msra.mxu0 %v1283
        %1411 = vmatprep.subr.bf16.mxu0 %v1278
        %1412 = vmatpush2.bf16.msra.mxu0 %v1277
        %1413 = vmatprep.subr.bf16.mxu0 %v1272
        %1414 = vmatpush2.bf16.msra.mxu0 %v1271
        %1415 = vmatprep.subr.bf16.mxu0 %v1266
        %1416 = vmatpush2.bf16.msra.mxu0 %v1265
        %1417 = vmatprep.subr.bf16.mxu0 %v1260
        %1418 = vmatpush2.bf16.msra.mxu0 %v1259
        %1419 = vmatprep.subr.bf16.mxu0 %v1254
        %1420 = vmatpush2.bf16.msra.mxu0 %v1253
        %1421 = vmatprep.subr.bf16.mxu0 %v1248
        %1422 = vmatpush2.bf16.msra.mxu0 %v1247
        %1423 = vmatprep.mubr.bf16.mxu0 %v755
        %1424 = vmatmul.mubr.bf16.gmra.mxu0 %v754
        %v1425 = vpop.f32.mrf.mxu0
        %v1426 = vadd.f32 %v890, %v1425
        %v1427 = vpop.f32.mrf.mxu0
        %v1428 = vadd.f32 %v894, %v1427
        %v1429 = vpop.f32.mrf.mxu0
        %v1430 = vadd.f32 %v890, %v1429
        %v1431 = vpop.f32.mrf.mxu0
        %v1432 = vadd.f32 %v894, %v1431
        %1433 = vdwg.mxu0
        %1434 = vmatprep.subr.bf16.mxu0 %v1244
        %1435 = vmatpush1.bf16.msra.mxu0 %v1243
        %1436 = vmatprep.subr.bf16.mxu0 %v1238
        %1437 = vmatpush1.bf16.msra.mxu0 %v1237
        %1438 = vmatprep.subr.bf16.mxu0 %v1232
        %1439 = vmatpush1.bf16.msra.mxu0 %v1231
        %1440 = vmatprep.subr.bf16.mxu0 %v1226
        %1441 = vmatpush1.bf16.msra.mxu0 %v1225
        %1442 = vmatprep.subr.bf16.mxu0 %v1220
        %1443 = vmatpush1.bf16.msra.mxu0 %v1219
        %1444 = vmatprep.subr.bf16.mxu0 %v1214
        %1445 = vmatpush1.bf16.msra.mxu0 %v1213
        %1446 = vmatprep.subr.bf16.mxu0 %v1208
        %1447 = vmatpush1.bf16.msra.mxu0 %v1207
        %1448 = vmatprep.subr.bf16.mxu0 %v1202
        %1449 = vmatpush1.bf16.msra.mxu0 %v1201
        %1450 = vmatprep.subr.bf16.mxu0 %v1292
        %1451 = vmatpush2.bf16.msra.mxu0 %v1291
        %1452 = vmatprep.subr.bf16.mxu0 %v1286
        %1453 = vmatpush2.bf16.msra.mxu0 %v1285
        %1454 = vmatprep.subr.bf16.mxu0 %v1280
        %1455 = vmatpush2.bf16.msra.mxu0 %v1279
        %1456 = vmatprep.subr.bf16.mxu0 %v1274
        %1457 = vmatpush2.bf16.msra.mxu0 %v1273
        %1458 = vmatprep.subr.bf16.mxu0 %v1268
        %1459 = vmatpush2.bf16.msra.mxu0 %v1267
        %1460 = vmatprep.subr.bf16.mxu0 %v1262
        %1461 = vmatpush2.bf16.msra.mxu0 %v1261
        %1462 = vmatprep.subr.bf16.mxu0 %v1256
        %1463 = vmatpush2.bf16.msra.mxu0 %v1255
        %1464 = vmatprep.subr.bf16.mxu0 %v1250
        %1465 = vmatpush2.bf16.msra.mxu0 %v1249
        %1466 = vmatprep.mubr.bf16.mxu0 %v755
        %1467 = vmatmul.mubr.bf16.gmra.mxu0 %v754
        %v1468 = vpop.f32.mrf.mxu0
        %v1469 = vadd.f32 %v898, %v1468
        %v1470 = vpop.f32.mrf.mxu0
        %v1471 = vadd.f32 %v902, %v1470
        %v1472 = vpop.f32.mrf.mxu0
        %v1473 = vadd.f32 %v898, %v1472
        %v1474 = vpop.f32.mrf.mxu0
        %v1475 = vadd.f32 %v902, %v1474
        %1476 = vdwg.mxu0
        %1477 = vmatprep.subr.bf16.mxu0 %v1246
        %1478 = vmatpush1.bf16.msra.mxu0 %v1245
        %1479 = vmatprep.subr.bf16.mxu0 %v1240
        %1480 = vmatpush1.bf16.msra.mxu0 %v1239
        %1481 = vmatprep.subr.bf16.mxu0 %v1234
        %1482 = vmatpush1.bf16.msra.mxu0 %v1233
        %1483 = vmatprep.subr.bf16.mxu0 %v1228
        %1484 = vmatpush1.bf16.msra.mxu0 %v1227
        %1485 = vmatprep.subr.bf16.mxu0 %v1222
        %1486 = vmatpush1.bf16.msra.mxu0 %v1221
        %1487 = vmatprep.subr.bf16.mxu0 %v1216
        %1488 = vmatpush1.bf16.msra.mxu0 %v1215
        %1489 = vmatprep.subr.bf16.mxu0 %v1210
        %1490 = vmatpush1.bf16.msra.mxu0 %v1209
        %1491 = vmatprep.subr.bf16.mxu0 %v1204
        %1492 = vmatpush1.bf16.msra.mxu0 %v1203
        %1493 = vmatprep.subr.bf16.mxu0 %v1294
        %1494 = vmatpush2.bf16.msra.mxu0 %v1293
        %1495 = vmatprep.subr.bf16.mxu0 %v1288
        %1496 = vmatpush2.bf16.msra.mxu0 %v1287
        %1497 = vmatprep.subr.bf16.mxu0 %v1282
        %1498 = vmatpush2.bf16.msra.mxu0 %v1281
        %1499 = vmatprep.subr.bf16.mxu0 %v1276
        %1500 = vmatpush2.bf16.msra.mxu0 %v1275
        %1501 = vmatprep.subr.bf16.mxu0 %v1270
        %1502 = vmatpush2.bf16.msra.mxu0 %v1269
        %1503 = vmatprep.subr.bf16.mxu0 %v1264
        %1504 = vmatpush2.bf16.msra.mxu0 %v1263
        %1505 = vmatprep.subr.bf16.mxu0 %v1258
        %1506 = vmatpush2.bf16.msra.mxu0 %v1257
        %1507 = vmatprep.subr.bf16.mxu0 %v1252
        %1508 = vmatpush2.bf16.msra.mxu0 %v1251
        %1509 = vmatprep.mubr.bf16.mxu0 %v755
        %1510 = vmatmul.mubr.bf16.gmra.mxu0 %v754
        %v1511 = vpop.f32.mrf.mxu0
        %v1512 = vadd.f32 %v906, %v1511
        %v1513 = vpop.f32.mrf.mxu0
        %v1514 = vadd.f32 %v910, %v1513
        %v1515 = vpop.f32.mrf.mxu0
        %v1516 = vadd.f32 %v906, %v1515
        %v1517 = vpop.f32.mrf.mxu0
        %v1518 = vadd.f32 %v910, %v1517
        %1519 = vdwg.mxu0
        %v1520 = vpack.c.bf16 %v1516, %v1512
        %v1521 = vpack.c.bf16 %v1518, %v1514
        %v1522 = vld [vmem:[%s9] sm:$0xff]
        %v1523 = vld [vmem:[%s9 + $0x8] sm:$0xff]
        %v1524 = vld [vmem:[#allocation17] sm:$0xff]
        %v1525 = vld [vmem:[#allocation17 + $0x8] sm:$0xff]
        %v1526 = vmul.f32 %v1426, %v1522
        %v1527 = vmul.f32 %v1430, %v1523
        %v1528 = vmul.f32 %v1428, %v1522
        %v1529 = vmul.f32 %v1432, %v1523
        %1530 = vrot.lane.b32.xlu0 %v1426, 64
        %v1531 = vpop.permute.xlu0 %1530
        %1532 = vrot.lane.b32.xlu0 %v1430, 64
        %v1533 = vpop.permute.xlu0 %1532
        %1534 = vrot.lane.b32.xlu0 %v1428, 64
        %v1535 = vpop.permute.xlu0 %1534
        %1536 = vrot.lane.b32.xlu0 %v1432, 64
        %v1537 = vpop.permute.xlu0 %1536
        %v1538 = vmul.f32 %v1531, %v1524
        %v1539 = vmul.f32 %v1533, %v1525
        %v1540 = vmul.f32 %v1535, %v1524
        %v1541 = vmul.f32 %v1537, %v1525
        %v1542 = vadd.f32 %v1526, %v1538
        %v1543 = vadd.f32 %v1527, %v1539
        %v1544 = vadd.f32 %v1528, %v1540
        %v1545 = vadd.f32 %v1529, %v1541
        %v1546 = vpack.c.bf16 %v1543, %v1542
        %v1547 = vpack.c.bf16 %v1545, %v1544
        %v1548 = vmul.f32 %v1469, %v1522
        %v1549 = vmul.f32 %v1473, %v1523
        %v1550 = vmul.f32 %v1471, %v1522
        %v1551 = vmul.f32 %v1475, %v1523
        %1552 = vrot.lane.b32.xlu0 %v1469, 64
        %v1553 = vpop.permute.xlu0 %1552
        %1554 = vrot.lane.b32.xlu0 %v1473, 64
        %v1555 = vpop.permute.xlu0 %1554
        %1556 = vrot.lane.b32.xlu0 %v1471, 64
        %v1557 = vpop.permute.xlu0 %1556
        %1558 = vrot.lane.b32.xlu0 %v1475, 64
        %v1559 = vpop.permute.xlu0 %1558
        %v1560 = vmul.f32 %v1553, %v1524
        %v1561 = vmul.f32 %v1555, %v1525
        %v1562 = vmul.f32 %v1557, %v1524
        %v1563 = vmul.f32 %v1559, %v1525
        %v1564 = vadd.f32 %v1548, %v1560
        %v1565 = vadd.f32 %v1549, %v1561
        %v1566 = vadd.f32 %v1550, %v1562
        %v1567 = vadd.f32 %v1551, %v1563
        %v1568 = vpack.c.bf16 %v1565, %v1564
        %v1569 = vpack.c.bf16 %v1567, %v1566
        %1570 = vmatprep.subr.bf16.mxu0 0
        %1571 = vmatpush1.bf16.xpose.msra.mxu0 0
        %1572 = vmatprep.subr.bf16.mxu0 0
        %1573 = vmatpush1.bf16.xpose.msra.mxu0 0
        %1574 = vmatprep.subr.bf16.mxu0 0
        %1575 = vmatpush1.bf16.xpose.msra.mxu0 0
        %1576 = vmatprep.subr.bf16.mxu0 0
        %1577 = vmatpush1.bf16.xpose.msra.mxu0 0
        %1578 = vmatprep.subr.bf16.mxu0 0
        %1579 = vmatpush1.bf16.xpose.msra.mxu0 0
        %1580 = vmatprep.subr.bf16.mxu0 0
        %1581 = vmatpush1.bf16.xpose.msra.mxu0 0
        %1582 = vmatprep.subr.bf16.mxu0 0
        %1583 = vmatpush1.bf16.xpose.msra.mxu0 0
        %1584 = vmatprep.subr.bf16.mxu0 0
        %1585 = vmatpush1.bf16.xpose.msra.mxu0 %v1568
        %1586 = vmatprep.subr.bf16.mxu0 0
        %1587 = vmatpush2.bf16.xpose.msra.mxu0 0
        %1588 = vmatprep.subr.bf16.mxu0 0
        %1589 = vmatpush2.bf16.xpose.msra.mxu0 0
        %1590 = vmatprep.subr.bf16.mxu0 0
        %1591 = vmatpush2.bf16.xpose.msra.mxu0 0
        %1592 = vmatprep.subr.bf16.mxu0 0
        %1593 = vmatpush2.bf16.xpose.msra.mxu0 0
        %1594 = vmatprep.subr.bf16.mxu0 0
        %1595 = vmatpush2.bf16.xpose.msra.mxu0 0
        %1596 = vmatprep.subr.bf16.mxu0 0
        %1597 = vmatpush2.bf16.xpose.msra.mxu0 0
        %1598 = vmatprep.subr.bf16.mxu0 0
        %1599 = vmatpush2.bf16.xpose.msra.mxu0 0
        %1600 = vmatprep.subr.bf16.mxu0 0
        %1601 = vmatpush2.bf16.xpose.msra.mxu0 0
        %1602 = vmatprep.mubr.bf16.mxu0 0
        %1603 = vmatmul.mubr.bf16.gmra.mxu0 %v1546
        %v1604 = vpop.f32.mrf.mxu0
        %v1605 = vadd.f32 0.0, %v1604
        %v1606 = vpop.f32.mrf.mxu0
        %v1607 = vpop.f32.mrf.mxu0
        %v1608 = vadd.f32 0.0, %v1607
        %v1609 = vpop.f32.mrf.mxu0
        %1610 = vdwg.mxu0
        %1611 = vmatprep.subr.bf16.mxu0 0
        %1612 = vmatpush1.bf16.xpose.msra.mxu0 0
        %1613 = vmatprep.subr.bf16.mxu0 0
        %1614 = vmatpush1.bf16.xpose.msra.mxu0 0
        %1615 = vmatprep.subr.bf16.mxu0 0
        %1616 = vmatpush1.bf16.xpose.msra.mxu0 0
        %1617 = vmatprep.subr.bf16.mxu0 0
        %1618 = vmatpush1.bf16.xpose.msra.mxu0 0
        %1619 = vmatprep.subr.bf16.mxu0 0
        %1620 = vmatpush1.bf16.xpose.msra.mxu0 0
        %1621 = vmatprep.subr.bf16.mxu0 0
        %1622 = vmatpush1.bf16.xpose.msra.mxu0 0
        %1623 = vmatprep.subr.bf16.mxu0 0
        %1624 = vmatpush1.bf16.xpose.msra.mxu0 0
        %1625 = vmatprep.subr.bf16.mxu0 0
        %1626 = vmatpush1.bf16.xpose.msra.mxu0 %v1569
        %1627 = vmatprep.subr.bf16.mxu0 0
        %1628 = vmatpush2.bf16.xpose.msra.mxu0 0
        %1629 = vmatprep.subr.bf16.mxu0 0
        %1630 = vmatpush2.bf16.xpose.msra.mxu0 0
        %1631 = vmatprep.subr.bf16.mxu0 0
        %1632 = vmatpush2.bf16.xpose.msra.mxu0 0
        %1633 = vmatprep.subr.bf16.mxu0 0
        %1634 = vmatpush2.bf16.xpose.msra.mxu0 0
        %1635 = vmatprep.subr.bf16.mxu0 0
        %1636 = vmatpush2.bf16.xpose.msra.mxu0 0
        %1637 = vmatprep.subr.bf16.mxu0 0
        %1638 = vmatpush2.bf16.xpose.msra.mxu0 0
        %1639 = vmatprep.subr.bf16.mxu0 0
        %1640 = vmatpush2.bf16.xpose.msra.mxu0 0
        %1641 = vmatprep.subr.bf16.mxu0 0
        %1642 = vmatpush2.bf16.xpose.msra.mxu0 0
        %1643 = vmatprep.mubr.bf16.mxu0 0
        %1644 = vmatmul.mubr.bf16.gmra.mxu0 %v1547
        %v1645 = vpop.f32.mrf.mxu0
        %v1646 = vadd.f32 0.0, %v1645
        %v1647 = vpop.f32.mrf.mxu0
        %v1648 = vpop.f32.mrf.mxu0
        %v1649 = vadd.f32 0.0, %v1648
        %v1650 = vpop.f32.mrf.mxu0
        %1651 = vdwg.mxu0
        %vm1652 = vcmask 130048
        %v1653 = vsel %vm1652, %v1605, -inf
        %1654 = vmax.xlane.f32.xlu0 %v1653
        %v1655 = vpop.xlane.xlu0 %1654
        %v1656 = vsel %vm1652, %v1608, -inf
        %1657 = vmax.xlane.f32.xlu0 %v1656
        %v1658 = vpop.xlane.xlu0 %1657
        %v1659 = vsel %vm1652, %v1646, -inf
        %1660 = vmax.xlane.f32.xlu0 %v1659
        %v1661 = vpop.xlane.xlu0 %1660
        %v1662 = vsel %vm1652, %v1649, -inf
        %1663 = vmax.xlane.f32.xlu0 %v1662
        %v1664 = vpop.xlane.xlu0 %1663
        %v1665 = vsub.f32 %v1605, %v1655
        %v1666 = vsub.f32 %v1608, %v1658
        %v1667 = vsub.f32 %v1646, %v1661
        %v1668 = vsub.f32 %v1649, %v1664
        %v1669 = vmul.f32 %v1665, 1.442695
        %v1670 = vpow.pop %v1669
        %v1671 = vmul.f32 %v1666, 1.442695
        %v1672 = vpow.pop %v1671
        %v1673 = vmul.f32 %v1667, 1.442695
        %v1674 = vpow.pop %v1673
        %v1675 = vmul.f32 %v1668, 1.442695
        %v1676 = vpow.pop %v1675
        %v1677 = vsel %vm1652, %v1670, 0.0
        %1678 = vadd.xlane.f32.xlu0 %v1677
        %v1679 = vpop.xlane.xlu0 %1678
        %v1680 = vsel %vm1652, %v1672, 0.0
        %1681 = vadd.xlane.f32.xlu0 %v1680
        %v1682 = vpop.xlane.xlu0 %1681
        %v1683 = vsel %vm1652, %v1674, 0.0
        %1684 = vadd.xlane.f32.xlu0 %v1683
        %v1685 = vpop.xlane.xlu0 %1684
        %v1686 = vsel %vm1652, %v1676, 0.0
        %1687 = vadd.xlane.f32.xlu0 %v1686
        %v1688 = vpop.xlane.xlu0 %1687
        %v1689 = vrcp.pop %v1679
        %v1690 = vrcp.pop %v1682
        %v1691 = vrcp.pop %v1685
        %v1692 = vrcp.pop %v1688
        %v1693 = vmul.f32 %v1670, %v1689
        %v1694 = vmul.f32 %v1672, %v1690
        %v1695 = vmul.f32 %v1674, %v1691
        %v1696 = vmul.f32 %v1676, %v1692
        %v1697 = vpack.c.bf16 %v1694, %v1693
        %v1698 = vpack.c.bf16 %v1696, %v1695
        %v1700 = vsel %vm1652, %v1697, 0
        %1702 = vmatprep.subr.bf16.mxu0 0
        %1703 = vmatpush1.bf16.msra.mxu0 0
        %1704 = vmatprep.subr.bf16.mxu0 0
        %1705 = vmatpush1.bf16.msra.mxu0 0
        %1706 = vmatprep.subr.bf16.mxu0 0
        %1707 = vmatpush1.bf16.msra.mxu0 0
        %1708 = vmatprep.subr.bf16.mxu0 0
        %1709 = vmatpush1.bf16.msra.mxu0 0
        %1710 = vmatprep.subr.bf16.mxu0 0
        %1711 = vmatpush1.bf16.msra.mxu0 0
        %1712 = vmatprep.subr.bf16.mxu0 0
        %1713 = vmatpush1.bf16.msra.mxu0 0
        %1714 = vmatprep.subr.bf16.mxu0 0
        %1715 = vmatpush1.bf16.msra.mxu0 0
        %1716 = vmatprep.subr.bf16.mxu0 0
        %1717 = vmatpush1.bf16.msra.mxu0 %v1520
        %1718 = vmatprep.subr.bf16.mxu0 0
        %1719 = vmatpush2.bf16.msra.mxu0 0
        %1720 = vmatprep.subr.bf16.mxu0 0
        %1721 = vmatpush2.bf16.msra.mxu0 0
        %1722 = vmatprep.subr.bf16.mxu0 0
        %1723 = vmatpush2.bf16.msra.mxu0 0
        %1724 = vmatprep.subr.bf16.mxu0 0
        %1725 = vmatpush2.bf16.msra.mxu0 0
        %1726 = vmatprep.subr.bf16.mxu0 0
        %1727 = vmatpush2.bf16.msra.mxu0 0
        %1728 = vmatprep.subr.bf16.mxu0 0
        %1729 = vmatpush2.bf16.msra.mxu0 0
        %1730 = vmatprep.subr.bf16.mxu0 0
        %1731 = vmatpush2.bf16.msra.mxu0 0
        %1732 = vmatprep.subr.bf16.mxu0 0
        %1733 = vmatpush2.bf16.msra.mxu0 0
        %1734 = vmatprep.mubr.bf16.mxu0 0
        %1735 = vmatmul.mubr.bf16.gmra.mxu0 %v1700
        %v1736 = vpop.f32.mrf.mxu0
        %v1737 = vadd.f32 0.0, %v1736
        %v1738 = vpop.f32.mrf.mxu0
        %v1739 = vpop.f32.mrf.mxu0
        %v1740 = vadd.f32 0.0, %v1739
        %v1741 = vpop.f32.mrf.mxu0
        %1742 = vdwg.mxu0
        %v1744 = vsel %vm1652, %v1698, 0
        %1746 = vmatprep.subr.bf16.mxu0 0
        %1747 = vmatpush1.bf16.msra.mxu0 0
        %1748 = vmatprep.subr.bf16.mxu0 0
        %1749 = vmatpush1.bf16.msra.mxu0 0
        %1750 = vmatprep.subr.bf16.mxu0 0
        %1751 = vmatpush1.bf16.msra.mxu0 0
        %1752 = vmatprep.subr.bf16.mxu0 0
        %1753 = vmatpush1.bf16.msra.mxu0 0
        %1754 = vmatprep.subr.bf16.mxu0 0
        %1755 = vmatpush1.bf16.msra.mxu0 0
        %1756 = vmatprep.subr.bf16.mxu0 0
        %1757 = vmatpush1.bf16.msra.mxu0 0
        %1758 = vmatprep.subr.bf16.mxu0 0
        %1759 = vmatpush1.bf16.msra.mxu0 0
        %1760 = vmatprep.subr.bf16.mxu0 0
        %1761 = vmatpush1.bf16.msra.mxu0 %v1521
        %1762 = vmatprep.subr.bf16.mxu0 0
        %1763 = vmatpush2.bf16.msra.mxu0 0
        %1764 = vmatprep.subr.bf16.mxu0 0
        %1765 = vmatpush2.bf16.msra.mxu0 0
        %1766 = vmatprep.subr.bf16.mxu0 0
        %1767 = vmatpush2.bf16.msra.mxu0 0
        %1768 = vmatprep.subr.bf16.mxu0 0
        %1769 = vmatpush2.bf16.msra.mxu0 0
        %1770 = vmatprep.subr.bf16.mxu0 0
        %1771 = vmatpush2.bf16.msra.mxu0 0
        %1772 = vmatprep.subr.bf16.mxu0 0
        %1773 = vmatpush2.bf16.msra.mxu0 0
        %1774 = vmatprep.subr.bf16.mxu0 0
        %1775 = vmatpush2.bf16.msra.mxu0 0
        %1776 = vmatprep.subr.bf16.mxu0 0
        %1777 = vmatpush2.bf16.msra.mxu0 0
        %1778 = vmatprep.mubr.bf16.mxu0 0
        %1779 = vmatmul.mubr.bf16.gmra.mxu0 %v1744
        %v1780 = vpop.f32.mrf.mxu0
        %v1781 = vadd.f32 0.0, %v1780
        %v1782 = vpop.f32.mrf.mxu0
        %v1783 = vpop.f32.mrf.mxu0
        %v1784 = vadd.f32 0.0, %v1783
        %v1785 = vpop.f32.mrf.mxu0
        %1786 = vdwg.mxu0
        %v1787 = vpack.c.bf16 %v1740, %v1737
        %v1788 = vpack.c.bf16 %v1784, %v1781
        %v1789 = vld [vmem:[#allocation14] sm:$0xff]
        %v1790 = vld [vmem:[#allocation14 + $0x8] sm:$0xff]
        %v1791 = vld [vmem:[#allocation14 + $0x10] sm:$0xff]
        %v1792 = vld [vmem:[#allocation14 + $0x18] sm:$0xff]
        %v1793 = vld [vmem:[#allocation14 + $0x20] sm:$0xff]
        %v1794 = vld [vmem:[#allocation14 + $0x28] sm:$0xff]
        %v1795 = vld [vmem:[#allocation14 + $0x30] sm:$0xff]
        %v1796 = vld [vmem:[#allocation14 + $0x38] sm:$0xff]
        %v1797 = vld [vmem:[#allocation14 + $0x40] sm:$0xff]
        %v1798 = vld [vmem:[#allocation14 + $0x48] sm:$0xff]
        %v1799 = vld [vmem:[#allocation14 + $0x50] sm:$0xff]
        %v1800 = vld [vmem:[#allocation14 + $0x58] sm:$0xff]
        %v1801 = vld [vmem:[#allocation14 + $0x60] sm:$0xff]
        %v1802 = vld [vmem:[#allocation14 + $0x68] sm:$0xff]
        %v1803 = vld [vmem:[#allocation14 + $0x70] sm:$0xff]
        %v1804 = vld [vmem:[#allocation14 + $0x78] sm:$0xff]
        %v1805 = vld [vmem:[#allocation14 + $0x80] sm:$0xff]
        %v1806 = vld [vmem:[#allocation14 + $0x88] sm:$0xff]
        %v1807 = vld [vmem:[#allocation14 + $0x90] sm:$0xff]
        %v1808 = vld [vmem:[#allocation14 + $0x98] sm:$0xff]
        %v1809 = vld [vmem:[#allocation14 + $0xa0] sm:$0xff]
        %v1810 = vld [vmem:[#allocation14 + $0xa8] sm:$0xff]
        %v1811 = vld [vmem:[#allocation14 + $0xb0] sm:$0xff]
        %v1812 = vld [vmem:[#allocation14 + $0xb8] sm:$0xff]
        %v1813 = vld [vmem:[#allocation14 + $0xc0] sm:$0xff]
        %v1814 = vld [vmem:[#allocation14 + $0xc8] sm:$0xff]
        %v1815 = vld [vmem:[#allocation14 + $0xd0] sm:$0xff]
        %v1816 = vld [vmem:[#allocation14 + $0xd8] sm:$0xff]
        %v1817 = vld [vmem:[#allocation14 + $0xe0] sm:$0xff]
        %v1818 = vld [vmem:[#allocation14 + $0xe8] sm:$0xff]
        %v1819 = vld [vmem:[#allocation14 + $0xf0] sm:$0xff]
        %v1820 = vld [vmem:[#allocation14 + $0xf8] sm:$0xff]
        %v1821 = vld [vmem:[#allocation16] sm:$0x3]
        %v1822 = vunpack.c.l.bf16 %v1821
        %v1824 = vlaneseq
        %v1825 = vshrl.u32 %v1824, 7
        %v1826 = vsub.s32 0, %v1825
        %v1827 = vrot.slane %v1822, %v1826
        %v1828 = vlaneseq
        %v1829 = vshrl.u32 %v1828, 7
        %v1830 = vsub.s32 2, %v1829
        %v1831 = vrot.slane %v1822, %v1830
        %v1834 = vlaneseq
        %v1835 = vshrl.u32 %v1834, 7
        %v1836 = vsub.s32 0, %v1835
        %v1837 = vrot.slane %v1827, %v1836
        %v1838 = vlaneseq
        %v1839 = vshrl.u32 %v1838, 7
        %v1840 = vsub.s32 0, %v1839
        %v1841 = vrot.slane %v1831, %v1840
        %v1874 = vunpack.c.l.b16 %v1789
        %v1875 = vunpack.c.h.b16 %v1789
        %v1876 = vunpack.c.l.b16 %v1790
        %v1877 = vunpack.c.h.b16 %v1790
        %v1878 = vunpack.c.l.b16 %v1791
        %v1879 = vunpack.c.h.b16 %v1791
        %v1880 = vunpack.c.l.b16 %v1792
        %v1881 = vunpack.c.h.b16 %v1792
        %v1882 = vunpack.c.l.b16 %v1793
        %v1883 = vunpack.c.h.b16 %v1793
        %v1884 = vunpack.c.l.b16 %v1794
        %v1885 = vunpack.c.h.b16 %v1794
        %v1886 = vunpack.c.l.b16 %v1795
        %v1887 = vunpack.c.h.b16 %v1795
        %v1888 = vunpack.c.l.b16 %v1796
        %v1889 = vunpack.c.h.b16 %v1796
        %v1890 = vunpack.c.l.b16 %v1797
        %v1891 = vunpack.c.h.b16 %v1797
        %v1892 = vunpack.c.l.b16 %v1798
        %v1893 = vunpack.c.h.b16 %v1798
        %v1894 = vunpack.c.l.b16 %v1799
        %v1895 = vunpack.c.h.b16 %v1799
        %v1896 = vunpack.c.l.b16 %v1800
        %v1897 = vunpack.c.h.b16 %v1800
        %v1898 = vunpack.c.l.b16 %v1801
        %v1899 = vunpack.c.h.b16 %v1801
        %v1900 = vunpack.c.l.b16 %v1802
        %v1901 = vunpack.c.h.b16 %v1802
        %v1902 = vunpack.c.l.b16 %v1803
        %v1903 = vunpack.c.h.b16 %v1803
        %v1904 = vunpack.c.l.b16 %v1804
        %v1905 = vunpack.c.h.b16 %v1804
        %v1906 = vunpack.c.l.b16 %v1805
        %v1907 = vunpack.c.h.b16 %v1805
        %v1908 = vunpack.c.l.b16 %v1806
        %v1909 = vunpack.c.h.b16 %v1806
        %v1910 = vunpack.c.l.b16 %v1807
        %v1911 = vunpack.c.h.b16 %v1807
        %v1912 = vunpack.c.l.b16 %v1808
        %v1913 = vunpack.c.h.b16 %v1808
        %v1914 = vunpack.c.l.b16 %v1809
        %v1915 = vunpack.c.h.b16 %v1809
        %v1916 = vunpack.c.l.b16 %v1810
        %v1917 = vunpack.c.h.b16 %v1810
        %v1918 = vunpack.c.l.b16 %v1811
        %v1919 = vunpack.c.h.b16 %v1811
        %v1920 = vunpack.c.l.b16 %v1812
        %v1921 = vunpack.c.h.b16 %v1812
        %v1922 = vunpack.c.l.b16 %v1813
        %v1923 = vunpack.c.h.b16 %v1813
        %v1924 = vunpack.c.l.b16 %v1814
        %v1925 = vunpack.c.h.b16 %v1814
        %v1926 = vunpack.c.l.b16 %v1815
        %v1927 = vunpack.c.h.b16 %v1815
        %v1928 = vunpack.c.l.b16 %v1816
        %v1929 = vunpack.c.h.b16 %v1816
        %v1930 = vunpack.c.l.b16 %v1817
        %v1931 = vunpack.c.h.b16 %v1817
        %v1932 = vunpack.c.l.b16 %v1818
        %v1933 = vunpack.c.h.b16 %v1818
        %v1934 = vunpack.c.l.b16 %v1819
        %v1935 = vunpack.c.h.b16 %v1819
        %v1936 = vunpack.c.l.b16 %v1820
        %v1937 = vunpack.c.h.b16 %v1820
        %v1938 = vpack.c.b16 %v1876, %v1874
        %v1939 = vpack.c.b16 %v1877, %v1875
        %v1940 = vpack.c.b16 %v1880, %v1878
        %v1941 = vpack.c.b16 %v1881, %v1879
        %v1942 = vpack.c.b16 %v1884, %v1882
        %v1943 = vpack.c.b16 %v1885, %v1883
        %v1944 = vpack.c.b16 %v1888, %v1886
        %v1945 = vpack.c.b16 %v1889, %v1887
        %v1946 = vpack.c.b16 %v1892, %v1890
        %v1947 = vpack.c.b16 %v1893, %v1891
        %v1948 = vpack.c.b16 %v1896, %v1894
        %v1949 = vpack.c.b16 %v1897, %v1895
        %v1950 = vpack.c.b16 %v1900, %v1898
        %v1951 = vpack.c.b16 %v1901, %v1899
        %v1952 = vpack.c.b16 %v1904, %v1902
        %v1953 = vpack.c.b16 %v1905, %v1903
        %v1954 = vpack.c.b16 %v1908, %v1906
        %v1955 = vpack.c.b16 %v1909, %v1907
        %v1956 = vpack.c.b16 %v1912, %v1910
        %v1957 = vpack.c.b16 %v1913, %v1911
        %v1958 = vpack.c.b16 %v1916, %v1914
        %v1959 = vpack.c.b16 %v1917, %v1915
        %v1960 = vpack.c.b16 %v1920, %v1918
        %v1961 = vpack.c.b16 %v1921, %v1919
        %v1962 = vpack.c.b16 %v1924, %v1922
        %v1963 = vpack.c.b16 %v1925, %v1923
        %v1964 = vpack.c.b16 %v1928, %v1926
        %v1965 = vpack.c.b16 %v1929, %v1927
        %v1966 = vpack.c.b16 %v1932, %v1930
        %v1967 = vpack.c.b16 %v1933, %v1931
        %v1968 = vpack.c.b16 %v1936, %v1934
        %v1969 = vpack.c.b16 %v1937, %v1935
        %2002 = vmatprep.subr.bf16.mxu0 %v1953
        %2003 = vmatpush1.bf16.msra.mxu0 %v1952
        %2004 = vmatprep.subr.bf16.mxu0 %v1951
        %2005 = vmatpush1.bf16.msra.mxu0 %v1950
        %2006 = vmatprep.subr.bf16.mxu0 %v1949
        %2007 = vmatpush1.bf16.msra.mxu0 %v1948
        %2008 = vmatprep.subr.bf16.mxu0 %v1947
        %2009 = vmatpush1.bf16.msra.mxu0 %v1946
        %2010 = vmatprep.subr.bf16.mxu0 %v1945
        %2011 = vmatpush1.bf16.msra.mxu0 %v1944
        %2012 = vmatprep.subr.bf16.mxu0 %v1943
        %2013 = vmatpush1.bf16.msra.mxu0 %v1942
        %2014 = vmatprep.subr.bf16.mxu0 %v1941
        %2015 = vmatpush1.bf16.msra.mxu0 %v1940
        %2016 = vmatprep.subr.bf16.mxu0 %v1939
        %2017 = vmatpush1.bf16.msra.mxu0 %v1938
        %2018 = vmatprep.subr.bf16.mxu0 %v1969
        %2019 = vmatpush2.bf16.msra.mxu0 %v1968
        %2020 = vmatprep.subr.bf16.mxu0 %v1967
        %2021 = vmatpush2.bf16.msra.mxu0 %v1966
        %2022 = vmatprep.subr.bf16.mxu0 %v1965
        %2023 = vmatpush2.bf16.msra.mxu0 %v1964
        %2024 = vmatprep.subr.bf16.mxu0 %v1963
        %2025 = vmatpush2.bf16.msra.mxu0 %v1962
        %2026 = vmatprep.subr.bf16.mxu0 %v1961
        %2027 = vmatpush2.bf16.msra.mxu0 %v1960
        %2028 = vmatprep.subr.bf16.mxu0 %v1959
        %2029 = vmatpush2.bf16.msra.mxu0 %v1958
        %2030 = vmatprep.subr.bf16.mxu0 %v1957
        %2031 = vmatpush2.bf16.msra.mxu0 %v1956
        %2032 = vmatprep.subr.bf16.mxu0 %v1955
        %2033 = vmatpush2.bf16.msra.mxu0 %v1954
        %2034 = vmatprep.mubr.bf16.mxu0 %v1788
        %2035 = vmatmul.mubr.bf16.gmra.mxu0 %v1787
        %v2036 = vpop.f32.mrf.mxu0
        %v2037 = vadd.f32 %v1837, %v2036
        %v2038 = vpop.f32.mrf.mxu0
        %v2039 = vadd.f32 %v1841, %v2038
        %v2040 = vpop.f32.mrf.mxu0
        %v2041 = vadd.f32 %v1837, %v2040
        %v2042 = vpop.f32.mrf.mxu0
        %v2043 = vadd.f32 %v1841, %v2042
        %2044 = vdwg.mxu0
        %v2045 = vadd.f32 %v679, %v2037
        %v2046 = vadd.f32 %v680, %v2039
        %v2047 = vadd.f32 %v681, %v2041
        %v2048 = vadd.f32 %v682, %v2043
        %v2049 = vpack.c.bf16 %v2047, %v2045
        %v2050 = vpack.c.bf16 %v2048, %v2046
        %v2051 = vunpack.c.l.bf16 %v2049
        %v2052 = vunpack.c.l.bf16 %v2050
        %v2053 = vunpack.c.h.bf16 %v2049
        %v2054 = vunpack.c.h.bf16 %v2050
        %v2055 = vmul.f32 %v2051, %v2051
        %v2056 = vmul.f32 %v2052, %v2052
        %v2057 = vmul.f32 %v2053, %v2053
        %v2058 = vmul.f32 %v2054, %v2054
        %v2059 = vadd.f32 %v2055, %v2056
        %2060 = vadd.xlane.f32.xlu0 %v2059
        %v2061 = vpop.xlane.xlu0 %2060
        %v2062 = vadd.f32 %v2057, %v2058
        %2063 = vadd.xlane.f32.xlu0 %v2062
        %v2064 = vpop.xlane.xlu0 %2063
        %v2065 = vmul.f32 %v2061, %v693
        %v2066 = vmul.f32 %v2064, %v693
        %v2067 = vadd.f32 %v2065, 1e-05
        %v2068 = vadd.f32 %v2066, 1e-05
        %v2069 = vrsqrt.pop %v2067
        %v2070 = vrsqrt.pop %v2068
        %v2071 = vmul.f32 %v2051, %v2069
        %v2072 = vmul.f32 %v2052, %v2069
        %v2073 = vmul.f32 %v2053, %v2070
        %v2074 = vmul.f32 %v2054, %v2070
        %v2075 = vld [vmem:[#allocation8] sm:$0x3]
        %v2076 = vunpack.c.l.bf16 %v2075
        %v2078 = vlaneseq
        %v2079 = vshrl.u32 %v2078, 7
        %v2080 = vsub.s32 0, %v2079
        %v2081 = vrot.slane %v2076, %v2080
        %v2082 = vlaneseq
        %v2083 = vshrl.u32 %v2082, 7
        %v2084 = vsub.s32 2, %v2083
        %v2085 = vrot.slane %v2076, %v2084
        %v2088 = vlaneseq
        %v2089 = vshrl.u32 %v2088, 7
        %v2090 = vsub.s32 0, %v2089
        %v2091 = vrot.slane %v2081, %v2090
        %v2092 = vlaneseq
        %v2093 = vshrl.u32 %v2092, 7
        %v2094 = vsub.s32 0, %v2093
        %v2095 = vrot.slane %v2085, %v2094
        %v2096 = vmul.f32 %v2071, %v2091
        %v2097 = vmul.f32 %v2072, %v2095
        %v2098 = vmul.f32 %v2073, %v2091
        %v2099 = vmul.f32 %v2074, %v2095
        %v2100 = vld [vmem:[#allocation10] sm:$0x3]
        %v2101 = vunpack.c.l.bf16 %v2100
        %v2103 = vlaneseq
        %v2104 = vshrl.u32 %v2103, 7
        %v2105 = vsub.s32 0, %v2104
        %v2106 = vrot.slane %v2101, %v2105
        %v2107 = vlaneseq
        %v2108 = vshrl.u32 %v2107, 7
        %v2109 = vsub.s32 2, %v2108
        %v2110 = vrot.slane %v2101, %v2109
        %v2113 = vlaneseq
        %v2114 = vshrl.u32 %v2113, 7
        %v2115 = vsub.s32 0, %v2114
        %v2116 = vrot.slane %v2106, %v2115
        %v2117 = vlaneseq
        %v2118 = vshrl.u32 %v2117, 7
        %v2119 = vsub.s32 0, %v2118
        %v2120 = vrot.slane %v2110, %v2119
        %v2121 = vadd.f32 %v2096, %v2116
        %v2122 = vadd.f32 %v2097, %v2120
        %v2123 = vadd.f32 %v2098, %v2116
        %v2124 = vadd.f32 %v2099, %v2120
        %v2125 = vpack.c.bf16 %v2123, %v2121
        %v2126 = vpack.c.bf16 %v2124, %v2122
        %v2127 = vld [vmem:[#allocation19] sm:$0xff]
        %v2128 = vld [vmem:[#allocation19 + $0x8] sm:$0xff]
        %v2129 = vld [vmem:[#allocation19 + $0x10] sm:$0xff]
        %v2130 = vld [vmem:[#allocation19 + $0x18] sm:$0xff]
        %v2131 = vld [vmem:[#allocation19 + $0x20] sm:$0xff]
        %v2132 = vld [vmem:[#allocation19 + $0x28] sm:$0xff]
        %v2133 = vld [vmem:[#allocation19 + $0x30] sm:$0xff]
        %v2134 = vld [vmem:[#allocation19 + $0x38] sm:$0xff]
        %v2135 = vld [vmem:[#allocation19 + $0x40] sm:$0xff]
        %v2136 = vld [vmem:[#allocation19 + $0x48] sm:$0xff]
        %v2137 = vld [vmem:[#allocation19 + $0x50] sm:$0xff]
        %v2138 = vld [vmem:[#allocation19 + $0x58] sm:$0xff]
        %v2139 = vld [vmem:[#allocation19 + $0x60] sm:$0xff]
        %v2140 = vld [vmem:[#allocation19 + $0x68] sm:$0xff]
        %v2141 = vld [vmem:[#allocation19 + $0x70] sm:$0xff]
        %v2142 = vld [vmem:[#allocation19 + $0x78] sm:$0xff]
        %v2143 = vld [vmem:[#allocation19 + $0x80] sm:$0xff]
        %v2144 = vld [vmem:[#allocation19 + $0x88] sm:$0xff]
        %v2145 = vld [vmem:[#allocation19 + $0x90] sm:$0xff]
        %v2146 = vld [vmem:[#allocation19 + $0x98] sm:$0xff]
        %v2147 = vld [vmem:[#allocation19 + $0xa0] sm:$0xff]
        %v2148 = vld [vmem:[#allocation19 + $0xa8] sm:$0xff]
        %v2149 = vld [vmem:[#allocation19 + $0xb0] sm:$0xff]
        %v2150 = vld [vmem:[#allocation19 + $0xb8] sm:$0xff]
        %v2151 = vld [vmem:[#allocation19 + $0xc0] sm:$0xff]
        %v2152 = vld [vmem:[#allocation19 + $0xc8] sm:$0xff]
        %v2153 = vld [vmem:[#allocation19 + $0xd0] sm:$0xff]
        %v2154 = vld [vmem:[#allocation19 + $0xd8] sm:$0xff]
        %v2155 = vld [vmem:[#allocation19 + $0xe0] sm:$0xff]
        %v2156 = vld [vmem:[#allocation19 + $0xe8] sm:$0xff]
        %v2157 = vld [vmem:[#allocation19 + $0xf0] sm:$0xff]
        %v2158 = vld [vmem:[#allocation19 + $0xf8] sm:$0xff]
        %v2159 = vld [vmem:[#allocation19 + $0x100] sm:$0xff]
        %v2160 = vld [vmem:[#allocation19 + $0x108] sm:$0xff]
        %v2161 = vld [vmem:[#allocation19 + $0x110] sm:$0xff]
        %v2162 = vld [vmem:[#allocation19 + $0x118] sm:$0xff]
        %v2163 = vld [vmem:[#allocation19 + $0x120] sm:$0xff]
        %v2164 = vld [vmem:[#allocation19 + $0x128] sm:$0xff]
        %v2165 = vld [vmem:[#allocation19 + $0x130] sm:$0xff]
        %v2166 = vld [vmem:[#allocation19 + $0x138] sm:$0xff]
        %v2167 = vld [vmem:[#allocation19 + $0x140] sm:$0xff]
        %v2168 = vld [vmem:[#allocation19 + $0x148] sm:$0xff]
        %v2169 = vld [vmem:[#allocation19 + $0x150] sm:$0xff]
        %v2170 = vld [vmem:[#allocation19 + $0x158] sm:$0xff]
        %v2171 = vld [vmem:[#allocation19 + $0x160] sm:$0xff]
        %v2172 = vld [vmem:[#allocation19 + $0x168] sm:$0xff]
        %v2173 = vld [vmem:[#allocation19 + $0x170] sm:$0xff]
        %v2174 = vld [vmem:[#allocation19 + $0x178] sm:$0xff]
        %v2175 = vld [vmem:[#allocation19 + $0x180] sm:$0xff]
        %v2176 = vld [vmem:[#allocation19 + $0x188] sm:$0xff]
        %v2177 = vld [vmem:[#allocation19 + $0x190] sm:$0xff]
        %v2178 = vld [vmem:[#allocation19 + $0x198] sm:$0xff]
        %v2179 = vld [vmem:[#allocation19 + $0x1a0] sm:$0xff]
        %v2180 = vld [vmem:[#allocation19 + $0x1a8] sm:$0xff]
        %v2181 = vld [vmem:[#allocation19 + $0x1b0] sm:$0xff]
        %v2182 = vld [vmem:[#allocation19 + $0x1b8] sm:$0xff]
        %v2183 = vld [vmem:[#allocation19 + $0x1c0] sm:$0xff]
        %v2184 = vld [vmem:[#allocation19 + $0x1c8] sm:$0xff]
        %v2185 = vld [vmem:[#allocation19 + $0x1d0] sm:$0xff]
        %v2186 = vld [vmem:[#allocation19 + $0x1d8] sm:$0xff]
        %v2187 = vld [vmem:[#allocation19 + $0x1e0] sm:$0xff]
        %v2188 = vld [vmem:[#allocation19 + $0x1e8] sm:$0xff]
        %v2189 = vld [vmem:[#allocation19 + $0x1f0] sm:$0xff]
        %v2190 = vld [vmem:[#allocation19 + $0x1f8] sm:$0xff]
        %v2191 = vld [vmem:[#allocation19 + $0x200] sm:$0xff]
        %v2192 = vld [vmem:[#allocation19 + $0x208] sm:$0xff]
        %v2193 = vld [vmem:[#allocation19 + $0x210] sm:$0xff]
        %v2194 = vld [vmem:[#allocation19 + $0x218] sm:$0xff]
        %v2195 = vld [vmem:[#allocation19 + $0x220] sm:$0xff]
        %v2196 = vld [vmem:[#allocation19 + $0x228] sm:$0xff]
        %v2197 = vld [vmem:[#allocation19 + $0x230] sm:$0xff]
        %v2198 = vld [vmem:[#allocation19 + $0x238] sm:$0xff]
        %v2199 = vld [vmem:[#allocation19 + $0x240] sm:$0xff]
        %v2200 = vld [vmem:[#allocation19 + $0x248] sm:$0xff]
        %v2201 = vld [vmem:[#allocation19 + $0x250] sm:$0xff]
        %v2202 = vld [vmem:[#allocation19 + $0x258] sm:$0xff]
        %v2203 = vld [vmem:[#allocation19 + $0x260] sm:$0xff]
        %v2204 = vld [vmem:[#allocation19 + $0x268] sm:$0xff]
        %v2205 = vld [vmem:[#allocation19 + $0x270] sm:$0xff]
        %v2206 = vld [vmem:[#allocation19 + $0x278] sm:$0xff]
        %v2207 = vld [vmem:[#allocation19 + $0x280] sm:$0xff]
        %v2208 = vld [vmem:[#allocation19 + $0x288] sm:$0xff]
        %v2209 = vld [vmem:[#allocation19 + $0x290] sm:$0xff]
        %v2210 = vld [vmem:[#allocation19 + $0x298] sm:$0xff]
        %v2211 = vld [vmem:[#allocation19 + $0x2a0] sm:$0xff]
        %v2212 = vld [vmem:[#allocation19 + $0x2a8] sm:$0xff]
        %v2213 = vld [vmem:[#allocation19 + $0x2b0] sm:$0xff]
        %v2214 = vld [vmem:[#allocation19 + $0x2b8] sm:$0xff]
        %v2215 = vld [vmem:[#allocation19 + $0x2c0] sm:$0xff]
        %v2216 = vld [vmem:[#allocation19 + $0x2c8] sm:$0xff]
        %v2217 = vld [vmem:[#allocation19 + $0x2d0] sm:$0xff]
        %v2218 = vld [vmem:[#allocation19 + $0x2d8] sm:$0xff]
        %v2219 = vld [vmem:[#allocation19 + $0x2e0] sm:$0xff]
        %v2220 = vld [vmem:[#allocation19 + $0x2e8] sm:$0xff]
        %v2221 = vld [vmem:[#allocation19 + $0x2f0] sm:$0xff]
        %v2222 = vld [vmem:[#allocation19 + $0x2f8] sm:$0xff]
        %v2223 = vld [vmem:[#allocation19 + $0x300] sm:$0xff]
        %v2224 = vld [vmem:[#allocation19 + $0x308] sm:$0xff]
        %v2225 = vld [vmem:[#allocation19 + $0x310] sm:$0xff]
        %v2226 = vld [vmem:[#allocation19 + $0x318] sm:$0xff]
        %v2227 = vld [vmem:[#allocation19 + $0x320] sm:$0xff]
        %v2228 = vld [vmem:[#allocation19 + $0x328] sm:$0xff]
        %v2229 = vld [vmem:[#allocation19 + $0x330] sm:$0xff]
        %v2230 = vld [vmem:[#allocation19 + $0x338] sm:$0xff]
        %v2231 = vld [vmem:[#allocation19 + $0x340] sm:$0xff]
        %v2232 = vld [vmem:[#allocation19 + $0x348] sm:$0xff]
        %v2233 = vld [vmem:[#allocation19 + $0x350] sm:$0xff]
        %v2234 = vld [vmem:[#allocation19 + $0x358] sm:$0xff]
        %v2235 = vld [vmem:[#allocation19 + $0x360] sm:$0xff]
        %v2236 = vld [vmem:[#allocation19 + $0x368] sm:$0xff]
        %v2237 = vld [vmem:[#allocation19 + $0x370] sm:$0xff]
        %v2238 = vld [vmem:[#allocation19 + $0x378] sm:$0xff]
        %v2239 = vld [vmem:[#allocation19 + $0x380] sm:$0xff]
        %v2240 = vld [vmem:[#allocation19 + $0x388] sm:$0xff]
        %v2241 = vld [vmem:[#allocation19 + $0x390] sm:$0xff]
        %v2242 = vld [vmem:[#allocation19 + $0x398] sm:$0xff]
        %v2243 = vld [vmem:[#allocation19 + $0x3a0] sm:$0xff]
        %v2244 = vld [vmem:[#allocation19 + $0x3a8] sm:$0xff]
        %v2245 = vld [vmem:[#allocation19 + $0x3b0] sm:$0xff]
        %v2246 = vld [vmem:[#allocation19 + $0x3b8] sm:$0xff]
        %v2247 = vld [vmem:[#allocation19 + $0x3c0] sm:$0xff]
        %v2248 = vld [vmem:[#allocation19 + $0x3c8] sm:$0xff]
        %v2249 = vld [vmem:[#allocation19 + $0x3d0] sm:$0xff]
        %v2250 = vld [vmem:[#allocation19 + $0x3d8] sm:$0xff]
        %v2251 = vld [vmem:[#allocation19 + $0x3e0] sm:$0xff]
        %v2252 = vld [vmem:[#allocation19 + $0x3e8] sm:$0xff]
        %v2253 = vld [vmem:[#allocation19 + $0x3f0] sm:$0xff]
        %v2254 = vld [vmem:[#allocation19 + $0x3f8] sm:$0xff]
        %v2255 = vld [vmem:[#allocation19 + $0x400] sm:$0xff]
        %v2256 = vld [vmem:[#allocation19 + $0x408] sm:$0xff]
        %v2257 = vld [vmem:[#allocation19 + $0x410] sm:$0xff]
        %v2258 = vld [vmem:[#allocation19 + $0x418] sm:$0xff]
        %v2259 = vld [vmem:[#allocation19 + $0x420] sm:$0xff]
        %v2260 = vld [vmem:[#allocation19 + $0x428] sm:$0xff]
        %v2261 = vld [vmem:[#allocation19 + $0x430] sm:$0xff]
        %v2262 = vld [vmem:[#allocation19 + $0x438] sm:$0xff]
        %v2263 = vld [vmem:[#allocation19 + $0x440] sm:$0xff]
        %v2264 = vld [vmem:[#allocation19 + $0x448] sm:$0xff]
        %v2265 = vld [vmem:[#allocation19 + $0x450] sm:$0xff]
        %v2266 = vld [vmem:[#allocation19 + $0x458] sm:$0xff]
        %v2267 = vld [vmem:[#allocation19 + $0x460] sm:$0xff]
        %v2268 = vld [vmem:[#allocation19 + $0x468] sm:$0xff]
        %v2269 = vld [vmem:[#allocation19 + $0x470] sm:$0xff]
        %v2270 = vld [vmem:[#allocation19 + $0x478] sm:$0xff]
        %v2271 = vld [vmem:[#allocation19 + $0x480] sm:$0xff]
        %v2272 = vld [vmem:[#allocation19 + $0x488] sm:$0xff]
        %v2273 = vld [vmem:[#allocation19 + $0x490] sm:$0xff]
        %v2274 = vld [vmem:[#allocation19 + $0x498] sm:$0xff]
        %v2275 = vld [vmem:[#allocation19 + $0x4a0] sm:$0xff]
        %v2276 = vld [vmem:[#allocation19 + $0x4a8] sm:$0xff]
        %v2277 = vld [vmem:[#allocation19 + $0x4b0] sm:$0xff]
        %v2278 = vld [vmem:[#allocation19 + $0x4b8] sm:$0xff]
        %v2279 = vld [vmem:[#allocation19 + $0x4c0] sm:$0xff]
        %v2280 = vld [vmem:[#allocation19 + $0x4c8] sm:$0xff]
        %v2281 = vld [vmem:[#allocation19 + $0x4d0] sm:$0xff]
        %v2282 = vld [vmem:[#allocation19 + $0x4d8] sm:$0xff]
        %v2283 = vld [vmem:[#allocation19 + $0x4e0] sm:$0xff]
        %v2284 = vld [vmem:[#allocation19 + $0x4e8] sm:$0xff]
        %v2285 = vld [vmem:[#allocation19 + $0x4f0] sm:$0xff]
        %v2286 = vld [vmem:[#allocation19 + $0x4f8] sm:$0xff]
        %v2287 = vld [vmem:[#allocation19 + $0x500] sm:$0xff]
        %v2288 = vld [vmem:[#allocation19 + $0x508] sm:$0xff]
        %v2289 = vld [vmem:[#allocation19 + $0x510] sm:$0xff]
        %v2290 = vld [vmem:[#allocation19 + $0x518] sm:$0xff]
        %v2291 = vld [vmem:[#allocation19 + $0x520] sm:$0xff]
        %v2292 = vld [vmem:[#allocation19 + $0x528] sm:$0xff]
        %v2293 = vld [vmem:[#allocation19 + $0x530] sm:$0xff]
        %v2294 = vld [vmem:[#allocation19 + $0x538] sm:$0xff]
        %v2295 = vld [vmem:[#allocation19 + $0x540] sm:$0xff]
        %v2296 = vld [vmem:[#allocation19 + $0x548] sm:$0xff]
        %v2297 = vld [vmem:[#allocation19 + $0x550] sm:$0xff]
        %v2298 = vld [vmem:[#allocation19 + $0x558] sm:$0xff]
        %v2299 = vld [vmem:[#allocation19 + $0x560] sm:$0xff]
        %v2300 = vld [vmem:[#allocation19 + $0x568] sm:$0xff]
        %v2301 = vld [vmem:[#allocation19 + $0x570] sm:$0xff]
        %v2302 = vld [vmem:[#allocation19 + $0x578] sm:$0xff]
        %v2303 = vld [vmem:[#allocation19 + $0x580] sm:$0xff]
        %v2304 = vld [vmem:[#allocation19 + $0x588] sm:$0xff]
        %v2305 = vld [vmem:[#allocation19 + $0x590] sm:$0xff]
        %v2306 = vld [vmem:[#allocation19 + $0x598] sm:$0xff]
        %v2307 = vld [vmem:[#allocation19 + $0x5a0] sm:$0xff]
        %v2308 = vld [vmem:[#allocation19 + $0x5a8] sm:$0xff]
        %v2309 = vld [vmem:[#allocation19 + $0x5b0] sm:$0xff]
        %v2310 = vld [vmem:[#allocation19 + $0x5b8] sm:$0xff]
        %v2311 = vld [vmem:[#allocation19 + $0x5c0] sm:$0xff]
        %v2312 = vld [vmem:[#allocation19 + $0x5c8] sm:$0xff]
        %v2313 = vld [vmem:[#allocation19 + $0x5d0] sm:$0xff]
        %v2314 = vld [vmem:[#allocation19 + $0x5d8] sm:$0xff]
        %v2315 = vld [vmem:[#allocation19 + $0x5e0] sm:$0xff]
        %v2316 = vld [vmem:[#allocation19 + $0x5e8] sm:$0xff]
        %v2317 = vld [vmem:[#allocation19 + $0x5f0] sm:$0xff]
        %v2318 = vld [vmem:[#allocation19 + $0x5f8] sm:$0xff]
        %v2319 = vld [vmem:[#allocation20] sm:$0xff]
        %v2320 = vld [vmem:[#allocation20 + $0x8] sm:$0xf]
        %v2321 = vunpack.c.l.bf16 %v2319
        %v2322 = vunpack.c.h.bf16 %v2319
        %v2323 = vunpack.c.l.bf16 %v2320
        %v2327 = vlaneseq
        %v2328 = vshrl.u32 %v2327, 7
        %v2329 = vsub.s32 0, %v2328
        %v2330 = vrot.slane %v2321, %v2329
        %v2331 = vlaneseq
        %v2332 = vshrl.u32 %v2331, 7
        %v2333 = vsub.s32 2, %v2332
        %v2334 = vrot.slane %v2321, %v2333
        %v2335 = vlaneseq
        %v2336 = vshrl.u32 %v2335, 7
        %v2337 = vsub.s32 4, %v2336
        %v2338 = vrot.slane %v2321, %v2337
        %v2339 = vlaneseq
        %v2340 = vshrl.u32 %v2339, 7
        %v2341 = vsub.s32 6, %v2340
        %v2342 = vrot.slane %v2321, %v2341
        %v2343 = vlaneseq
        %v2344 = vshrl.u32 %v2343, 7
        %v2345 = vsub.s32 0, %v2344
        %v2346 = vrot.slane %v2322, %v2345
        %v2347 = vlaneseq
        %v2348 = vshrl.u32 %v2347, 7
        %v2349 = vsub.s32 2, %v2348
        %v2350 = vrot.slane %v2322, %v2349
        %v2351 = vlaneseq
        %v2352 = vshrl.u32 %v2351, 7
        %v2353 = vsub.s32 4, %v2352
        %v2354 = vrot.slane %v2322, %v2353
        %v2355 = vlaneseq
        %v2356 = vshrl.u32 %v2355, 7
        %v2357 = vsub.s32 6, %v2356
        %v2358 = vrot.slane %v2322, %v2357
        %v2359 = vlaneseq
        %v2360 = vshrl.u32 %v2359, 7
        %v2361 = vsub.s32 0, %v2360
        %v2362 = vrot.slane %v2323, %v2361
        %v2363 = vlaneseq
        %v2364 = vshrl.u32 %v2363, 7
        %v2365 = vsub.s32 2, %v2364
        %v2366 = vrot.slane %v2323, %v2365
        %v2367 = vlaneseq
        %v2368 = vshrl.u32 %v2367, 7
        %v2369 = vsub.s32 4, %v2368
        %v2370 = vrot.slane %v2323, %v2369
        %v2371 = vlaneseq
        %v2372 = vshrl.u32 %v2371, 7
        %v2373 = vsub.s32 6, %v2372
        %v2374 = vrot.slane %v2323, %v2373
        %v2387 = vlaneseq
        %v2388 = vshrl.u32 %v2387, 7
        %v2389 = vsub.s32 0, %v2388
        %v2390 = vrot.slane %v2330, %v2389
        %v2391 = vlaneseq
        %v2392 = vshrl.u32 %v2391, 7
        %v2393 = vsub.s32 0, %v2392
        %v2394 = vrot.slane %v2334, %v2393
        %v2395 = vlaneseq
        %v2396 = vshrl.u32 %v2395, 7
        %v2397 = vsub.s32 0, %v2396
        %v2398 = vrot.slane %v2338, %v2397
        %v2399 = vlaneseq
        %v2400 = vshrl.u32 %v2399, 7
        %v2401 = vsub.s32 0, %v2400
        %v2402 = vrot.slane %v2342, %v2401
        %v2403 = vlaneseq
        %v2404 = vshrl.u32 %v2403, 7
        %v2405 = vsub.s32 0, %v2404
        %v2406 = vrot.slane %v2346, %v2405
        %v2407 = vlaneseq
        %v2408 = vshrl.u32 %v2407, 7
        %v2409 = vsub.s32 0, %v2408
        %v2410 = vrot.slane %v2350, %v2409
        %v2411 = vlaneseq
        %v2412 = vshrl.u32 %v2411, 7
        %v2413 = vsub.s32 0, %v2412
        %v2414 = vrot.slane %v2354, %v2413
        %v2415 = vlaneseq
        %v2416 = vshrl.u32 %v2415, 7
        %v2417 = vsub.s32 0, %v2416
        %v2418 = vrot.slane %v2358, %v2417
        %v2419 = vlaneseq
        %v2420 = vshrl.u32 %v2419, 7
        %v2421 = vsub.s32 0, %v2420
        %v2422 = vrot.slane %v2362, %v2421
        %v2423 = vlaneseq
        %v2424 = vshrl.u32 %v2423, 7
        %v2425 = vsub.s32 0, %v2424
        %v2426 = vrot.slane %v2366, %v2425
        %v2427 = vlaneseq
        %v2428 = vshrl.u32 %v2427, 7
        %v2429 = vsub.s32 0, %v2428
        %v2430 = vrot.slane %v2370, %v2429
        %v2431 = vlaneseq
        %v2432 = vshrl.u32 %v2431, 7
        %v2433 = vsub.s32 0, %v2432
        %v2434 = vrot.slane %v2374, %v2433
        %v2627 = vunpack.c.l.b16 %v2127
        %v2628 = vunpack.c.h.b16 %v2127
        %v2629 = vunpack.c.l.b16 %v2128
        %v2630 = vunpack.c.h.b16 %v2128
        %v2631 = vunpack.c.l.b16 %v2129
        %v2632 = vunpack.c.h.b16 %v2129
        %v2633 = vunpack.c.l.b16 %v2130
        %v2634 = vunpack.c.h.b16 %v2130
        %v2635 = vunpack.c.l.b16 %v2131
        %v2636 = vunpack.c.h.b16 %v2131
        %v2637 = vunpack.c.l.b16 %v2132
        %v2638 = vunpack.c.h.b16 %v2132
        %v2639 = vunpack.c.l.b16 %v2133
        %v2640 = vunpack.c.h.b16 %v2133
        %v2641 = vunpack.c.l.b16 %v2134
        %v2642 = vunpack.c.h.b16 %v2134
        %v2643 = vunpack.c.l.b16 %v2135
        %v2644 = vunpack.c.h.b16 %v2135
        %v2645 = vunpack.c.l.b16 %v2136
        %v2646 = vunpack.c.h.b16 %v2136
        %v2647 = vunpack.c.l.b16 %v2137
        %v2648 = vunpack.c.h.b16 %v2137
        %v2649 = vunpack.c.l.b16 %v2138
        %v2650 = vunpack.c.h.b16 %v2138
        %v2651 = vunpack.c.l.b16 %v2139
        %v2652 = vunpack.c.h.b16 %v2139
        %v2653 = vunpack.c.l.b16 %v2140
        %v2654 = vunpack.c.h.b16 %v2140
        %v2655 = vunpack.c.l.b16 %v2141
        %v2656 = vunpack.c.h.b16 %v2141
        %v2657 = vunpack.c.l.b16 %v2142
        %v2658 = vunpack.c.h.b16 %v2142
        %v2659 = vunpack.c.l.b16 %v2143
        %v2660 = vunpack.c.h.b16 %v2143
        %v2661 = vunpack.c.l.b16 %v2144
        %v2662 = vunpack.c.h.b16 %v2144
        %v2663 = vunpack.c.l.b16 %v2145
        %v2664 = vunpack.c.h.b16 %v2145
        %v2665 = vunpack.c.l.b16 %v2146
        %v2666 = vunpack.c.h.b16 %v2146
        %v2667 = vunpack.c.l.b16 %v2147
        %v2668 = vunpack.c.h.b16 %v2147
        %v2669 = vunpack.c.l.b16 %v2148
        %v2670 = vunpack.c.h.b16 %v2148
        %v2671 = vunpack.c.l.b16 %v2149
        %v2672 = vunpack.c.h.b16 %v2149
        %v2673 = vunpack.c.l.b16 %v2150
        %v2674 = vunpack.c.h.b16 %v2150
        %v2675 = vunpack.c.l.b16 %v2151
        %v2676 = vunpack.c.h.b16 %v2151
        %v2677 = vunpack.c.l.b16 %v2152
        %v2678 = vunpack.c.h.b16 %v2152
        %v2679 = vunpack.c.l.b16 %v2153
        %v2680 = vunpack.c.h.b16 %v2153
        %v2681 = vunpack.c.l.b16 %v2154
        %v2682 = vunpack.c.h.b16 %v2154
        %v2683 = vunpack.c.l.b16 %v2155
        %v2684 = vunpack.c.h.b16 %v2155
        %v2685 = vunpack.c.l.b16 %v2156
        %v2686 = vunpack.c.h.b16 %v2156
        %v2687 = vunpack.c.l.b16 %v2157
        %v2688 = vunpack.c.h.b16 %v2157
        %v2689 = vunpack.c.l.b16 %v2158
        %v2690 = vunpack.c.h.b16 %v2158
        %v2691 = vunpack.c.l.b16 %v2159
        %v2692 = vunpack.c.h.b16 %v2159
        %v2693 = vunpack.c.l.b16 %v2160
        %v2694 = vunpack.c.h.b16 %v2160
        %v2695 = vunpack.c.l.b16 %v2161
        %v2696 = vunpack.c.h.b16 %v2161
        %v2697 = vunpack.c.l.b16 %v2162
        %v2698 = vunpack.c.h.b16 %v2162
        %v2699 = vunpack.c.l.b16 %v2163
        %v2700 = vunpack.c.h.b16 %v2163
        %v2701 = vunpack.c.l.b16 %v2164
        %v2702 = vunpack.c.h.b16 %v2164
        %v2703 = vunpack.c.l.b16 %v2165
        %v2704 = vunpack.c.h.b16 %v2165
        %v2705 = vunpack.c.l.b16 %v2166
        %v2706 = vunpack.c.h.b16 %v2166
        %v2707 = vunpack.c.l.b16 %v2167
        %v2708 = vunpack.c.h.b16 %v2167
        %v2709 = vunpack.c.l.b16 %v2168
        %v2710 = vunpack.c.h.b16 %v2168
        %v2711 = vunpack.c.l.b16 %v2169
        %v2712 = vunpack.c.h.b16 %v2169
        %v2713 = vunpack.c.l.b16 %v2170
        %v2714 = vunpack.c.h.b16 %v2170
        %v2715 = vunpack.c.l.b16 %v2171
        %v2716 = vunpack.c.h.b16 %v2171
        %v2717 = vunpack.c.l.b16 %v2172
        %v2718 = vunpack.c.h.b16 %v2172
        %v2719 = vunpack.c.l.b16 %v2173
        %v2720 = vunpack.c.h.b16 %v2173
        %v2721 = vunpack.c.l.b16 %v2174
        %v2722 = vunpack.c.h.b16 %v2174
        %v2723 = vunpack.c.l.b16 %v2175
        %v2724 = vunpack.c.h.b16 %v2175
        %v2725 = vunpack.c.l.b16 %v2176
        %v2726 = vunpack.c.h.b16 %v2176
        %v2727 = vunpack.c.l.b16 %v2177
        %v2728 = vunpack.c.h.b16 %v2177
        %v2729 = vunpack.c.l.b16 %v2178
        %v2730 = vunpack.c.h.b16 %v2178
        %v2731 = vunpack.c.l.b16 %v2179
        %v2732 = vunpack.c.h.b16 %v2179
        %v2733 = vunpack.c.l.b16 %v2180
        %v2734 = vunpack.c.h.b16 %v2180
        %v2735 = vunpack.c.l.b16 %v2181
        %v2736 = vunpack.c.h.b16 %v2181
        %v2737 = vunpack.c.l.b16 %v2182
        %v2738 = vunpack.c.h.b16 %v2182
        %v2739 = vunpack.c.l.b16 %v2183
        %v2740 = vunpack.c.h.b16 %v2183
        %v2741 = vunpack.c.l.b16 %v2184
        %v2742 = vunpack.c.h.b16 %v2184
        %v2743 = vunpack.c.l.b16 %v2185
        %v2744 = vunpack.c.h.b16 %v2185
        %v2745 = vunpack.c.l.b16 %v2186
        %v2746 = vunpack.c.h.b16 %v2186
        %v2747 = vunpack.c.l.b16 %v2187
        %v2748 = vunpack.c.h.b16 %v2187
        %v2749 = vunpack.c.l.b16 %v2188
        %v2750 = vunpack.c.h.b16 %v2188
        %v2751 = vunpack.c.l.b16 %v2189
        %v2752 = vunpack.c.h.b16 %v2189
        %v2753 = vunpack.c.l.b16 %v2190
        %v2754 = vunpack.c.h.b16 %v2190
        %v2755 = vunpack.c.l.b16 %v2191
        %v2756 = vunpack.c.h.b16 %v2191
        %v2757 = vunpack.c.l.b16 %v2192
        %v2758 = vunpack.c.h.b16 %v2192
        %v2759 = vunpack.c.l.b16 %v2193
        %v2760 = vunpack.c.h.b16 %v2193
        %v2761 = vunpack.c.l.b16 %v2194
        %v2762 = vunpack.c.h.b16 %v2194
        %v2763 = vunpack.c.l.b16 %v2195
        %v2764 = vunpack.c.h.b16 %v2195
        %v2765 = vunpack.c.l.b16 %v2196
        %v2766 = vunpack.c.h.b16 %v2196
        %v2767 = vunpack.c.l.b16 %v2197
        %v2768 = vunpack.c.h.b16 %v2197
        %v2769 = vunpack.c.l.b16 %v2198
        %v2770 = vunpack.c.h.b16 %v2198
        %v2771 = vunpack.c.l.b16 %v2199
        %v2772 = vunpack.c.h.b16 %v2199
        %v2773 = vunpack.c.l.b16 %v2200
        %v2774 = vunpack.c.h.b16 %v2200
        %v2775 = vunpack.c.l.b16 %v2201
        %v2776 = vunpack.c.h.b16 %v2201
        %v2777 = vunpack.c.l.b16 %v2202
        %v2778 = vunpack.c.h.b16 %v2202
        %v2779 = vunpack.c.l.b16 %v2203
        %v2780 = vunpack.c.h.b16 %v2203
        %v2781 = vunpack.c.l.b16 %v2204
        %v2782 = vunpack.c.h.b16 %v2204
        %v2783 = vunpack.c.l.b16 %v2205
        %v2784 = vunpack.c.h.b16 %v2205
        %v2785 = vunpack.c.l.b16 %v2206
        %v2786 = vunpack.c.h.b16 %v2206
        %v2787 = vunpack.c.l.b16 %v2207
        %v2788 = vunpack.c.h.b16 %v2207
        %v2789 = vunpack.c.l.b16 %v2208
        %v2790 = vunpack.c.h.b16 %v2208
        %v2791 = vunpack.c.l.b16 %v2209
        %v2792 = vunpack.c.h.b16 %v2209
        %v2793 = vunpack.c.l.b16 %v2210
        %v2794 = vunpack.c.h.b16 %v2210
        %v2795 = vunpack.c.l.b16 %v2211
        %v2796 = vunpack.c.h.b16 %v2211
        %v2797 = vunpack.c.l.b16 %v2212
        %v2798 = vunpack.c.h.b16 %v2212
        %v2799 = vunpack.c.l.b16 %v2213
        %v2800 = vunpack.c.h.b16 %v2213
        %v2801 = vunpack.c.l.b16 %v2214
        %v2802 = vunpack.c.h.b16 %v2214
        %v2803 = vunpack.c.l.b16 %v2215
        %v2804 = vunpack.c.h.b16 %v2215
        %v2805 = vunpack.c.l.b16 %v2216
        %v2806 = vunpack.c.h.b16 %v2216
        %v2807 = vunpack.c.l.b16 %v2217
        %v2808 = vunpack.c.h.b16 %v2217
        %v2809 = vunpack.c.l.b16 %v2218
        %v2810 = vunpack.c.h.b16 %v2218
        %v2811 = vunpack.c.l.b16 %v2219
        %v2812 = vunpack.c.h.b16 %v2219
        %v2813 = vunpack.c.l.b16 %v2220
        %v2814 = vunpack.c.h.b16 %v2220
        %v2815 = vunpack.c.l.b16 %v2221
        %v2816 = vunpack.c.h.b16 %v2221
        %v2817 = vunpack.c.l.b16 %v2222
        %v2818 = vunpack.c.h.b16 %v2222
        %v2819 = vunpack.c.l.b16 %v2223
        %v2820 = vunpack.c.h.b16 %v2223
        %v2821 = vunpack.c.l.b16 %v2224
        %v2822 = vunpack.c.h.b16 %v2224
        %v2823 = vunpack.c.l.b16 %v2225
        %v2824 = vunpack.c.h.b16 %v2225
        %v2825 = vunpack.c.l.b16 %v2226
        %v2826 = vunpack.c.h.b16 %v2226
        %v2827 = vunpack.c.l.b16 %v2227
        %v2828 = vunpack.c.h.b16 %v2227
        %v2829 = vunpack.c.l.b16 %v2228
        %v2830 = vunpack.c.h.b16 %v2228
        %v2831 = vunpack.c.l.b16 %v2229
        %v2832 = vunpack.c.h.b16 %v2229
        %v2833 = vunpack.c.l.b16 %v2230
        %v2834 = vunpack.c.h.b16 %v2230
        %v2835 = vunpack.c.l.b16 %v2231
        %v2836 = vunpack.c.h.b16 %v2231
        %v2837 = vunpack.c.l.b16 %v2232
        %v2838 = vunpack.c.h.b16 %v2232
        %v2839 = vunpack.c.l.b16 %v2233
        %v2840 = vunpack.c.h.b16 %v2233
        %v2841 = vunpack.c.l.b16 %v2234
        %v2842 = vunpack.c.h.b16 %v2234
        %v2843 = vunpack.c.l.b16 %v2235
        %v2844 = vunpack.c.h.b16 %v2235
        %v2845 = vunpack.c.l.b16 %v2236
        %v2846 = vunpack.c.h.b16 %v2236
        %v2847 = vunpack.c.l.b16 %v2237
        %v2848 = vunpack.c.h.b16 %v2237
        %v2849 = vunpack.c.l.b16 %v2238
        %v2850 = vunpack.c.h.b16 %v2238
        %v2851 = vunpack.c.l.b16 %v2239
        %v2852 = vunpack.c.h.b16 %v2239
        %v2853 = vunpack.c.l.b16 %v2240
        %v2854 = vunpack.c.h.b16 %v2240
        %v2855 = vunpack.c.l.b16 %v2241
        %v2856 = vunpack.c.h.b16 %v2241
        %v2857 = vunpack.c.l.b16 %v2242
        %v2858 = vunpack.c.h.b16 %v2242
        %v2859 = vunpack.c.l.b16 %v2243
        %v2860 = vunpack.c.h.b16 %v2243
        %v2861 = vunpack.c.l.b16 %v2244
        %v2862 = vunpack.c.h.b16 %v2244
        %v2863 = vunpack.c.l.b16 %v2245
        %v2864 = vunpack.c.h.b16 %v2245
        %v2865 = vunpack.c.l.b16 %v2246
        %v2866 = vunpack.c.h.b16 %v2246
        %v2867 = vunpack.c.l.b16 %v2247
        %v2868 = vunpack.c.h.b16 %v2247
        %v2869 = vunpack.c.l.b16 %v2248
        %v2870 = vunpack.c.h.b16 %v2248
        %v2871 = vunpack.c.l.b16 %v2249
        %v2872 = vunpack.c.h.b16 %v2249
        %v2873 = vunpack.c.l.b16 %v2250
        %v2874 = vunpack.c.h.b16 %v2250
        %v2875 = vunpack.c.l.b16 %v2251
        %v2876 = vunpack.c.h.b16 %v2251
        %v2877 = vunpack.c.l.b16 %v2252
        %v2878 = vunpack.c.h.b16 %v2252
        %v2879 = vunpack.c.l.b16 %v2253
        %v2880 = vunpack.c.h.b16 %v2253
        %v2881 = vunpack.c.l.b16 %v2254
        %v2882 = vunpack.c.h.b16 %v2254
        %v2883 = vunpack.c.l.b16 %v2255
        %v2884 = vunpack.c.h.b16 %v2255
        %v2885 = vunpack.c.l.b16 %v2256
        %v2886 = vunpack.c.h.b16 %v2256
        %v2887 = vunpack.c.l.b16 %v2257
        %v2888 = vunpack.c.h.b16 %v2257
        %v2889 = vunpack.c.l.b16 %v2258
        %v2890 = vunpack.c.h.b16 %v2258
        %v2891 = vunpack.c.l.b16 %v2259
        %v2892 = vunpack.c.h.b16 %v2259
        %v2893 = vunpack.c.l.b16 %v2260
        %v2894 = vunpack.c.h.b16 %v2260
        %v2895 = vunpack.c.l.b16 %v2261
        %v2896 = vunpack.c.h.b16 %v2261
        %v2897 = vunpack.c.l.b16 %v2262
        %v2898 = vunpack.c.h.b16 %v2262
        %v2899 = vunpack.c.l.b16 %v2263
        %v2900 = vunpack.c.h.b16 %v2263
        %v2901 = vunpack.c.l.b16 %v2264
        %v2902 = vunpack.c.h.b16 %v2264
        %v2903 = vunpack.c.l.b16 %v2265
        %v2904 = vunpack.c.h.b16 %v2265
        %v2905 = vunpack.c.l.b16 %v2266
        %v2906 = vunpack.c.h.b16 %v2266
        %v2907 = vunpack.c.l.b16 %v2267
        %v2908 = vunpack.c.h.b16 %v2267
        %v2909 = vunpack.c.l.b16 %v2268
        %v2910 = vunpack.c.h.b16 %v2268
        %v2911 = vunpack.c.l.b16 %v2269
        %v2912 = vunpack.c.h.b16 %v2269
        %v2913 = vunpack.c.l.b16 %v2270
        %v2914 = vunpack.c.h.b16 %v2270
        %v2915 = vunpack.c.l.b16 %v2271
        %v2916 = vunpack.c.h.b16 %v2271
        %v2917 = vunpack.c.l.b16 %v2272
        %v2918 = vunpack.c.h.b16 %v2272
        %v2919 = vunpack.c.l.b16 %v2273
        %v2920 = vunpack.c.h.b16 %v2273
        %v2921 = vunpack.c.l.b16 %v2274
        %v2922 = vunpack.c.h.b16 %v2274
        %v2923 = vunpack.c.l.b16 %v2275
        %v2924 = vunpack.c.h.b16 %v2275
        %v2925 = vunpack.c.l.b16 %v2276
        %v2926 = vunpack.c.h.b16 %v2276
        %v2927 = vunpack.c.l.b16 %v2277
        %v2928 = vunpack.c.h.b16 %v2277
        %v2929 = vunpack.c.l.b16 %v2278
        %v2930 = vunpack.c.h.b16 %v2278
        %v2931 = vunpack.c.l.b16 %v2279
        %v2932 = vunpack.c.h.b16 %v2279
        %v2933 = vunpack.c.l.b16 %v2280
        %v2934 = vunpack.c.h.b16 %v2280
        %v2935 = vunpack.c.l.b16 %v2281
        %v2936 = vunpack.c.h.b16 %v2281
        %v2937 = vunpack.c.l.b16 %v2282
        %v2938 = vunpack.c.h.b16 %v2282
        %v2939 = vunpack.c.l.b16 %v2283
        %v2940 = vunpack.c.h.b16 %v2283
        %v2941 = vunpack.c.l.b16 %v2284
        %v2942 = vunpack.c.h.b16 %v2284
        %v2943 = vunpack.c.l.b16 %v2285
        %v2944 = vunpack.c.h.b16 %v2285
        %v2945 = vunpack.c.l.b16 %v2286
        %v2946 = vunpack.c.h.b16 %v2286
        %v2947 = vunpack.c.l.b16 %v2287
        %v2948 = vunpack.c.h.b16 %v2287
        %v2949 = vunpack.c.l.b16 %v2288
        %v2950 = vunpack.c.h.b16 %v2288
        %v2951 = vunpack.c.l.b16 %v2289
        %v2952 = vunpack.c.h.b16 %v2289
        %v2953 = vunpack.c.l.b16 %v2290
        %v2954 = vunpack.c.h.b16 %v2290
        %v2955 = vunpack.c.l.b16 %v2291
        %v2956 = vunpack.c.h.b16 %v2291
        %v2957 = vunpack.c.l.b16 %v2292
        %v2958 = vunpack.c.h.b16 %v2292
        %v2959 = vunpack.c.l.b16 %v2293
        %v2960 = vunpack.c.h.b16 %v2293
        %v2961 = vunpack.c.l.b16 %v2294
        %v2962 = vunpack.c.h.b16 %v2294
        %v2963 = vunpack.c.l.b16 %v2295
        %v2964 = vunpack.c.h.b16 %v2295
        %v2965 = vunpack.c.l.b16 %v2296
        %v2966 = vunpack.c.h.b16 %v2296
        %v2967 = vunpack.c.l.b16 %v2297
        %v2968 = vunpack.c.h.b16 %v2297
        %v2969 = vunpack.c.l.b16 %v2298
        %v2970 = vunpack.c.h.b16 %v2298
        %v2971 = vunpack.c.l.b16 %v2299
        %v2972 = vunpack.c.h.b16 %v2299
        %v2973 = vunpack.c.l.b16 %v2300
        %v2974 = vunpack.c.h.b16 %v2300
        %v2975 = vunpack.c.l.b16 %v2301
        %v2976 = vunpack.c.h.b16 %v2301
        %v2977 = vunpack.c.l.b16 %v2302
        %v2978 = vunpack.c.h.b16 %v2302
        %v2979 = vunpack.c.l.b16 %v2303
        %v2980 = vunpack.c.h.b16 %v2303
        %v2981 = vunpack.c.l.b16 %v2304
        %v2982 = vunpack.c.h.b16 %v2304
        %v2983 = vunpack.c.l.b16 %v2305
        %v2984 = vunpack.c.h.b16 %v2305
        %v2985 = vunpack.c.l.b16 %v2306
        %v2986 = vunpack.c.h.b16 %v2306
        %v2987 = vunpack.c.l.b16 %v2307
        %v2988 = vunpack.c.h.b16 %v2307
        %v2989 = vunpack.c.l.b16 %v2308
        %v2990 = vunpack.c.h.b16 %v2308
        %v2991 = vunpack.c.l.b16 %v2309
        %v2992 = vunpack.c.h.b16 %v2309
        %v2993 = vunpack.c.l.b16 %v2310
        %v2994 = vunpack.c.h.b16 %v2310
        %v2995 = vunpack.c.l.b16 %v2311
        %v2996 = vunpack.c.h.b16 %v2311
        %v2997 = vunpack.c.l.b16 %v2312
        %v2998 = vunpack.c.h.b16 %v2312
        %v2999 = vunpack.c.l.b16 %v2313
        %v3000 = vunpack.c.h.b16 %v2313
        %v3001 = vunpack.c.l.b16 %v2314
        %v3002 = vunpack.c.h.b16 %v2314
        %v3003 = vunpack.c.l.b16 %v2315
        %v3004 = vunpack.c.h.b16 %v2315
        %v3005 = vunpack.c.l.b16 %v2316
        %v3006 = vunpack.c.h.b16 %v2316
        %v3007 = vunpack.c.l.b16 %v2317
        %v3008 = vunpack.c.h.b16 %v2317
        %v3009 = vunpack.c.l.b16 %v2318
        %v3010 = vunpack.c.h.b16 %v2318
        %v3011 = vpack.c.b16 %v2639, %v2627
        %v3012 = vpack.c.b16 %v2640, %v2628
        %v3013 = vpack.c.b16 %v2641, %v2629
        %v3014 = vpack.c.b16 %v2642, %v2630
        %v3015 = vpack.c.b16 %v2643, %v2631
        %v3016 = vpack.c.b16 %v2644, %v2632
        %v3017 = vpack.c.b16 %v2645, %v2633
        %v3018 = vpack.c.b16 %v2646, %v2634
        %v3019 = vpack.c.b16 %v2647, %v2635
        %v3020 = vpack.c.b16 %v2648, %v2636
        %v3021 = vpack.c.b16 %v2649, %v2637
        %v3022 = vpack.c.b16 %v2650, %v2638
        %v3023 = vpack.c.b16 %v2663, %v2651
        %v3024 = vpack.c.b16 %v2664, %v2652
        %v3025 = vpack.c.b16 %v2665, %v2653
        %v3026 = vpack.c.b16 %v2666, %v2654
        %v3027 = vpack.c.b16 %v2667, %v2655
        %v3028 = vpack.c.b16 %v2668, %v2656
        %v3029 = vpack.c.b16 %v2669, %v2657
        %v3030 = vpack.c.b16 %v2670, %v2658
        %v3031 = vpack.c.b16 %v2671, %v2659
        %v3032 = vpack.c.b16 %v2672, %v2660
        %v3033 = vpack.c.b16 %v2673, %v2661
        %v3034 = vpack.c.b16 %v2674, %v2662
        %v3035 = vpack.c.b16 %v2687, %v2675
        %v3036 = vpack.c.b16 %v2688, %v2676
        %v3037 = vpack.c.b16 %v2689, %v2677
        %v3038 = vpack.c.b16 %v2690, %v2678
        %v3039 = vpack.c.b16 %v2691, %v2679
        %v3040 = vpack.c.b16 %v2692, %v2680
        %v3041 = vpack.c.b16 %v2693, %v2681
        %v3042 = vpack.c.b16 %v2694, %v2682
        %v3043 = vpack.c.b16 %v2695, %v2683
        %v3044 = vpack.c.b16 %v2696, %v2684
        %v3045 = vpack.c.b16 %v2697, %v2685
        %v3046 = vpack.c.b16 %v2698, %v2686
        %v3047 = vpack.c.b16 %v2711, %v2699
        %v3048 = vpack.c.b16 %v2712, %v2700
        %v3049 = vpack.c.b16 %v2713, %v2701
        %v3050 = vpack.c.b16 %v2714, %v2702
        %v3051 = vpack.c.b16 %v2715, %v2703
        %v3052 = vpack.c.b16 %v2716, %v2704
        %v3053 = vpack.c.b16 %v2717, %v2705
        %v3054 = vpack.c.b16 %v2718, %v2706
        %v3055 = vpack.c.b16 %v2719, %v2707
        %v3056 = vpack.c.b16 %v2720, %v2708
        %v3057 = vpack.c.b16 %v2721, %v2709
        %v3058 = vpack.c.b16 %v2722, %v2710
        %v3059 = vpack.c.b16 %v2735, %v2723
        %v3060 = vpack.c.b16 %v2736, %v2724
        %v3061 = vpack.c.b16 %v2737, %v2725
        %v3062 = vpack.c.b16 %v2738, %v2726
        %v3063 = vpack.c.b16 %v2739, %v2727
        %v3064 = vpack.c.b16 %v2740, %v2728
        %v3065 = vpack.c.b16 %v2741, %v2729
        %v3066 = vpack.c.b16 %v2742, %v2730
        %v3067 = vpack.c.b16 %v2743, %v2731
        %v3068 = vpack.c.b16 %v2744, %v2732
        %v3069 = vpack.c.b16 %v2745, %v2733
        %v3070 = vpack.c.b16 %v2746, %v2734
        %v3071 = vpack.c.b16 %v2759, %v2747
        %v3072 = vpack.c.b16 %v2760, %v2748
        %v3073 = vpack.c.b16 %v2761, %v2749
        %v3074 = vpack.c.b16 %v2762, %v2750
        %v3075 = vpack.c.b16 %v2763, %v2751
        %v3076 = vpack.c.b16 %v2764, %v2752
        %v3077 = vpack.c.b16 %v2765, %v2753
        %v3078 = vpack.c.b16 %v2766, %v2754
        %v3079 = vpack.c.b16 %v2767, %v2755
        %v3080 = vpack.c.b16 %v2768, %v2756
        %v3081 = vpack.c.b16 %v2769, %v2757
        %v3082 = vpack.c.b16 %v2770, %v2758
        %v3083 = vpack.c.b16 %v2783, %v2771
        %v3084 = vpack.c.b16 %v2784, %v2772
        %v3085 = vpack.c.b16 %v2785, %v2773
        %v3086 = vpack.c.b16 %v2786, %v2774
        %v3087 = vpack.c.b16 %v2787, %v2775
        %v3088 = vpack.c.b16 %v2788, %v2776
        %v3089 = vpack.c.b16 %v2789, %v2777
        %v3090 = vpack.c.b16 %v2790, %v2778
        %v3091 = vpack.c.b16 %v2791, %v2779
        %v3092 = vpack.c.b16 %v2792, %v2780
        %v3093 = vpack.c.b16 %v2793, %v2781
        %v3094 = vpack.c.b16 %v2794, %v2782
        %v3095 = vpack.c.b16 %v2807, %v2795
        %v3096 = vpack.c.b16 %v2808, %v2796
        %v3097 = vpack.c.b16 %v2809, %v2797
        %v3098 = vpack.c.b16 %v2810, %v2798
        %v3099 = vpack.c.b16 %v2811, %v2799
        %v3100 = vpack.c.b16 %v2812, %v2800
        %v3101 = vpack.c.b16 %v2813, %v2801
        %v3102 = vpack.c.b16 %v2814, %v2802
        %v3103 = vpack.c.b16 %v2815, %v2803
        %v3104 = vpack.c.b16 %v2816, %v2804
        %v3105 = vpack.c.b16 %v2817, %v2805
        %v3106 = vpack.c.b16 %v2818, %v2806
        %v3107 = vpack.c.b16 %v2831, %v2819
        %v3108 = vpack.c.b16 %v2832, %v2820
        %v3109 = vpack.c.b16 %v2833, %v2821
        %v3110 = vpack.c.b16 %v2834, %v2822
        %v3111 = vpack.c.b16 %v2835, %v2823
        %v3112 = vpack.c.b16 %v2836, %v2824
        %v3113 = vpack.c.b16 %v2837, %v2825
        %v3114 = vpack.c.b16 %v2838, %v2826
        %v3115 = vpack.c.b16 %v2839, %v2827
        %v3116 = vpack.c.b16 %v2840, %v2828
        %v3117 = vpack.c.b16 %v2841, %v2829
        %v3118 = vpack.c.b16 %v2842, %v2830
        %v3119 = vpack.c.b16 %v2855, %v2843
        %v3120 = vpack.c.b16 %v2856, %v2844
        %v3121 = vpack.c.b16 %v2857, %v2845
        %v3122 = vpack.c.b16 %v2858, %v2846
        %v3123 = vpack.c.b16 %v2859, %v2847
        %v3124 = vpack.c.b16 %v2860, %v2848
        %v3125 = vpack.c.b16 %v2861, %v2849
        %v3126 = vpack.c.b16 %v2862, %v2850
        %v3127 = vpack.c.b16 %v2863, %v2851
        %v3128 = vpack.c.b16 %v2864, %v2852
        %v3129 = vpack.c.b16 %v2865, %v2853
        %v3130 = vpack.c.b16 %v2866, %v2854
        %v3131 = vpack.c.b16 %v2879, %v2867
        %v3132 = vpack.c.b16 %v2880, %v2868
        %v3133 = vpack.c.b16 %v2881, %v2869
        %v3134 = vpack.c.b16 %v2882, %v2870
        %v3135 = vpack.c.b16 %v2883, %v2871
        %v3136 = vpack.c.b16 %v2884, %v2872
        %v3137 = vpack.c.b16 %v2885, %v2873
        %v3138 = vpack.c.b16 %v2886, %v2874
        %v3139 = vpack.c.b16 %v2887, %v2875
        %v3140 = vpack.c.b16 %v2888, %v2876
        %v3141 = vpack.c.b16 %v2889, %v2877
        %v3142 = vpack.c.b16 %v2890, %v2878
        %v3143 = vpack.c.b16 %v2903, %v2891
        %v3144 = vpack.c.b16 %v2904, %v2892
        %v3145 = vpack.c.b16 %v2905, %v2893
        %v3146 = vpack.c.b16 %v2906, %v2894
        %v3147 = vpack.c.b16 %v2907, %v2895
        %v3148 = vpack.c.b16 %v2908, %v2896
        %v3149 = vpack.c.b16 %v2909, %v2897
        %v3150 = vpack.c.b16 %v2910, %v2898
        %v3151 = vpack.c.b16 %v2911, %v2899
        %v3152 = vpack.c.b16 %v2912, %v2900
        %v3153 = vpack.c.b16 %v2913, %v2901
        %v3154 = vpack.c.b16 %v2914, %v2902
        %v3155 = vpack.c.b16 %v2927, %v2915
        %v3156 = vpack.c.b16 %v2928, %v2916
        %v3157 = vpack.c.b16 %v2929, %v2917
        %v3158 = vpack.c.b16 %v2930, %v2918
        %v3159 = vpack.c.b16 %v2931, %v2919
        %v3160 = vpack.c.b16 %v2932, %v2920
        %v3161 = vpack.c.b16 %v2933, %v2921
        %v3162 = vpack.c.b16 %v2934, %v2922
        %v3163 = vpack.c.b16 %v2935, %v2923
        %v3164 = vpack.c.b16 %v2936, %v2924
        %v3165 = vpack.c.b16 %v2937, %v2925
        %v3166 = vpack.c.b16 %v2938, %v2926
        %v3167 = vpack.c.b16 %v2951, %v2939
        %v3168 = vpack.c.b16 %v2952, %v2940
        %v3169 = vpack.c.b16 %v2953, %v2941
        %v3170 = vpack.c.b16 %v2954, %v2942
        %v3171 = vpack.c.b16 %v2955, %v2943
        %v3172 = vpack.c.b16 %v2956, %v2944
        %v3173 = vpack.c.b16 %v2957, %v2945
        %v3174 = vpack.c.b16 %v2958, %v2946
        %v3175 = vpack.c.b16 %v2959, %v2947
        %v3176 = vpack.c.b16 %v2960, %v2948
        %v3177 = vpack.c.b16 %v2961, %v2949
        %v3178 = vpack.c.b16 %v2962, %v2950
        %v3179 = vpack.c.b16 %v2975, %v2963
        %v3180 = vpack.c.b16 %v2976, %v2964
        %v3181 = vpack.c.b16 %v2977, %v2965
        %v3182 = vpack.c.b16 %v2978, %v2966
        %v3183 = vpack.c.b16 %v2979, %v2967
        %v3184 = vpack.c.b16 %v2980, %v2968
        %v3185 = vpack.c.b16 %v2981, %v2969
        %v3186 = vpack.c.b16 %v2982, %v2970
        %v3187 = vpack.c.b16 %v2983, %v2971
        %v3188 = vpack.c.b16 %v2984, %v2972
        %v3189 = vpack.c.b16 %v2985, %v2973
        %v3190 = vpack.c.b16 %v2986, %v2974
        %v3191 = vpack.c.b16 %v2999, %v2987
        %v3192 = vpack.c.b16 %v3000, %v2988
        %v3193 = vpack.c.b16 %v3001, %v2989
        %v3194 = vpack.c.b16 %v3002, %v2990
        %v3195 = vpack.c.b16 %v3003, %v2991
        %v3196 = vpack.c.b16 %v3004, %v2992
        %v3197 = vpack.c.b16 %v3005, %v2993
        %v3198 = vpack.c.b16 %v3006, %v2994
        %v3199 = vpack.c.b16 %v3007, %v2995
        %v3200 = vpack.c.b16 %v3008, %v2996
        %v3201 = vpack.c.b16 %v3009, %v2997
        %v3202 = vpack.c.b16 %v3010, %v2998
        %3395 = vmatprep.subr.bf16.mxu0 %v3096
        %3396 = vmatpush1.bf16.msra.mxu0 %v3095
        %3397 = vmatprep.subr.bf16.mxu0 %v3084
        %3398 = vmatpush1.bf16.msra.mxu0 %v3083
        %3399 = vmatprep.subr.bf16.mxu0 %v3072
        %3400 = vmatpush1.bf16.msra.mxu0 %v3071
        %3401 = vmatprep.subr.bf16.mxu0 %v3060
        %3402 = vmatpush1.bf16.msra.mxu0 %v3059
        %3403 = vmatprep.subr.bf16.mxu0 %v3048
        %3404 = vmatpush1.bf16.msra.mxu0 %v3047
        %3405 = vmatprep.subr.bf16.mxu0 %v3036
        %3406 = vmatpush1.bf16.msra.mxu0 %v3035
        %3407 = vmatprep.subr.bf16.mxu0 %v3024
        %3408 = vmatpush1.bf16.msra.mxu0 %v3023
        %3409 = vmatprep.subr.bf16.mxu0 %v3012
        %3410 = vmatpush1.bf16.msra.mxu0 %v3011
        %3411 = vmatprep.subr.bf16.mxu0 %v3192
        %3412 = vmatpush2.bf16.msra.mxu0 %v3191
        %3413 = vmatprep.subr.bf16.mxu0 %v3180
        %3414 = vmatpush2.bf16.msra.mxu0 %v3179
        %3415 = vmatprep.subr.bf16.mxu0 %v3168
        %3416 = vmatpush2.bf16.msra.mxu0 %v3167
        %3417 = vmatprep.subr.bf16.mxu0 %v3156
        %3418 = vmatpush2.bf16.msra.mxu0 %v3155
        %3419 = vmatprep.subr.bf16.mxu0 %v3144
        %3420 = vmatpush2.bf16.msra.mxu0 %v3143
        %3421 = vmatprep.subr.bf16.mxu0 %v3132
        %3422 = vmatpush2.bf16.msra.mxu0 %v3131
        %3423 = vmatprep.subr.bf16.mxu0 %v3120
        %3424 = vmatpush2.bf16.msra.mxu0 %v3119
        %3425 = vmatprep.subr.bf16.mxu0 %v3108
        %3426 = vmatpush2.bf16.msra.mxu0 %v3107
        %3427 = vmatprep.mubr.bf16.mxu0 %v2126
        %3428 = vmatmul.mubr.bf16.gmra.mxu0 %v2125
        %v3429 = vpop.f32.mrf.mxu0
        %v3430 = vadd.f32 %v2390, %v3429
        %v3431 = vpop.f32.mrf.mxu0
        %v3432 = vadd.f32 %v2394, %v3431
        %v3433 = vpop.f32.mrf.mxu0
        %v3434 = vadd.f32 %v2390, %v3433
        %v3435 = vpop.f32.mrf.mxu0
        %v3436 = vadd.f32 %v2394, %v3435
        %3437 = vdwg.mxu0
        %3438 = vmatprep.subr.bf16.mxu0 %v3098
        %3439 = vmatpush1.bf16.msra.mxu0 %v3097
        %3440 = vmatprep.subr.bf16.mxu0 %v3086
        %3441 = vmatpush1.bf16.msra.mxu0 %v3085
        %3442 = vmatprep.subr.bf16.mxu0 %v3074
        %3443 = vmatpush1.bf16.msra.mxu0 %v3073
        %3444 = vmatprep.subr.bf16.mxu0 %v3062
        %3445 = vmatpush1.bf16.msra.mxu0 %v3061
        %3446 = vmatprep.subr.bf16.mxu0 %v3050
        %3447 = vmatpush1.bf16.msra.mxu0 %v3049
        %3448 = vmatprep.subr.bf16.mxu0 %v3038
        %3449 = vmatpush1.bf16.msra.mxu0 %v3037
        %3450 = vmatprep.subr.bf16.mxu0 %v3026
        %3451 = vmatpush1.bf16.msra.mxu0 %v3025
        %3452 = vmatprep.subr.bf16.mxu0 %v3014
        %3453 = vmatpush1.bf16.msra.mxu0 %v3013
        %3454 = vmatprep.subr.bf16.mxu0 %v3194
        %3455 = vmatpush2.bf16.msra.mxu0 %v3193
        %3456 = vmatprep.subr.bf16.mxu0 %v3182
        %3457 = vmatpush2.bf16.msra.mxu0 %v3181
        %3458 = vmatprep.subr.bf16.mxu0 %v3170
        %3459 = vmatpush2.bf16.msra.mxu0 %v3169
        %3460 = vmatprep.subr.bf16.mxu0 %v3158
        %3461 = vmatpush2.bf16.msra.mxu0 %v3157
        %3462 = vmatprep.subr.bf16.mxu0 %v3146
        %3463 = vmatpush2.bf16.msra.mxu0 %v3145
        %3464 = vmatprep.subr.bf16.mxu0 %v3134
        %3465 = vmatpush2.bf16.msra.mxu0 %v3133
        %3466 = vmatprep.subr.bf16.mxu0 %v3122
        %3467 = vmatpush2.bf16.msra.mxu0 %v3121
        %3468 = vmatprep.subr.bf16.mxu0 %v3110
        %3469 = vmatpush2.bf16.msra.mxu0 %v3109
        %3470 = vmatprep.mubr.bf16.mxu0 %v2126
        %3471 = vmatmul.mubr.bf16.gmra.mxu0 %v2125
        %v3472 = vpop.f32.mrf.mxu0
        %v3473 = vadd.f32 %v2398, %v3472
        %v3474 = vpop.f32.mrf.mxu0
        %v3475 = vadd.f32 %v2402, %v3474
        %v3476 = vpop.f32.mrf.mxu0
        %v3477 = vadd.f32 %v2398, %v3476
        %v3478 = vpop.f32.mrf.mxu0
        %v3479 = vadd.f32 %v2402, %v3478
        %3480 = vdwg.mxu0
        %3481 = vmatprep.subr.bf16.mxu0 %v3100
        %3482 = vmatpush1.bf16.msra.mxu0 %v3099
        %3483 = vmatprep.subr.bf16.mxu0 %v3088
        %3484 = vmatpush1.bf16.msra.mxu0 %v3087
        %3485 = vmatprep.subr.bf16.mxu0 %v3076
        %3486 = vmatpush1.bf16.msra.mxu0 %v3075
        %3487 = vmatprep.subr.bf16.mxu0 %v3064
        %3488 = vmatpush1.bf16.msra.mxu0 %v3063
        %3489 = vmatprep.subr.bf16.mxu0 %v3052
        %3490 = vmatpush1.bf16.msra.mxu0 %v3051
        %3491 = vmatprep.subr.bf16.mxu0 %v3040
        %3492 = vmatpush1.bf16.msra.mxu0 %v3039
        %3493 = vmatprep.subr.bf16.mxu0 %v3028
        %3494 = vmatpush1.bf16.msra.mxu0 %v3027
        %3495 = vmatprep.subr.bf16.mxu0 %v3016
        %3496 = vmatpush1.bf16.msra.mxu0 %v3015
        %3497 = vmatprep.subr.bf16.mxu0 %v3196
        %3498 = vmatpush2.bf16.msra.mxu0 %v3195
        %3499 = vmatprep.subr.bf16.mxu0 %v3184
        %3500 = vmatpush2.bf16.msra.mxu0 %v3183
        %3501 = vmatprep.subr.bf16.mxu0 %v3172
        %3502 = vmatpush2.bf16.msra.mxu0 %v3171
        %3503 = vmatprep.subr.bf16.mxu0 %v3160
        %3504 = vmatpush2.bf16.msra.mxu0 %v3159
        %3505 = vmatprep.subr.bf16.mxu0 %v3148
        %3506 = vmatpush2.bf16.msra.mxu0 %v3147
        %3507 = vmatprep.subr.bf16.mxu0 %v3136
        %3508 = vmatpush2.bf16.msra.mxu0 %v3135
        %3509 = vmatprep.subr.bf16.mxu0 %v3124
        %3510 = vmatpush2.bf16.msra.mxu0 %v3123
        %3511 = vmatprep.subr.bf16.mxu0 %v3112
        %3512 = vmatpush2.bf16.msra.mxu0 %v3111
        %3513 = vmatprep.mubr.bf16.mxu0 %v2126
        %3514 = vmatmul.mubr.bf16.gmra.mxu0 %v2125
        %v3515 = vpop.f32.mrf.mxu0
        %v3516 = vadd.f32 %v2406, %v3515
        %v3517 = vpop.f32.mrf.mxu0
        %v3518 = vadd.f32 %v2410, %v3517
        %v3519 = vpop.f32.mrf.mxu0
        %v3520 = vadd.f32 %v2406, %v3519
        %v3521 = vpop.f32.mrf.mxu0
        %v3522 = vadd.f32 %v2410, %v3521
        %3523 = vdwg.mxu0
        %3524 = vmatprep.subr.bf16.mxu0 %v3102
        %3525 = vmatpush1.bf16.msra.mxu0 %v3101
        %3526 = vmatprep.subr.bf16.mxu0 %v3090
        %3527 = vmatpush1.bf16.msra.mxu0 %v3089
        %3528 = vmatprep.subr.bf16.mxu0 %v3078
        %3529 = vmatpush1.bf16.msra.mxu0 %v3077
        %3530 = vmatprep.subr.bf16.mxu0 %v3066
        %3531 = vmatpush1.bf16.msra.mxu0 %v3065
        %3532 = vmatprep.subr.bf16.mxu0 %v3054
        %3533 = vmatpush1.bf16.msra.mxu0 %v3053
        %3534 = vmatprep.subr.bf16.mxu0 %v3042
        %3535 = vmatpush1.bf16.msra.mxu0 %v3041
        %3536 = vmatprep.subr.bf16.mxu0 %v3030
        %3537 = vmatpush1.bf16.msra.mxu0 %v3029
        %3538 = vmatprep.subr.bf16.mxu0 %v3018
        %3539 = vmatpush1.bf16.msra.mxu0 %v3017
        %3540 = vmatprep.subr.bf16.mxu0 %v3198
        %3541 = vmatpush2.bf16.msra.mxu0 %v3197
        %3542 = vmatprep.subr.bf16.mxu0 %v3186
        %3543 = vmatpush2.bf16.msra.mxu0 %v3185
        %3544 = vmatprep.subr.bf16.mxu0 %v3174
        %3545 = vmatpush2.bf16.msra.mxu0 %v3173
        %3546 = vmatprep.subr.bf16.mxu0 %v3162
        %3547 = vmatpush2.bf16.msra.mxu0 %v3161
        %3548 = vmatprep.subr.bf16.mxu0 %v3150
        %3549 = vmatpush2.bf16.msra.mxu0 %v3149
        %3550 = vmatprep.subr.bf16.mxu0 %v3138
        %3551 = vmatpush2.bf16.msra.mxu0 %v3137
        %3552 = vmatprep.subr.bf16.mxu0 %v3126
        %3553 = vmatpush2.bf16.msra.mxu0 %v3125
        %3554 = vmatprep.subr.bf16.mxu0 %v3114
        %3555 = vmatpush2.bf16.msra.mxu0 %v3113
        %3556 = vmatprep.mubr.bf16.mxu0 %v2126
        %3557 = vmatmul.mubr.bf16.gmra.mxu0 %v2125
        %v3558 = vpop.f32.mrf.mxu0
        %v3559 = vadd.f32 %v2414, %v3558
        %v3560 = vpop.f32.mrf.mxu0
        %v3561 = vadd.f32 %v2418, %v3560
        %v3562 = vpop.f32.mrf.mxu0
        %v3563 = vadd.f32 %v2414, %v3562
        %v3564 = vpop.f32.mrf.mxu0
        %v3565 = vadd.f32 %v2418, %v3564
        %3566 = vdwg.mxu0
        %3567 = vmatprep.subr.bf16.mxu0 %v3104
        %3568 = vmatpush1.bf16.msra.mxu0 %v3103
        %3569 = vmatprep.subr.bf16.mxu0 %v3092
        %3570 = vmatpush1.bf16.msra.mxu0 %v3091
        %3571 = vmatprep.subr.bf16.mxu0 %v3080
        %3572 = vmatpush1.bf16.msra.mxu0 %v3079
        %3573 = vmatprep.subr.bf16.mxu0 %v3068
        %3574 = vmatpush1.bf16.msra.mxu0 %v3067
        %3575 = vmatprep.subr.bf16.mxu0 %v3056
        %3576 = vmatpush1.bf16.msra.mxu0 %v3055
        %3577 = vmatprep.subr.bf16.mxu0 %v3044
        %3578 = vmatpush1.bf16.msra.mxu0 %v3043
        %3579 = vmatprep.subr.bf16.mxu0 %v3032
        %3580 = vmatpush1.bf16.msra.mxu0 %v3031
        %3581 = vmatprep.subr.bf16.mxu0 %v3020
        %3582 = vmatpush1.bf16.msra.mxu0 %v3019
        %3583 = vmatprep.subr.bf16.mxu0 %v3200
        %3584 = vmatpush2.bf16.msra.mxu0 %v3199
        %3585 = vmatprep.subr.bf16.mxu0 %v3188
        %3586 = vmatpush2.bf16.msra.mxu0 %v3187
        %3587 = vmatprep.subr.bf16.mxu0 %v3176
        %3588 = vmatpush2.bf16.msra.mxu0 %v3175
        %3589 = vmatprep.subr.bf16.mxu0 %v3164
        %3590 = vmatpush2.bf16.msra.mxu0 %v3163
        %3591 = vmatprep.subr.bf16.mxu0 %v3152
        %3592 = vmatpush2.bf16.msra.mxu0 %v3151
        %3593 = vmatprep.subr.bf16.mxu0 %v3140
        %3594 = vmatpush2.bf16.msra.mxu0 %v3139
        %3595 = vmatprep.subr.bf16.mxu0 %v3128
        %3596 = vmatpush2.bf16.msra.mxu0 %v3127
        %3597 = vmatprep.subr.bf16.mxu0 %v3116
        %3598 = vmatpush2.bf16.msra.mxu0 %v3115
        %3599 = vmatprep.mubr.bf16.mxu0 %v2126
        %3600 = vmatmul.mubr.bf16.gmra.mxu0 %v2125
        %v3601 = vpop.f32.mrf.mxu0
        %v3602 = vadd.f32 %v2422, %v3601
        %v3603 = vpop.f32.mrf.mxu0
        %v3604 = vadd.f32 %v2426, %v3603
        %v3605 = vpop.f32.mrf.mxu0
        %v3606 = vadd.f32 %v2422, %v3605
        %v3607 = vpop.f32.mrf.mxu0
        %v3608 = vadd.f32 %v2426, %v3607
        %3609 = vdwg.mxu0
        %3610 = vmatprep.subr.bf16.mxu0 %v3106
        %3611 = vmatpush1.bf16.msra.mxu0 %v3105
        %3612 = vmatprep.subr.bf16.mxu0 %v3094
        %3613 = vmatpush1.bf16.msra.mxu0 %v3093
        %3614 = vmatprep.subr.bf16.mxu0 %v3082
        %3615 = vmatpush1.bf16.msra.mxu0 %v3081
        %3616 = vmatprep.subr.bf16.mxu0 %v3070
        %3617 = vmatpush1.bf16.msra.mxu0 %v3069
        %3618 = vmatprep.subr.bf16.mxu0 %v3058
        %3619 = vmatpush1.bf16.msra.mxu0 %v3057
        %3620 = vmatprep.subr.bf16.mxu0 %v3046
        %3621 = vmatpush1.bf16.msra.mxu0 %v3045
        %3622 = vmatprep.subr.bf16.mxu0 %v3034
        %3623 = vmatpush1.bf16.msra.mxu0 %v3033
        %3624 = vmatprep.subr.bf16.mxu0 %v3022
        %3625 = vmatpush1.bf16.msra.mxu0 %v3021
        %3626 = vmatprep.subr.bf16.mxu0 %v3202
        %3627 = vmatpush2.bf16.msra.mxu0 %v3201
        %3628 = vmatprep.subr.bf16.mxu0 %v3190
        %3629 = vmatpush2.bf16.msra.mxu0 %v3189
        %3630 = vmatprep.subr.bf16.mxu0 %v3178
        %3631 = vmatpush2.bf16.msra.mxu0 %v3177
        %3632 = vmatprep.subr.bf16.mxu0 %v3166
        %3633 = vmatpush2.bf16.msra.mxu0 %v3165
        %3634 = vmatprep.subr.bf16.mxu0 %v3154
        %3635 = vmatpush2.bf16.msra.mxu0 %v3153
        %3636 = vmatprep.subr.bf16.mxu0 %v3142
        %3637 = vmatpush2.bf16.msra.mxu0 %v3141
        %3638 = vmatprep.subr.bf16.mxu0 %v3130
        %3639 = vmatpush2.bf16.msra.mxu0 %v3129
        %3640 = vmatprep.subr.bf16.mxu0 %v3118
        %3641 = vmatpush2.bf16.msra.mxu0 %v3117
        %3642 = vmatprep.mubr.bf16.mxu0 %v2126
        %3643 = vmatmul.mubr.bf16.gmra.mxu0 %v2125
        %v3644 = vpop.f32.mrf.mxu0
        %v3645 = vadd.f32 %v2430, %v3644
        %v3646 = vpop.f32.mrf.mxu0
        %v3647 = vadd.f32 %v2434, %v3646
        %v3648 = vpop.f32.mrf.mxu0
        %v3649 = vadd.f32 %v2430, %v3648
        %v3650 = vpop.f32.mrf.mxu0
        %v3651 = vadd.f32 %v2434, %v3650
        %3652 = vdwg.mxu0
        %v3653 = vxor.u32 %v3430, 2147483648
        %v3654 = vxor.u32 %v3432, 2147483648
        %v3655 = vxor.u32 %v3473, 2147483648
        %v3656 = vxor.u32 %v3475, 2147483648
        %v3657 = vxor.u32 %v3516, 2147483648
        %v3658 = vxor.u32 %v3518, 2147483648
        %v3659 = vxor.u32 %v3434, 2147483648
        %v3660 = vxor.u32 %v3436, 2147483648
        %v3661 = vxor.u32 %v3477, 2147483648
        %v3662 = vxor.u32 %v3479, 2147483648
        %v3663 = vxor.u32 %v3520, 2147483648
        %v3664 = vxor.u32 %v3522, 2147483648
        %v3665 = vmul.f32 %v3653, 1.442695
        %v3666 = vpow.pop %v3665
        %v3667 = vmul.f32 %v3654, 1.442695
        %v3668 = vpow.pop %v3667
        %v3669 = vmul.f32 %v3655, 1.442695
        %v3670 = vpow.pop %v3669
        %v3671 = vmul.f32 %v3656, 1.442695
        %v3672 = vpow.pop %v3671
        %v3673 = vmul.f32 %v3657, 1.442695
        %v3674 = vpow.pop %v3673
        %v3675 = vmul.f32 %v3658, 1.442695
        %v3676 = vpow.pop %v3675
        %v3677 = vmul.f32 %v3659, 1.442695
        %v3678 = vpow.pop %v3677
        %v3679 = vmul.f32 %v3660, 1.442695
        %v3680 = vpow.pop %v3679
        %v3681 = vmul.f32 %v3661, 1.442695
        %v3682 = vpow.pop %v3681
        %v3683 = vmul.f32 %v3662, 1.442695
        %v3684 = vpow.pop %v3683
        %v3685 = vmul.f32 %v3663, 1.442695
        %v3686 = vpow.pop %v3685
        %v3687 = vmul.f32 %v3664, 1.442695
        %v3688 = vpow.pop %v3687
        %v3689 = vadd.f32 %v3666, 1.0
        %v3690 = vadd.f32 %v3668, 1.0
        %v3691 = vadd.f32 %v3670, 1.0
        %v3692 = vadd.f32 %v3672, 1.0
        %v3693 = vadd.f32 %v3674, 1.0
        %v3694 = vadd.f32 %v3676, 1.0
        %v3695 = vadd.f32 %v3678, 1.0
        %v3696 = vadd.f32 %v3680, 1.0
        %v3697 = vadd.f32 %v3682, 1.0
        %v3698 = vadd.f32 %v3684, 1.0
        %v3699 = vadd.f32 %v3686, 1.0
        %v3700 = vadd.f32 %v3688, 1.0
        %v3701 = vrcp.pop %v3689
        %v3702 = vmul.f32 1.0, %v3701
        %v3703 = vrcp.pop %v3690
        %v3704 = vmul.f32 1.0, %v3703
        %v3705 = vrcp.pop %v3691
        %v3706 = vmul.f32 1.0, %v3705
        %v3707 = vrcp.pop %v3692
        %v3708 = vmul.f32 1.0, %v3707
        %v3709 = vrcp.pop %v3693
        %v3710 = vmul.f32 1.0, %v3709
        %v3711 = vrcp.pop %v3694
        %v3712 = vmul.f32 1.0, %v3711
        %v3713 = vrcp.pop %v3695
        %v3714 = vmul.f32 1.0, %v3713
        %v3715 = vrcp.pop %v3696
        %v3716 = vmul.f32 1.0, %v3715
        %v3717 = vrcp.pop %v3697
        %v3718 = vmul.f32 1.0, %v3717
        %v3719 = vrcp.pop %v3698
        %v3720 = vmul.f32 1.0, %v3719
        %v3721 = vrcp.pop %v3699
        %v3722 = vmul.f32 1.0, %v3721
        %v3723 = vrcp.pop %v3700
        %v3724 = vmul.f32 1.0, %v3723
        %v3725 = vmul.f32 %v3430, %v3702
        %v3726 = vmul.f32 %v3432, %v3704
        %v3727 = vmul.f32 %v3473, %v3706
        %v3728 = vmul.f32 %v3475, %v3708
        %v3729 = vmul.f32 %v3516, %v3710
        %v3730 = vmul.f32 %v3518, %v3712
        %v3731 = vmul.f32 %v3434, %v3714
        %v3732 = vmul.f32 %v3436, %v3716
        %v3733 = vmul.f32 %v3477, %v3718
        %v3734 = vmul.f32 %v3479, %v3720
        %v3735 = vmul.f32 %v3520, %v3722
        %v3736 = vmul.f32 %v3522, %v3724
        %v3737 = vmul.f32 %v3725, %v3559
        %v3738 = vmul.f32 %v3726, %v3561
        %v3739 = vmul.f32 %v3727, %v3602
        %v3740 = vmul.f32 %v3728, %v3604
        %v3741 = vmul.f32 %v3729, %v3645
        %v3742 = vmul.f32 %v3730, %v3647
        %v3743 = vmul.f32 %v3731, %v3563
        %v3744 = vmul.f32 %v3732, %v3565
        %v3745 = vmul.f32 %v3733, %v3606
        %v3746 = vmul.f32 %v3734, %v3608
        %v3747 = vmul.f32 %v3735, %v3649
        %v3748 = vmul.f32 %v3736, %v3651
        %v3749 = vpack.c.bf16 %v3743, %v3737
        %v3750 = vpack.c.bf16 %v3744, %v3738
        %v3751 = vpack.c.bf16 %v3745, %v3739
        %v3752 = vpack.c.bf16 %v3746, %v3740
        %v3753 = vpack.c.bf16 %v3747, %v3741
        %v3754 = vpack.c.bf16 %v3748, %v3742
        %v3755 = vld [vmem:[#allocation22] sm:$0xff]
        %v3756 = vld [vmem:[#allocation22 + $0x8] sm:$0xff]
        %v3757 = vld [vmem:[#allocation22 + $0x10] sm:$0xff]
        %v3758 = vld [vmem:[#allocation22 + $0x18] sm:$0xff]
        %v3759 = vld [vmem:[#allocation22 + $0x20] sm:$0xff]
        %v3760 = vld [vmem:[#allocation22 + $0x28] sm:$0xff]
        %v3761 = vld [vmem:[#allocation22 + $0x30] sm:$0xff]
        %v3762 = vld [vmem:[#allocation22 + $0x38] sm:$0xff]
        %v3763 = vld [vmem:[#allocation22 + $0x40] sm:$0xff]
        %v3764 = vld [vmem:[#allocation22 + $0x48] sm:$0xff]
        %v3765 = vld [vmem:[#allocation22 + $0x50] sm:$0xff]
        %v3766 = vld [vmem:[#allocation22 + $0x58] sm:$0xff]
        %v3767 = vld [vmem:[#allocation22 + $0x60] sm:$0xff]
        %v3768 = vld [vmem:[#allocation22 + $0x68] sm:$0xff]
        %v3769 = vld [vmem:[#allocation22 + $0x70] sm:$0xff]
        %v3770 = vld [vmem:[#allocation22 + $0x78] sm:$0xff]
        %v3771 = vld [vmem:[#allocation22 + $0x80] sm:$0xff]
        %v3772 = vld [vmem:[#allocation22 + $0x88] sm:$0xff]
        %v3773 = vld [vmem:[#allocation22 + $0x90] sm:$0xff]
        %v3774 = vld [vmem:[#allocation22 + $0x98] sm:$0xff]
        %v3775 = vld [vmem:[#allocation22 + $0xa0] sm:$0xff]
        %v3776 = vld [vmem:[#allocation22 + $0xa8] sm:$0xff]
        %v3777 = vld [vmem:[#allocation22 + $0xb0] sm:$0xff]
        %v3778 = vld [vmem:[#allocation22 + $0xb8] sm:$0xff]
        %v3779 = vld [vmem:[#allocation22 + $0xc0] sm:$0xff]
        %v3780 = vld [vmem:[#allocation22 + $0xc8] sm:$0xff]
        %v3781 = vld [vmem:[#allocation22 + $0xd0] sm:$0xff]
        %v3782 = vld [vmem:[#allocation22 + $0xd8] sm:$0xff]
        %v3783 = vld [vmem:[#allocation22 + $0xe0] sm:$0xff]
        %v3784 = vld [vmem:[#allocation22 + $0xe8] sm:$0xff]
        %v3785 = vld [vmem:[#allocation22 + $0xf0] sm:$0xff]
        %v3786 = vld [vmem:[#allocation22 + $0xf8] sm:$0xff]
        %v3787 = vld [vmem:[#allocation22 + $0x100] sm:$0xff]
        %v3788 = vld [vmem:[#allocation22 + $0x108] sm:$0xff]
        %v3789 = vld [vmem:[#allocation22 + $0x110] sm:$0xff]
        %v3790 = vld [vmem:[#allocation22 + $0x118] sm:$0xff]
        %v3791 = vld [vmem:[#allocation22 + $0x120] sm:$0xff]
        %v3792 = vld [vmem:[#allocation22 + $0x128] sm:$0xff]
        %v3793 = vld [vmem:[#allocation22 + $0x130] sm:$0xff]
        %v3794 = vld [vmem:[#allocation22 + $0x138] sm:$0xff]
        %v3795 = vld [vmem:[#allocation22 + $0x140] sm:$0xff]
        %v3796 = vld [vmem:[#allocation22 + $0x148] sm:$0xff]
        %v3797 = vld [vmem:[#allocation22 + $0x150] sm:$0xff]
        %v3798 = vld [vmem:[#allocation22 + $0x158] sm:$0xff]
        %v3799 = vld [vmem:[#allocation22 + $0x160] sm:$0xff]
        %v3800 = vld [vmem:[#allocation22 + $0x168] sm:$0xff]
        %v3801 = vld [vmem:[#allocation22 + $0x170] sm:$0xff]
        %v3802 = vld [vmem:[#allocation22 + $0x178] sm:$0xff]
        %v3803 = vld [vmem:[#allocation22 + $0x180] sm:$0xff]
        %v3804 = vld [vmem:[#allocation22 + $0x188] sm:$0xff]
        %v3805 = vld [vmem:[#allocation22 + $0x190] sm:$0xff]
        %v3806 = vld [vmem:[#allocation22 + $0x198] sm:$0xff]
        %v3807 = vld [vmem:[#allocation22 + $0x1a0] sm:$0xff]
        %v3808 = vld [vmem:[#allocation22 + $0x1a8] sm:$0xff]
        %v3809 = vld [vmem:[#allocation22 + $0x1b0] sm:$0xff]
        %v3810 = vld [vmem:[#allocation22 + $0x1b8] sm:$0xff]
        %v3811 = vld [vmem:[#allocation22 + $0x1c0] sm:$0xff]
        %v3812 = vld [vmem:[#allocation22 + $0x1c8] sm:$0xff]
        %v3813 = vld [vmem:[#allocation22 + $0x1d0] sm:$0xff]
        %v3814 = vld [vmem:[#allocation22 + $0x1d8] sm:$0xff]
        %v3815 = vld [vmem:[#allocation22 + $0x1e0] sm:$0xff]
        %v3816 = vld [vmem:[#allocation22 + $0x1e8] sm:$0xff]
        %v3817 = vld [vmem:[#allocation22 + $0x1f0] sm:$0xff]
        %v3818 = vld [vmem:[#allocation22 + $0x1f8] sm:$0xff]
        %v3819 = vld [vmem:[#allocation22 + $0x200] sm:$0xff]
        %v3820 = vld [vmem:[#allocation22 + $0x208] sm:$0xff]
        %v3821 = vld [vmem:[#allocation22 + $0x210] sm:$0xff]
        %v3822 = vld [vmem:[#allocation22 + $0x218] sm:$0xff]
        %v3823 = vld [vmem:[#allocation22 + $0x220] sm:$0xff]
        %v3824 = vld [vmem:[#allocation22 + $0x228] sm:$0xff]
        %v3825 = vld [vmem:[#allocation22 + $0x230] sm:$0xff]
        %v3826 = vld [vmem:[#allocation22 + $0x238] sm:$0xff]
        %v3827 = vld [vmem:[#allocation22 + $0x240] sm:$0xff]
        %v3828 = vld [vmem:[#allocation22 + $0x248] sm:$0xff]
        %v3829 = vld [vmem:[#allocation22 + $0x250] sm:$0xff]
        %v3830 = vld [vmem:[#allocation22 + $0x258] sm:$0xff]
        %v3831 = vld [vmem:[#allocation22 + $0x260] sm:$0xff]
        %v3832 = vld [vmem:[#allocation22 + $0x268] sm:$0xff]
        %v3833 = vld [vmem:[#allocation22 + $0x270] sm:$0xff]
        %v3834 = vld [vmem:[#allocation22 + $0x278] sm:$0xff]
        %v3835 = vld [vmem:[#allocation22 + $0x280] sm:$0xff]
        %v3836 = vld [vmem:[#allocation22 + $0x288] sm:$0xff]
        %v3837 = vld [vmem:[#allocation22 + $0x290] sm:$0xff]
        %v3838 = vld [vmem:[#allocation22 + $0x298] sm:$0xff]
        %v3839 = vld [vmem:[#allocation22 + $0x2a0] sm:$0xff]
        %v3840 = vld [vmem:[#allocation22 + $0x2a8] sm:$0xff]
        %v3841 = vld [vmem:[#allocation22 + $0x2b0] sm:$0xff]
        %v3842 = vld [vmem:[#allocation22 + $0x2b8] sm:$0xff]
        %v3843 = vld [vmem:[#allocation22 + $0x2c0] sm:$0xff]
        %v3844 = vld [vmem:[#allocation22 + $0x2c8] sm:$0xff]
        %v3845 = vld [vmem:[#allocation22 + $0x2d0] sm:$0xff]
        %v3846 = vld [vmem:[#allocation22 + $0x2d8] sm:$0xff]
        %v3847 = vld [vmem:[#allocation22 + $0x2e0] sm:$0xff]
        %v3848 = vld [vmem:[#allocation22 + $0x2e8] sm:$0xff]
        %v3849 = vld [vmem:[#allocation22 + $0x2f0] sm:$0xff]
        %v3850 = vld [vmem:[#allocation22 + $0x2f8] sm:$0xff]
        %v3851 = vld [vmem:[%s14] sm:$0x3]
        %v3852 = vunpack.c.l.bf16 %v3851
        %v3854 = vlaneseq
        %v3855 = vshrl.u32 %v3854, 7
        %v3856 = vsub.s32 0, %v3855
        %v3857 = vrot.slane %v3852, %v3856
        %v3858 = vlaneseq
        %v3859 = vshrl.u32 %v3858, 7
        %v3860 = vsub.s32 2, %v3859
        %v3861 = vrot.slane %v3852, %v3860
        %v3864 = vlaneseq
        %v3865 = vshrl.u32 %v3864, 7
        %v3866 = vsub.s32 0, %v3865
        %v3867 = vrot.slane %v3857, %v3866
        %v3868 = vlaneseq
        %v3869 = vshrl.u32 %v3868, 7
        %v3870 = vsub.s32 0, %v3869
        %v3871 = vrot.slane %v3861, %v3870
        %v3968 = vunpack.c.l.b16 %v3755
        %v3969 = vunpack.c.h.b16 %v3755
        %v3970 = vunpack.c.l.b16 %v3756
        %v3971 = vunpack.c.h.b16 %v3756
        %v3972 = vunpack.c.l.b16 %v3757
        %v3973 = vunpack.c.h.b16 %v3757
        %v3974 = vunpack.c.l.b16 %v3758
        %v3975 = vunpack.c.h.b16 %v3758
        %v3976 = vunpack.c.l.b16 %v3759
        %v3977 = vunpack.c.h.b16 %v3759
        %v3978 = vunpack.c.l.b16 %v3760
        %v3979 = vunpack.c.h.b16 %v3760
        %v3980 = vunpack.c.l.b16 %v3761
        %v3981 = vunpack.c.h.b16 %v3761
        %v3982 = vunpack.c.l.b16 %v3762
        %v3983 = vunpack.c.h.b16 %v3762
        %v3984 = vunpack.c.l.b16 %v3763
        %v3985 = vunpack.c.h.b16 %v3763
        %v3986 = vunpack.c.l.b16 %v3764
        %v3987 = vunpack.c.h.b16 %v3764
        %v3988 = vunpack.c.l.b16 %v3765
        %v3989 = vunpack.c.h.b16 %v3765
        %v3990 = vunpack.c.l.b16 %v3766
        %v3991 = vunpack.c.h.b16 %v3766
        %v3992 = vunpack.c.l.b16 %v3767
        %v3993 = vunpack.c.h.b16 %v3767
        %v3994 = vunpack.c.l.b16 %v3768
        %v3995 = vunpack.c.h.b16 %v3768
        %v3996 = vunpack.c.l.b16 %v3769
        %v3997 = vunpack.c.h.b16 %v3769
        %v3998 = vunpack.c.l.b16 %v3770
        %v3999 = vunpack.c.h.b16 %v3770
        %v4000 = vunpack.c.l.b16 %v3771
        %v4001 = vunpack.c.h.b16 %v3771
        %v4002 = vunpack.c.l.b16 %v3772
        %v4003 = vunpack.c.h.b16 %v3772
        %v4004 = vunpack.c.l.b16 %v3773
        %v4005 = vunpack.c.h.b16 %v3773
        %v4006 = vunpack.c.l.b16 %v3774
        %v4007 = vunpack.c.h.b16 %v3774
        %v4008 = vunpack.c.l.b16 %v3775
        %v4009 = vunpack.c.h.b16 %v3775
        %v4010 = vunpack.c.l.b16 %v3776
        %v4011 = vunpack.c.h.b16 %v3776
        %v4012 = vunpack.c.l.b16 %v3777
        %v4013 = vunpack.c.h.b16 %v3777
        %v4014 = vunpack.c.l.b16 %v3778
        %v4015 = vunpack.c.h.b16 %v3778
        %v4016 = vunpack.c.l.b16 %v3779
        %v4017 = vunpack.c.h.b16 %v3779
        %v4018 = vunpack.c.l.b16 %v3780
        %v4019 = vunpack.c.h.b16 %v3780
        %v4020 = vunpack.c.l.b16 %v3781
        %v4021 = vunpack.c.h.b16 %v3781
        %v4022 = vunpack.c.l.b16 %v3782
        %v4023 = vunpack.c.h.b16 %v3782
        %v4024 = vunpack.c.l.b16 %v3783
        %v4025 = vunpack.c.h.b16 %v3783
        %v4026 = vunpack.c.l.b16 %v3784
        %v4027 = vunpack.c.h.b16 %v3784
        %v4028 = vunpack.c.l.b16 %v3785
        %v4029 = vunpack.c.h.b16 %v3785
        %v4030 = vunpack.c.l.b16 %v3786
        %v4031 = vunpack.c.h.b16 %v3786
        %v4032 = vunpack.c.l.b16 %v3787
        %v4033 = vunpack.c.h.b16 %v3787
        %v4034 = vunpack.c.l.b16 %v3788
        %v4035 = vunpack.c.h.b16 %v3788
        %v4036 = vunpack.c.l.b16 %v3789
        %v4037 = vunpack.c.h.b16 %v3789
        %v4038 = vunpack.c.l.b16 %v3790
        %v4039 = vunpack.c.h.b16 %v3790
        %v4040 = vunpack.c.l.b16 %v3791
        %v4041 = vunpack.c.h.b16 %v3791
        %v4042 = vunpack.c.l.b16 %v3792
        %v4043 = vunpack.c.h.b16 %v3792
        %v4044 = vunpack.c.l.b16 %v3793
        %v4045 = vunpack.c.h.b16 %v3793
        %v4046 = vunpack.c.l.b16 %v3794
        %v4047 = vunpack.c.h.b16 %v3794
        %v4048 = vunpack.c.l.b16 %v3795
        %v4049 = vunpack.c.h.b16 %v3795
        %v4050 = vunpack.c.l.b16 %v3796
        %v4051 = vunpack.c.h.b16 %v3796
        %v4052 = vunpack.c.l.b16 %v3797
        %v4053 = vunpack.c.h.b16 %v3797
        %v4054 = vunpack.c.l.b16 %v3798
        %v4055 = vunpack.c.h.b16 %v3798
        %v4056 = vunpack.c.l.b16 %v3799
        %v4057 = vunpack.c.h.b16 %v3799
        %v4058 = vunpack.c.l.b16 %v3800
        %v4059 = vunpack.c.h.b16 %v3800
        %v4060 = vunpack.c.l.b16 %v3801
        %v4061 = vunpack.c.h.b16 %v3801
        %v4062 = vunpack.c.l.b16 %v3802
        %v4063 = vunpack.c.h.b16 %v3802
        %v4064 = vunpack.c.l.b16 %v3803
        %v4065 = vunpack.c.h.b16 %v3803
        %v4066 = vunpack.c.l.b16 %v3804
        %v4067 = vunpack.c.h.b16 %v3804
        %v4068 = vunpack.c.l.b16 %v3805
        %v4069 = vunpack.c.h.b16 %v3805
        %v4070 = vunpack.c.l.b16 %v3806
        %v4071 = vunpack.c.h.b16 %v3806
        %v4072 = vunpack.c.l.b16 %v3807
        %v4073 = vunpack.c.h.b16 %v3807
        %v4074 = vunpack.c.l.b16 %v3808
        %v4075 = vunpack.c.h.b16 %v3808
        %v4076 = vunpack.c.l.b16 %v3809
        %v4077 = vunpack.c.h.b16 %v3809
        %v4078 = vunpack.c.l.b16 %v3810
        %v4079 = vunpack.c.h.b16 %v3810
        %v4080 = vunpack.c.l.b16 %v3811
        %v4081 = vunpack.c.h.b16 %v3811
        %v4082 = vunpack.c.l.b16 %v3812
        %v4083 = vunpack.c.h.b16 %v3812
        %v4084 = vunpack.c.l.b16 %v3813
        %v4085 = vunpack.c.h.b16 %v3813
        %v4086 = vunpack.c.l.b16 %v3814
        %v4087 = vunpack.c.h.b16 %v3814
        %v4088 = vunpack.c.l.b16 %v3815
        %v4089 = vunpack.c.h.b16 %v3815
        %v4090 = vunpack.c.l.b16 %v3816
        %v4091 = vunpack.c.h.b16 %v3816
        %v4092 = vunpack.c.l.b16 %v3817
        %v4093 = vunpack.c.h.b16 %v3817
        %v4094 = vunpack.c.l.b16 %v3818
        %v4095 = vunpack.c.h.b16 %v3818
        %v4096 = vunpack.c.l.b16 %v3819
        %v4097 = vunpack.c.h.b16 %v3819
        %v4098 = vunpack.c.l.b16 %v3820
        %v4099 = vunpack.c.h.b16 %v3820
        %v4100 = vunpack.c.l.b16 %v3821
        %v4101 = vunpack.c.h.b16 %v3821
        %v4102 = vunpack.c.l.b16 %v3822
        %v4103 = vunpack.c.h.b16 %v3822
        %v4104 = vunpack.c.l.b16 %v3823
        %v4105 = vunpack.c.h.b16 %v3823
        %v4106 = vunpack.c.l.b16 %v3824
        %v4107 = vunpack.c.h.b16 %v3824
        %v4108 = vunpack.c.l.b16 %v3825
        %v4109 = vunpack.c.h.b16 %v3825
        %v4110 = vunpack.c.l.b16 %v3826
        %v4111 = vunpack.c.h.b16 %v3826
        %v4112 = vunpack.c.l.b16 %v3827
        %v4113 = vunpack.c.h.b16 %v3827
        %v4114 = vunpack.c.l.b16 %v3828
        %v4115 = vunpack.c.h.b16 %v3828
        %v4116 = vunpack.c.l.b16 %v3829
        %v4117 = vunpack.c.h.b16 %v3829
        %v4118 = vunpack.c.l.b16 %v3830
        %v4119 = vunpack.c.h.b16 %v3830
        %v4120 = vunpack.c.l.b16 %v3831
        %v4121 = vunpack.c.h.b16 %v3831
        %v4122 = vunpack.c.l.b16 %v3832
        %v4123 = vunpack.c.h.b16 %v3832
        %v4124 = vunpack.c.l.b16 %v3833
        %v4125 = vunpack.c.h.b16 %v3833
        %v4126 = vunpack.c.l.b16 %v3834
        %v4127 = vunpack.c.h.b16 %v3834
        %v4128 = vunpack.c.l.b16 %v3835
        %v4129 = vunpack.c.h.b16 %v3835
        %v4130 = vunpack.c.l.b16 %v3836
        %v4131 = vunpack.c.h.b16 %v3836
        %v4132 = vunpack.c.l.b16 %v3837
        %v4133 = vunpack.c.h.b16 %v3837
        %v4134 = vunpack.c.l.b16 %v3838
        %v4135 = vunpack.c.h.b16 %v3838
        %v4136 = vunpack.c.l.b16 %v3839
        %v4137 = vunpack.c.h.b16 %v3839
        %v4138 = vunpack.c.l.b16 %v3840
        %v4139 = vunpack.c.h.b16 %v3840
        %v4140 = vunpack.c.l.b16 %v3841
        %v4141 = vunpack.c.h.b16 %v3841
        %v4142 = vunpack.c.l.b16 %v3842
        %v4143 = vunpack.c.h.b16 %v3842
        %v4144 = vunpack.c.l.b16 %v3843
        %v4145 = vunpack.c.h.b16 %v3843
        %v4146 = vunpack.c.l.b16 %v3844
        %v4147 = vunpack.c.h.b16 %v3844
        %v4148 = vunpack.c.l.b16 %v3845
        %v4149 = vunpack.c.h.b16 %v3845
        %v4150 = vunpack.c.l.b16 %v3846
        %v4151 = vunpack.c.h.b16 %v3846
        %v4152 = vunpack.c.l.b16 %v3847
        %v4153 = vunpack.c.h.b16 %v3847
        %v4154 = vunpack.c.l.b16 %v3848
        %v4155 = vunpack.c.h.b16 %v3848
        %v4156 = vunpack.c.l.b16 %v3849
        %v4157 = vunpack.c.h.b16 %v3849
        %v4158 = vunpack.c.l.b16 %v3850
        %v4159 = vunpack.c.h.b16 %v3850
        %v4160 = vpack.c.b16 %v3970, %v3968
        %v4161 = vpack.c.b16 %v3971, %v3969
        %v4162 = vpack.c.b16 %v3974, %v3972
        %v4163 = vpack.c.b16 %v3975, %v3973
        %v4164 = vpack.c.b16 %v3978, %v3976
        %v4165 = vpack.c.b16 %v3979, %v3977
        %v4166 = vpack.c.b16 %v3982, %v3980
        %v4167 = vpack.c.b16 %v3983, %v3981
        %v4168 = vpack.c.b16 %v3986, %v3984
        %v4169 = vpack.c.b16 %v3987, %v3985
        %v4170 = vpack.c.b16 %v3990, %v3988
        %v4171 = vpack.c.b16 %v3991, %v3989
        %v4172 = vpack.c.b16 %v3994, %v3992
        %v4173 = vpack.c.b16 %v3995, %v3993
        %v4174 = vpack.c.b16 %v3998, %v3996
        %v4175 = vpack.c.b16 %v3999, %v3997
        %v4176 = vpack.c.b16 %v4002, %v4000
        %v4177 = vpack.c.b16 %v4003, %v4001
        %v4178 = vpack.c.b16 %v4006, %v4004
        %v4179 = vpack.c.b16 %v4007, %v4005
        %v4180 = vpack.c.b16 %v4010, %v4008
        %v4181 = vpack.c.b16 %v4011, %v4009
        %v4182 = vpack.c.b16 %v4014, %v4012
        %v4183 = vpack.c.b16 %v4015, %v4013
        %v4184 = vpack.c.b16 %v4018, %v4016
        %v4185 = vpack.c.b16 %v4019, %v4017
        %v4186 = vpack.c.b16 %v4022, %v4020
        %v4187 = vpack.c.b16 %v4023, %v4021
        %v4188 = vpack.c.b16 %v4026, %v4024
        %v4189 = vpack.c.b16 %v4027, %v4025
        %v4190 = vpack.c.b16 %v4030, %v4028
        %v4191 = vpack.c.b16 %v4031, %v4029
        %v4192 = vpack.c.b16 %v4034, %v4032
        %v4193 = vpack.c.b16 %v4035, %v4033
        %v4194 = vpack.c.b16 %v4038, %v4036
        %v4195 = vpack.c.b16 %v4039, %v4037
        %v4196 = vpack.c.b16 %v4042, %v4040
        %v4197 = vpack.c.b16 %v4043, %v4041
        %v4198 = vpack.c.b16 %v4046, %v4044
        %v4199 = vpack.c.b16 %v4047, %v4045
        %v4200 = vpack.c.b16 %v4050, %v4048
        %v4201 = vpack.c.b16 %v4051, %v4049
        %v4202 = vpack.c.b16 %v4054, %v4052
        %v4203 = vpack.c.b16 %v4055, %v4053
        %v4204 = vpack.c.b16 %v4058, %v4056
        %v4205 = vpack.c.b16 %v4059, %v4057
        %v4206 = vpack.c.b16 %v4062, %v4060
        %v4207 = vpack.c.b16 %v4063, %v4061
        %v4208 = vpack.c.b16 %v4066, %v4064
        %v4209 = vpack.c.b16 %v4067, %v4065
        %v4210 = vpack.c.b16 %v4070, %v4068
        %v4211 = vpack.c.b16 %v4071, %v4069
        %v4212 = vpack.c.b16 %v4074, %v4072
        %v4213 = vpack.c.b16 %v4075, %v4073
        %v4214 = vpack.c.b16 %v4078, %v4076
        %v4215 = vpack.c.b16 %v4079, %v4077
        %v4216 = vpack.c.b16 %v4082, %v4080
        %v4217 = vpack.c.b16 %v4083, %v4081
        %v4218 = vpack.c.b16 %v4086, %v4084
        %v4219 = vpack.c.b16 %v4087, %v4085
        %v4220 = vpack.c.b16 %v4090, %v4088
        %v4221 = vpack.c.b16 %v4091, %v4089
        %v4222 = vpack.c.b16 %v4094, %v4092
        %v4223 = vpack.c.b16 %v4095, %v4093
        %v4224 = vpack.c.b16 %v4098, %v4096
        %v4225 = vpack.c.b16 %v4099, %v4097
        %v4226 = vpack.c.b16 %v4102, %v4100
        %v4227 = vpack.c.b16 %v4103, %v4101
        %v4228 = vpack.c.b16 %v4106, %v4104
        %v4229 = vpack.c.b16 %v4107, %v4105
        %v4230 = vpack.c.b16 %v4110, %v4108
        %v4231 = vpack.c.b16 %v4111, %v4109
        %v4232 = vpack.c.b16 %v4114, %v4112
        %v4233 = vpack.c.b16 %v4115, %v4113
        %v4234 = vpack.c.b16 %v4118, %v4116
        %v4235 = vpack.c.b16 %v4119, %v4117
        %v4236 = vpack.c.b16 %v4122, %v4120
        %v4237 = vpack.c.b16 %v4123, %v4121
        %v4238 = vpack.c.b16 %v4126, %v4124
        %v4239 = vpack.c.b16 %v4127, %v4125
        %v4240 = vpack.c.b16 %v4130, %v4128
        %v4241 = vpack.c.b16 %v4131, %v4129
        %v4242 = vpack.c.b16 %v4134, %v4132
        %v4243 = vpack.c.b16 %v4135, %v4133
        %v4244 = vpack.c.b16 %v4138, %v4136
        %v4245 = vpack.c.b16 %v4139, %v4137
        %v4246 = vpack.c.b16 %v4142, %v4140
        %v4247 = vpack.c.b16 %v4143, %v4141
        %v4248 = vpack.c.b16 %v4146, %v4144
        %v4249 = vpack.c.b16 %v4147, %v4145
        %v4250 = vpack.c.b16 %v4150, %v4148
        %v4251 = vpack.c.b16 %v4151, %v4149
        %v4252 = vpack.c.b16 %v4154, %v4152
        %v4253 = vpack.c.b16 %v4155, %v4153
        %v4254 = vpack.c.b16 %v4158, %v4156
        %v4255 = vpack.c.b16 %v4159, %v4157
        %4352 = vmatprep.subr.bf16.mxu0 %v4175
        %4353 = vmatpush1.bf16.msra.mxu0 %v4174
        %4354 = vmatprep.subr.bf16.mxu0 %v4173
        %4355 = vmatpush1.bf16.msra.mxu0 %v4172
        %4356 = vmatprep.subr.bf16.mxu0 %v4171
        %4357 = vmatpush1.bf16.msra.mxu0 %v4170
        %4358 = vmatprep.subr.bf16.mxu0 %v4169
        %4359 = vmatpush1.bf16.msra.mxu0 %v4168
        %4360 = vmatprep.subr.bf16.mxu0 %v4167
        %4361 = vmatpush1.bf16.msra.mxu0 %v4166
        %4362 = vmatprep.subr.bf16.mxu0 %v4165
        %4363 = vmatpush1.bf16.msra.mxu0 %v4164
        %4364 = vmatprep.subr.bf16.mxu0 %v4163
        %4365 = vmatpush1.bf16.msra.mxu0 %v4162
        %4366 = vmatprep.subr.bf16.mxu0 %v4161
        %4367 = vmatpush1.bf16.msra.mxu0 %v4160
        %4368 = vmatprep.subr.bf16.mxu0 %v4191
        %4369 = vmatpush2.bf16.msra.mxu0 %v4190
        %4370 = vmatprep.subr.bf16.mxu0 %v4189
        %4371 = vmatpush2.bf16.msra.mxu0 %v4188
        %4372 = vmatprep.subr.bf16.mxu0 %v4187
        %4373 = vmatpush2.bf16.msra.mxu0 %v4186
        %4374 = vmatprep.subr.bf16.mxu0 %v4185
        %4375 = vmatpush2.bf16.msra.mxu0 %v4184
        %4376 = vmatprep.subr.bf16.mxu0 %v4183
        %4377 = vmatpush2.bf16.msra.mxu0 %v4182
        %4378 = vmatprep.subr.bf16.mxu0 %v4181
        %4379 = vmatpush2.bf16.msra.mxu0 %v4180
        %4380 = vmatprep.subr.bf16.mxu0 %v4179
        %4381 = vmatpush2.bf16.msra.mxu0 %v4178
        %4382 = vmatprep.subr.bf16.mxu0 %v4177
        %4383 = vmatpush2.bf16.msra.mxu0 %v4176
        %4384 = vmatprep.mubr.bf16.mxu0 %v3750
        %4385 = vmatmul.mubr.bf16.gmra.mxu0 %v3749
        %v4386 = vpop.f32.mrf.mxu0
        %v4387 = vadd.f32 %v3867, %v4386
        %v4388 = vpop.f32.mrf.mxu0
        %v4389 = vadd.f32 %v3871, %v4388
        %v4390 = vpop.f32.mrf.mxu0
        %v4391 = vadd.f32 %v3867, %v4390
        %v4392 = vpop.f32.mrf.mxu0
        %v4393 = vadd.f32 %v3871, %v4392
        %4394 = vdwg.mxu0
        %4395 = vmatprep.subr.bf16.mxu0 %v4207
        %4396 = vmatpush1.bf16.msra.mxu0 %v4206
        %4397 = vmatprep.subr.bf16.mxu0 %v4205
        %4398 = vmatpush1.bf16.msra.mxu0 %v4204
        %4399 = vmatprep.subr.bf16.mxu0 %v4203
        %4400 = vmatpush1.bf16.msra.mxu0 %v4202
        %4401 = vmatprep.subr.bf16.mxu0 %v4201
        %4402 = vmatpush1.bf16.msra.mxu0 %v4200
        %4403 = vmatprep.subr.bf16.mxu0 %v4199
        %4404 = vmatpush1.bf16.msra.mxu0 %v4198
        %4405 = vmatprep.subr.bf16.mxu0 %v4197
        %4406 = vmatpush1.bf16.msra.mxu0 %v4196
        %4407 = vmatprep.subr.bf16.mxu0 %v4195
        %4408 = vmatpush1.bf16.msra.mxu0 %v4194
        %4409 = vmatprep.subr.bf16.mxu0 %v4193
        %4410 = vmatpush1.bf16.msra.mxu0 %v4192
        %4411 = vmatprep.subr.bf16.mxu0 %v4223
        %4412 = vmatpush2.bf16.msra.mxu0 %v4222
        %4413 = vmatprep.subr.bf16.mxu0 %v4221
        %4414 = vmatpush2.bf16.msra.mxu0 %v4220
        %4415 = vmatprep.subr.bf16.mxu0 %v4219
        %4416 = vmatpush2.bf16.msra.mxu0 %v4218
        %4417 = vmatprep.subr.bf16.mxu0 %v4217
        %4418 = vmatpush2.bf16.msra.mxu0 %v4216
        %4419 = vmatprep.subr.bf16.mxu0 %v4215
        %4420 = vmatpush2.bf16.msra.mxu0 %v4214
        %4421 = vmatprep.subr.bf16.mxu0 %v4213
        %4422 = vmatpush2.bf16.msra.mxu0 %v4212
        %4423 = vmatprep.subr.bf16.mxu0 %v4211
        %4424 = vmatpush2.bf16.msra.mxu0 %v4210
        %4425 = vmatprep.subr.bf16.mxu0 %v4209
        %4426 = vmatpush2.bf16.msra.mxu0 %v4208
        %4427 = vmatprep.mubr.bf16.mxu0 %v3752
        %4428 = vmatmul.mubr.bf16.gmra.mxu0 %v3751
        %v4429 = vpop.f32.mrf.mxu0
        %v4430 = vadd.f32 %v4387, %v4429
        %v4431 = vpop.f32.mrf.mxu0
        %v4432 = vadd.f32 %v4389, %v4431
        %v4433 = vpop.f32.mrf.mxu0
        %v4434 = vadd.f32 %v4391, %v4433
        %v4435 = vpop.f32.mrf.mxu0
        %v4436 = vadd.f32 %v4393, %v4435
        %4437 = vdwg.mxu0
        %4438 = vmatprep.subr.bf16.mxu0 %v4239
        %4439 = vmatpush1.bf16.msra.mxu0 %v4238
        %4440 = vmatprep.subr.bf16.mxu0 %v4237
        %4441 = vmatpush1.bf16.msra.mxu0 %v4236
        %4442 = vmatprep.subr.bf16.mxu0 %v4235
        %4443 = vmatpush1.bf16.msra.mxu0 %v4234
        %4444 = vmatprep.subr.bf16.mxu0 %v4233
        %4445 = vmatpush1.bf16.msra.mxu0 %v4232
        %4446 = vmatprep.subr.bf16.mxu0 %v4231
        %4447 = vmatpush1.bf16.msra.mxu0 %v4230
        %4448 = vmatprep.subr.bf16.mxu0 %v4229
        %4449 = vmatpush1.bf16.msra.mxu0 %v4228
        %4450 = vmatprep.subr.bf16.mxu0 %v4227
        %4451 = vmatpush1.bf16.msra.mxu0 %v4226
        %4452 = vmatprep.subr.bf16.mxu0 %v4225
        %4453 = vmatpush1.bf16.msra.mxu0 %v4224
        %4454 = vmatprep.subr.bf16.mxu0 %v4255
        %4455 = vmatpush2.bf16.msra.mxu0 %v4254
        %4456 = vmatprep.subr.bf16.mxu0 %v4253
        %4457 = vmatpush2.bf16.msra.mxu0 %v4252
        %4458 = vmatprep.subr.bf16.mxu0 %v4251
        %4459 = vmatpush2.bf16.msra.mxu0 %v4250
        %4460 = vmatprep.subr.bf16.mxu0 %v4249
        %4461 = vmatpush2.bf16.msra.mxu0 %v4248
        %4462 = vmatprep.subr.bf16.mxu0 %v4247
        %4463 = vmatpush2.bf16.msra.mxu0 %v4246
        %4464 = vmatprep.subr.bf16.mxu0 %v4245
        %4465 = vmatpush2.bf16.msra.mxu0 %v4244
        %4466 = vmatprep.subr.bf16.mxu0 %v4243
        %4467 = vmatpush2.bf16.msra.mxu0 %v4242
        %4468 = vmatprep.subr.bf16.mxu0 %v4241
        %4469 = vmatpush2.bf16.msra.mxu0 %v4240
        %4470 = vmatprep.mubr.bf16.mxu0 %v3754
        %4471 = vmatmul.mubr.bf16.gmra.mxu0 %v3753
        %v4472 = vpop.f32.mrf.mxu0
        %v4473 = vadd.f32 %v4430, %v4472
        %v4474 = vpop.f32.mrf.mxu0
        %v4475 = vadd.f32 %v4432, %v4474
        %v4476 = vpop.f32.mrf.mxu0
        %v4477 = vadd.f32 %v4434, %v4476
        %v4478 = vpop.f32.mrf.mxu0
        %v4479 = vadd.f32 %v4436, %v4478
        %4480 = vdwg.mxu0
        %v4481 = vadd.f32 %v2051, %v4473
        %v4482 = vadd.f32 %v2052, %v4475
        %v4483 = vadd.f32 %v2053, %v4477
        %v4484 = vadd.f32 %v2054, %v4479
        %v4485 = vpack.c.bf16 %v4483, %v4481
        %v4486 = vpack.c.bf16 %v4484, %v4482
        %v4489 = vunpack.c.l.b16 %v4485
        %v4490 = vunpack.c.l.b16 %v4486
        %v4491 = vunpack.c.h.b16 %v4485
        %v4492 = vunpack.c.h.b16 %v4486
        %v4493 = vpack.c.b16 %v4490, %v4489
        %v4494 = vpack.c.b16 %v4492, %v4491
        %4497 = vst [vmem:[%s673] sm:$0xff] %v4493
        %4498 = vst [vmem:[%s673 + $0x8] sm:$0xff] %v4494
        %s4499 = sand.u32 %s366, 1
        %s4500 = scalar_lea.sflag [#allocation4], %s4499
        %s4501 = sand.u32 %s366, 1
        %s4502 = smul.addr %s4501, 16
        %s4503 = scalar_lea.vmem [#allocation23], %s4502
        // Predicated region
        $region133: #{tpu_custom_call.1} parent=79 // pred_check
          %p4504 = pneg %p376
        $region134: #{tpu_custom_call.1} parent=79 // pred_check_branch
          %4506 = sbr.rel (%p4504) target = $region136
        $region135: #{tpu_custom_call.1} parent=79 // pred_region
          %s4507 = smul.u32 2, %s38
          %s4509 = ssub.s32 256, 256
          %4510 = vsyncadd %s4500, %s4509
          %s4511 = smul.addr %s4507, 2
          %s4512 = smul.addr %s4511, 64
          %s4513 = scalar_lea.hbm %s15, %s4512
          %s4514 = sshll.u32 %s4503, 4
          %s4515 = int_to_ptr.vmem [resolvable:$true] %s4514
          %4520 = dma.vmem_to_hbm [thread:$0]  %s4515, 256, %s4513, %s4500, 128, 128, 8
        $region136: #{tpu_custom_call.1} parent=79 // pred_fallthru
          _
      $region80: #{tpu_custom_call.1} parent=5 // pred_fallthru
        _
      %p4521 = scmp.le.s32.totalorder 2, %s33
      // Predicated region
      $region137: #{tpu_custom_call.1} parent=5 // pred_check
        %p4522 = pneg %p4521
      $region138: #{tpu_custom_call.1} parent=5 // pred_check_branch
        %4524 = sbr.rel (%p4522) target = $region140
      $region139: #{tpu_custom_call.1} parent=5 // pred_region
        %s4525 = ssub.s32 %s33, 2
        // Predicated region
        $region141: #{tpu_custom_call.1} parent=139 // pred_check
          %p4526 = pneg %p382
        $region142: #{tpu_custom_call.1} parent=139 // pred_check_branch
          %4528 = sbr.rel (%p4526) target = $region144
        $region143: #{tpu_custom_call.1} parent=139 // pred_region
          %s4529 = sand.u32 %s367, 1
          %s4530 = scalar_lea.sflag [#allocation4], %s4529
          %s4531 = sand.u32 %s367, 1
          %s4532 = smul.addr %s4531, 16
          %s4533 = scalar_lea.vmem [#allocation23], %s4532
          %4534 = dma.done %s4530, 256
        $region144: #{tpu_custom_call.1} parent=139 // pred_fallthru
          _
      $region140: #{tpu_custom_call.1} parent=5 // pred_fallthru
        _
    $region6: #{tpu_custom_call.1} parent=1 // loop_footer
      %s37 = sadd.s32 1, %s33
    $region7: #{tpu_custom_call.1} parent=1 // loop_footer_branch
      %32 = sbr.rel target = $region3
    $region8: #{tpu_custom_call.1} parent=1 // loop_exit
      _
    %4535 = vsyncpa [#allocation3], 1
    %s4536 = scalar_lea.sflag [#allocation3], 1
    %4537 = vsyncpa %s4536, 1
    %4538 = vsyncpa [#allocation6], 1
    %4539 = vsyncpa [#allocation9], 1
    %4540 = vsyncpa [#allocation12], 1
    %4541 = vsyncpa [#allocation15], 1
    %4542 = vsyncpa [#allocation18], 1
    %4543 = vsyncpa [#allocation21], 1
    %4544 = vsyncpa [#allocation4], 1
    %s4545 = scalar_lea.sflag [#allocation4], 1
    %4546 = vsyncpa %s4545, 1

</llo_original>
